<compile_context>
chip_gen: v7x
topology: tpu7x:2x2x1
jax: 0.10.0
libtpu: 0.0.40
codegen_flags: <defaults>
</compile_context>

<pallas_src>
import math
from functools import partial

import jax
import jax.numpy as jnp
from jax.experimental import pallas as pl
from jax.experimental.pallas import tpu as pltpu


_VMEM_LIMIT = 32 * 1024 * 1024  # fits v7x's 64 MiB physical / default scoped VMEM


def _round_up(v, m):
    return (v + m - 1) // m * m


# ----------------------------------------------------------------------------
# Tiled linear (+bias, +optional ReLU): bf16 MXU operands, f32 accumulation
# ----------------------------------------------------------------------------

def _linear_kernel(x_ref, w_ref, b_ref, o_ref, acc_ref, *, activation):
    @pl.when(pl.program_id(2) == 0)
    def _init():
        acc_ref[...] = jnp.zeros_like(acc_ref)

    acc_ref[...] += jnp.dot(
        x_ref[...].astype(jnp.bfloat16),
        w_ref[...].astype(jnp.bfloat16),
        preferred_element_type=jnp.float32,
    )

    @pl.when(pl.program_id(2) == pl.num_programs(2) - 1)
    def _finalize():
        y = acc_ref[...] + b_ref[...].astype(jnp.float32)
        if activation == "relu":
            y = jnp.maximum(y, 0.0)
        o_ref[...] = y.astype(o_ref.dtype)


def linear(x, w, b, activation="none"):
    """x: (M, K) f32, w: (K, N), b: (N,) -> (M, N)."""
    M, K = x.shape
    N = w.shape[1]

    tm = min(256, _round_up(M, 8))
    tn = min(256, _round_up(N, 128))
    tk = min(512, _round_up(K, 128))
    Mp, Kp, Np = _round_up(M, tm), _round_up(K, tk), _round_up(N, tn)

    xp = x if (Mp == M and Kp == K) else jnp.pad(x, ((0, Mp - M), (0, Kp - K)))
    wp = w if (Kp == K and Np == N) else jnp.pad(w, ((0, Kp - K), (0, Np - N)))
    bp = (b if Np == N else jnp.pad(b, (0, Np - N))).reshape(1, Np)

    grid = (Mp // tm, Np // tn, Kp // tk)
    out = pl.pallas_call(
        partial(_linear_kernel, activation=activation),
        grid=grid,
        out_shape=jax.ShapeDtypeStruct((Mp, Np), x.dtype),
        in_specs=[
            pl.BlockSpec((tm, tk), lambda i, j, k: (i, k)),
            pl.BlockSpec((tk, tn), lambda i, j, k: (k, j)),
            pl.BlockSpec((1, tn), lambda i, j, k: (0, j)),
        ],
        out_specs=pl.BlockSpec((tm, tn), lambda i, j, k: (i, j)),
        scratch_shapes=[pltpu.VMEM((tm, tn), jnp.float32)],
        compiler_params=pltpu.CompilerParams(
            dimension_semantics=("parallel", "parallel", "arbitrary"),
            vmem_limit_bytes=_VMEM_LIMIT,
        ),
    )(xp, wp, bp)
    if Mp != M or Np != N:
        out = out[:M, :N]
    return out


# ----------------------------------------------------------------------------
# Residual-add + LayerNorm fused, tiled over row blocks
# ----------------------------------------------------------------------------

def _ln_res_kernel(x_ref, r_ref, g_ref, b_ref, o_ref):
    x = x_ref[...].astype(jnp.float32) + r_ref[...].astype(jnp.float32)
    mean = jnp.mean(x, axis=-1, keepdims=True)
    var = jnp.mean((x - mean) ** 2, axis=-1, keepdims=True)
    xhat = (x - mean) * jax.lax.rsqrt(var + 1e-5)
    o_ref[...] = (xhat * g_ref[...] + b_ref[...]).astype(o_ref.dtype)


def layer_norm_residual(x, res, gamma, beta):
    """LayerNorm(x + res); x, res: (M, D) f32, gamma/beta: (D,)."""
    M, D = x.shape
    tm = min(256, _round_up(M, 8))
    Mp = _round_up(M, tm)
    xp = x if Mp == M else jnp.pad(x, ((0, Mp - M), (0, 0)))
    rp = res if Mp == M else jnp.pad(res, ((0, Mp - M), (0, 0)))

    out = pl.pallas_call(
        _ln_res_kernel,
        grid=(Mp // tm,),
        out_shape=jax.ShapeDtypeStruct((Mp, D), x.dtype),
        in_specs=[
            pl.BlockSpec((tm, D), lambda i: (i, 0)),
            pl.BlockSpec((tm, D), lambda i: (i, 0)),
            pl.BlockSpec((1, D), lambda i: (0, 0)),
            pl.BlockSpec((1, D), lambda i: (0, 0)),
        ],
        out_specs=pl.BlockSpec((tm, D), lambda i: (i, 0)),
        compiler_params=pltpu.CompilerParams(
            dimension_semantics=("parallel",),
            vmem_limit_bytes=_VMEM_LIMIT,
        ),
    )(xp, rp, gamma.reshape(1, D), beta.reshape(1, D))
    return out[:M] if Mp != M else out


# ----------------------------------------------------------------------------
# Attention: one grid step per batch element, all heads inside the kernel
# ----------------------------------------------------------------------------

def _attn_core(q, k, v, mask, nhead, scale, out_dtype):
    """q: (Sq, D), k/v: (Sk, D) f32; additive mask (Sq, Sk) f32 or None."""
    D = q.shape[-1]
    dh = D // nhead
    outs = []
    for h in range(nhead):
        sl = slice(h * dh, (h + 1) * dh)
        qh = q[:, sl].astype(jnp.bfloat16)
        kh = k[:, sl].astype(jnp.bfloat16)
        vh = v[:, sl].astype(jnp.bfloat16)
        s = jnp.dot(qh, kh.T, preferred_element_type=jnp.float32) * scale
        if mask is not None:
            s = s + mask
        m = jnp.max(s, axis=-1, keepdims=True)
        p = jnp.exp(s - m)
        denom = jnp.sum(p, axis=-1, keepdims=True)
        p = p * pl.reciprocal(denom, approx=True)
        outs.append(jnp.dot(p.astype(jnp.bfloat16), vh,
                            preferred_element_type=jnp.float32))
    return jnp.concatenate(outs, axis=-1).astype(out_dtype)


def _self_attn_kernel(qkv_ref, *rest, nhead, scale, has_mask):
    if has_mask:
        mask_ref, o_ref = rest
        mask = mask_ref[...].astype(jnp.float32)
    else:
        (o_ref,) = rest
        mask = None
    qkv = qkv_ref[0]                       # (S, 3D)
    D = qkv.shape[-1] // 3
    o_ref[0] = _attn_core(qkv[:, :D], qkv[:, D:2 * D], qkv[:, 2 * D:],
                          mask, nhead, scale, o_ref.dtype)


def _cross_attn_kernel(q_ref, kv_ref, *rest, nhead, scale, has_mask):
    if has_mask:
        mask_ref, o_ref = rest
        mask = mask_ref[...].astype(jnp.float32)
    else:
        (o_ref,) = rest
        mask = None
    q = q_ref[0]                           # (Sq, D)
    kv = kv_ref[0]                         # (Sk, 2D)
    D = q.shape[-1]
    o_ref[0] = _attn_core(q, kv[:, :D], kv[:, D:],
                          mask, nhead, scale, o_ref.dtype)


def _attn_pallas_call(kernel_fn, args, in_specs, B, Sq, D, nhead, scale,
                      has_mask, out_dtype):
    return pl.pallas_call(
        partial(kernel_fn, nhead=nhead, scale=scale, has_mask=has_mask),
        grid=(B,),
        out_shape=jax.ShapeDtypeStruct((B, Sq, D), out_dtype),
        in_specs=in_specs,
        out_specs=pl.BlockSpec((1, Sq, D), lambda i: (i, 0, 0)),
        compiler_params=pltpu.CompilerParams(
            dimension_semantics=("parallel",),
            vmem_limit_bytes=_VMEM_LIMIT,
        ),
    )(*args)


def self_attention(x, p, nhead, mask=None):
    """Fused-QKV multi-head self-attention.  x: (B, S, D)."""
    B, S, D = x.shape
    qkv = linear(x.reshape(B * S, D), p["w_qkv"], p["b_qkv"]).reshape(B, S, 3 * D)
    in_specs = [pl.BlockSpec((1, S, 3 * D), lambda i: (i, 0, 0))]
    args = [qkv]
    if mask is not None:
        in_specs.append(pl.BlockSpec((S, S), lambda i: (0, 0)))
        args.append(mask)
    scale = 1.0 / math.sqrt(D // nhead)
    o = _attn_pallas_call(_self_attn_kernel, args, in_specs, B, S, D, nhead,
                          scale, mask is not None, x.dtype)
    return linear(o.reshape(B * S, D), p["w_o"], p["b_o"]).reshape(B, S, D)


def cross_attention(x_q, memory, p, nhead, mask=None):
    """Multi-head cross-attention (fused K/V).  x_q: (B, Sq, D), memory: (B, Sk, D)."""
    B, Sq, D = x_q.shape
    Sk = memory.shape[1]
    q = linear(x_q.reshape(B * Sq, D), p["w_q"], p["b_q"]).reshape(B, Sq, D)
    kv = linear(memory.reshape(B * Sk, D), p["w_kv"], p["b_kv"]).reshape(B, Sk, 2 * D)
    in_specs = [
        pl.BlockSpec((1, Sq, D), lambda i: (i, 0, 0)),
        pl.BlockSpec((1, Sk, 2 * D), lambda i: (i, 0, 0)),
    ]
    args = [q, kv]
    if mask is not None:
        in_specs.append(pl.BlockSpec((Sq, Sk), lambda i: (0, 0)))
        args.append(mask)
    scale = 1.0 / math.sqrt(D // nhead)
    o = _attn_pallas_call(_cross_attn_kernel, args, in_specs, B, Sq, D, nhead,
                          scale, mask is not None, x_q.dtype)
    return linear(o.reshape(B * Sq, D), p["w_o"], p["b_o"]).reshape(B, Sq, D)


# ----------------------------------------------------------------------------
# Model glue
# ----------------------------------------------------------------------------

def ffn(x2d, p):
    h = linear(x2d, p["w1"], p["b1"], activation="relu")
    return linear(h, p["w2"], p["b2"])


def encoder_layer(x, p, nhead):
    B, S, D = x.shape
    a = self_attention(x, p["attn"], nhead, mask=None)
    x2d = layer_norm_residual(x.reshape(B * S, D), a.reshape(B * S, D),
                              p["ln1_g"], p["ln1_b"])
    h = ffn(x2d, p["ffn"])
    x2d = layer_norm_residual(x2d, h, p["ln2_g"], p["ln2_b"])
    return x2d.reshape(B, S, D)


def decoder_layer(x, memory, p, nhead, tgt_mask):
    B, St, D = x.shape
    a = self_attention(x, p["self_attn"], nhead, mask=tgt_mask)
    x2d = layer_norm_residual(x.reshape(B * St, D), a.reshape(B * St, D),
                              p["ln1_g"], p["ln1_b"])
    x = x2d.reshape(B, St, D)
    c = cross_attention(x, memory, p["cross_attn"], nhead, mask=None)
    x2d = layer_norm_residual(x2d, c.reshape(B * St, D), p["ln2_g"], p["ln2_b"])
    h = ffn(x2d, p["ffn"])
    x2d = layer_norm_residual(x2d, h, p["ln3_g"], p["ln3_b"])
    return x2d.reshape(B, St, D)


def mon_mothma_forward(params, src_tokens, tgt_tokens, tgt_mask, nhead):
    B, _ = src_tokens.shape
    _, St = tgt_tokens.shape
    D = params["src_emb"].shape[1]

    # Embedding lookups (gather — JAX glue, not a Pallas hot path).
    src = jnp.take(params["src_emb"], src_tokens, axis=0)   # (B, Ss, D)
    tgt = jnp.take(params["tgt_emb"], tgt_tokens, axis=0)   # (B, St, D)

    for lp in params["enc"]:
        src = encoder_layer(src, lp, nhead)
    memory = src
    for lp in params["dec"]:
        tgt = decoder_layer(tgt, memory, lp, nhead, tgt_mask)

    out = linear(tgt.reshape(B * St, D), params["out_w"], params["out_b"])
    return out.reshape(B, St, -1)


# ----------------------------------------------------------------------------
# Deterministic parameter init (QKV / KV weights pre-fused)
# ----------------------------------------------------------------------------

def _dense_init(key, fan_in, fan_out):
    kw, kb = jax.random.split(key)
    lim = 1.0 / math.sqrt(fan_in)
    w = jax.random.uniform(kw, (fan_in, fan_out), jnp.float32, -lim, lim)
    b = jax.random.uniform(kb, (fan_out,), jnp.float32, -lim, lim)
    return w, b


def _self_attn_params(key, d_model):
    ks = jax.random.split(key, 4)
    wq, bq = _dense_init(ks[0], d_model, d_model)
    wk, bk = _dense_init(ks[1], d_model, d_model)
    wv, bv = _dense_init(ks[2], d_model, d_model)
    wo, bo = _dense_init(ks[3], d_model, d_model)
    return dict(
        w_qkv=jnp.concatenate([wq, wk, wv], axis=1),
        b_qkv=jnp.concatenate([bq, bk, bv]),
        w_o=wo, b_o=bo,
    )


def _cross_attn_params(key, d_model):
    ks = jax.random.split(key, 4)
    wq, bq = _dense_init(ks[0], d_model, d_model)
    wk, bk = _dense_init(ks[1], d_model, d_model)
    wv, bv = _dense_init(ks[2], d_model, d_model)
    wo, bo = _dense_init(ks[3], d_model, d_model)
    return dict(
        w_q=wq, b_q=bq,
        w_kv=jnp.concatenate([wk, wv], axis=1),
        b_kv=jnp.concatenate([bk, bv]),
        w_o=wo, b_o=bo,
    )


def _ffn_params(key, d_model, neuron):
    k1, k2 = jax.random.split(key)
    w1, b1 = _dense_init(k1, d_model, neuron)
    w2, b2 = _dense_init(k2, neuron, d_model)
    return dict(w1=w1, b1=b1, w2=w2, b2=b2)


def init_params(key, vocab_size, d_model, neuron, twink, mushroom, cla):
    keys = jax.random.split(key, 3 + twink + mushroom)
    params = {
        "src_emb": jax.random.normal(keys[0], (vocab_size, d_model), jnp.float32),
        "tgt_emb": jax.random.normal(keys[1], (cla, d_model), jnp.float32),
        "enc": [],
        "dec": [],
    }
    for li in range(twink):
        k = jax.random.split(keys[3 + li], 2)
        params["enc"].append(dict(
            attn=_self_attn_params(k[0], d_model),
            ffn=_ffn_params(k[1], d_model, neuron),
            ln1_g=jnp.ones((d_model,), jnp.float32),
            ln1_b=jnp.zeros((d_model,), jnp.float32),
            ln2_g=jnp.ones((d_model,), jnp.float32),
            ln2_b=jnp.zeros((d_model,), jnp.float32),
        ))
    for li in range(mushroom):
        k = jax.random.split(keys[3 + twink + li], 3)
        params["dec"].append(dict(
            self_attn=_self_attn_params(k[0], d_model),
            cross_attn=_cross_attn_params(k[1], d_model),
            ffn=_ffn_params(k[2], d_model, neuron),
            ln1_g=jnp.ones((d_model,), jnp.float32),
            ln1_b=jnp.zeros((d_model,), jnp.float32),
            ln2_g=jnp.ones((d_model,), jnp.float32),
            ln2_b=jnp.zeros((d_model,), jnp.float32),
            ln3_g=jnp.ones((d_model,), jnp.float32),
            ln3_b=jnp.zeros((d_model,), jnp.float32),
        ))
    ow, ob = _dense_init(keys[2], d_model, cla)
    params["out_w"] = ow
    params["out_b"] = ob
    return params


# ----------------------------------------------------------------------------
# Main
# ----------------------------------------------------------------------------

if __name__ == "__main__":
    vocab_size, d_model, nhead, neuron = 16, 32, 4, 64
    twink, mushroom, cla = 2, 2, 10
    B, S_src, S_tgt = 2, 8, 8

    root = jax.random.PRNGKey(0)
    k_param, k_src, k_tgt = jax.random.split(root, 3)

    params = init_params(k_param, vocab_size, d_model, neuron, twink, mushroom, cla)

    src_tokens = jax.random.randint(k_src, (B, S_src), 0, vocab_size, dtype=jnp.int32)
    tgt_tokens = jax.random.randint(k_tgt, (B, S_tgt), 0, cla, dtype=jnp.int32)

    # Causal (subsequent) additive mask for target self-attention.
    causal = jnp.where(
        jnp.arange(S_tgt)[:, None] >= jnp.arange(S_tgt)[None, :], 0.0, -1e9
    ).astype(jnp.float32)

    fwd = jax.jit(partial(mon_mothma_forward, nhead=nhead))
    out = fwd(params, src_tokens, tgt_tokens, causal)
    out = jax.block_until_ready(out)

    assert out.shape == (B, S_tgt, cla), out.shape
    assert bool(jnp.all(jnp.isfinite(out)))
    print("KERNEL_OK")
</pallas_src>

<mosaic_0001>
module attributes {stable_mosaic.version = 11 : i64} {
  func.func @_linear_kernel(%arg0: i32, %arg1: i32, %arg2: i32, %arg3: memref<16x128xf32, #tpu.memory_space<vmem>>, %arg4: memref<128x128xf32, #tpu.memory_space<vmem>>, %arg5: memref<1x128xf32, #tpu.memory_space<vmem>>, %arg6: memref<16x128xf32, #tpu.memory_space<vmem>>, %arg7: memref<16x128xf32, #tpu.memory_space<vmem>>) attributes {dimension_semantics = [#tpu.dimension_semantics<parallel>, #tpu.dimension_semantics<parallel>, #tpu.dimension_semantics<arbitrary>], iteration_bounds = array<i64: 1, 1, 1>, scalar_prefetch = 0 : i64, scratch_operands = 1 : i64, tpu.core_type = #tpu.core_type<tc>, window_params = [{transform_indices = @transform_0, window_bounds = array<i64: 16, 128>}, {transform_indices = @transform_1, window_bounds = array<i64: 128, 128>}, {transform_indices = @transform_2, window_bounds = array<i64: 1, 128>}, {transform_indices = @transform_3, window_bounds = array<i64: 16, 128>}]} {
    %c0_i32 = arith.constant 0 : i32
    %0 = arith.cmpi eq, %arg2, %c0_i32 : i32
    %1 = arith.extui %0 : i1 to i32
    %c0_i32_0 = arith.constant 0 : i32
    %2 = arith.cmpi ne, %1, %c0_i32_0 : i32
    scf.if %2 {
      %cst_10 = arith.constant 0.000000e+00 : f32
      %14 = vector.broadcast %cst_10 : f32 to vector<16x128xf32>
      %c0_11 = arith.constant 0 : index
      %c0_12 = arith.constant 0 : index
      %15 = vector.load %arg7[%c0_11, %c0_12] : memref<16x128xf32, #tpu.memory_space<vmem>>, vector<16x128xf32>
      tpu.vector_store %arg7[%c0_11, %c0_12], %14 {strides = array<i32>} : memref<16x128xf32, #tpu.memory_space<vmem>>, vector<16x128xf32>,
    } else {
    }
    %c0 = arith.constant 0 : index
    %c0_1 = arith.constant 0 : index
    %3 = vector.load %arg7[%c0, %c0_1] : memref<16x128xf32, #tpu.memory_space<vmem>>, vector<16x128xf32>
    %c0_2 = arith.constant 0 : index
    %c0_3 = arith.constant 0 : index
    %4 = vector.load %arg3[%c0_2, %c0_3] : memref<16x128xf32, #tpu.memory_space<vmem>>, vector<16x128xf32>
    %5 = arith.truncf %4 : vector<16x128xf32> to vector<16x128xbf16>
    %c0_4 = arith.constant 0 : index
    %c0_5 = arith.constant 0 : index
    %6 = vector.load %arg4[%c0_4, %c0_5] : memref<128x128xf32, #tpu.memory_space<vmem>>, vector<128x128xf32>
    %7 = arith.truncf %6 : vector<128x128xf32> to vector<128x128xbf16>
    %cst = arith.constant dense<0.000000e+00> : vector<16x128xf32>
    %8 = tpu.matmul %5, %7, %cst {dimension_numbers = #tpu.dot_dimension_numbers<[1], [0], [0], [1], [0, 0, 1, 1], [], []>} : vector<16x128xbf16>, vector<128x128xbf16>, vector<16x128xf32> -> vector<16x128xf32>
    %9 = arith.addf %3, %8 : vector<16x128xf32>
    %c0_6 = arith.constant 0 : index
    %c0_7 = arith.constant 0 : index
    %10 = vector.load %arg7[%c0_6, %c0_7] : memref<16x128xf32, #tpu.memory_space<vmem>>, vector<16x128xf32>
    tpu.vector_store %arg7[%c0_6, %c0_7], %9 {strides = array<i32>} : memref<16x128xf32, #tpu.memory_space<vmem>>, vector<16x128xf32>,
    %c0_i32_8 = arith.constant 0 : i32
    %11 = arith.cmpi eq, %arg2, %c0_i32_8 : i32
    %12 = arith.extui %11 : i1 to i32
    %c0_i32_9 = arith.constant 0 : i32
    %13 = arith.cmpi ne, %12, %c0_i32_9 : i32
    scf.if %13 {
      %c0_10 = arith.constant 0 : index
      %c0_11 = arith.constant 0 : index
      %14 = vector.load %arg7[%c0_10, %c0_11] : memref<16x128xf32, #tpu.memory_space<vmem>>, vector<16x128xf32>
      %c0_12 = arith.constant 0 : index
      %c0_13 = arith.constant 0 : index
      %15 = vector.load %arg5[%c0_12, %c0_13] : memref<1x128xf32, #tpu.memory_space<vmem>>, vector<1x128xf32>
      %16 = vector.broadcast %15 : vector<1x128xf32> to vector<16x128xf32>
      %17 = arith.addf %14, %16 : vector<16x128xf32>
      %c0_14 = arith.constant 0 : index
      %c0_15 = arith.constant 0 : index
      %18 = vector.load %arg6[%c0_14, %c0_15] : memref<16x128xf32, #tpu.memory_space<vmem>>, vector<16x128xf32>
      tpu.vector_store %arg6[%c0_14, %c0_15], %17 {strides = array<i32>} : memref<16x128xf32, #tpu.memory_space<vmem>>, vector<16x128xf32>,
    } else {
    }
    return
  }
  func.func @transform_0(%arg0: i32, %arg1: i32, %arg2: i32) -> (i32, i32) {
    %c0_i32 = arith.constant 0 : i32
    return %arg0, %arg2 : i32, i32
  }
  func.func @transform_1(%arg0: i32, %arg1: i32, %arg2: i32) -> (i32, i32) {
    %c0_i32 = arith.constant 0 : i32
    return %arg2, %arg1 : i32, i32
  }
  func.func @transform_2(%arg0: i32, %arg1: i32, %arg2: i32) -> (i32, i32) {
    %c0_i32 = arith.constant 0 : i32
    %c0_i32_0 = arith.constant 0 : i32
    return %c0_i32, %arg1 : i32, i32
  }
  func.func @transform_3(%arg0: i32, %arg1: i32, %arg2: i32) -> (i32, i32) {
    %c0_i32 = arith.constant 0 : i32
    return %arg0, %arg1 : i32, i32
  }
}

module attributes {stable_mosaic.version = 11 : i64} {
  func.func @_ln_res_kernel(%arg0: i32, %arg1: memref<16x32xf32, #tpu.memory_space<vmem>>, %arg2: memref<16x32xf32, #tpu.memory_space<vmem>>, %arg3: memref<1x32xf32, #tpu.memory_space<vmem>>, %arg4: memref<1x32xf32, #tpu.memory_space<vmem>>, %arg5: memref<16x32xf32, #tpu.memory_space<vmem>>) attributes {dimension_semantics = [#tpu.dimension_semantics<parallel>], iteration_bounds = array<i64: 1>, scalar_prefetch = 0 : i64, scratch_operands = 0 : i64, tpu.core_type = #tpu.core_type<tc>, window_params = [{transform_indices = @transform_0, window_bounds = array<i64: 16, 32>}, {transform_indices = @transform_1, window_bounds = array<i64: 16, 32>}, {pipeline_mode = #tpu.pipeline_mode<synchronous>, transform_indices = @transform_2, window_bounds = array<i64: 1, 32>}, {pipeline_mode = #tpu.pipeline_mode<synchronous>, transform_indices = @transform_3, window_bounds = array<i64: 1, 32>}, {transform_indices = @transform_4, window_bounds = array<i64: 16, 32>}]} {
    %c0 = arith.constant 0 : index
    %c0_0 = arith.constant 0 : index
    %0 = vector.load %arg1[%c0, %c0_0] : memref<16x32xf32, #tpu.memory_space<vmem>>, vector<16x32xf32>
    %c0_1 = arith.constant 0 : index
    %c0_2 = arith.constant 0 : index
    %1 = vector.load %arg2[%c0_1, %c0_2] : memref<16x32xf32, #tpu.memory_space<vmem>>, vector<16x32xf32>
    %2 = arith.addf %0, %1 : vector<16x32xf32>
    %cst = arith.constant dense<0.000000e+00> : vector<16xf32>
    %3 = vector.multi_reduction <add>, %2, %cst [1] : vector<16x32xf32> to vector<16xf32>
    %4 = vector.shape_cast %3 : vector<16xf32> to vector<16x1xf32>
    %cst_3 = arith.constant 3.200000e+01 : f32
    %5 = vector.broadcast %cst_3 : f32 to vector<16x1xf32>
    %6 = arith.divf %4, %5 : vector<16x1xf32>
    %7 = vector.broadcast %6 : vector<16x1xf32> to vector<16x32xf32>
    %8 = arith.subf %2, %7 : vector<16x32xf32>
    %9 = arith.mulf %8, %8 : vector<16x32xf32>
    %cst_4 = arith.constant dense<0.000000e+00> : vector<16xf32>
    %10 = vector.multi_reduction <add>, %9, %cst_4 [1] : vector<16x32xf32> to vector<16xf32>
    %11 = vector.shape_cast %10 : vector<16xf32> to vector<16x1xf32>
    %cst_5 = arith.constant 3.200000e+01 : f32
    %12 = vector.broadcast %cst_5 : f32 to vector<16x1xf32>
    %13 = arith.divf %11, %12 : vector<16x1xf32>
    %14 = vector.broadcast %6 : vector<16x1xf32> to vector<16x32xf32>
    %15 = arith.subf %2, %14 : vector<16x32xf32>
    %cst_6 = arith.constant 9.99999974E-6 : f32
    %16 = vector.broadcast %cst_6 : f32 to vector<16x1xf32>
    %17 = arith.addf %13, %16 : vector<16x1xf32>
    %18 = math.rsqrt %17 : vector<16x1xf32>
    %19 = vector.broadcast %18 : vector<16x1xf32> to vector<16x32xf32>
    %20 = arith.mulf %15, %19 : vector<16x32xf32>
    %c0_7 = arith.constant 0 : index
    %c0_8 = arith.constant 0 : index
    %21 = vector.load %arg3[%c0_7, %c0_8] : memref<1x32xf32, #tpu.memory_space<vmem>>, vector<1x32xf32>
    %22 = vector.broadcast %21 : vector<1x32xf32> to vector<16x32xf32>
    %23 = arith.mulf %20, %22 : vector<16x32xf32>
    %c0_9 = arith.constant 0 : index
    %c0_10 = arith.constant 0 : index
    %24 = vector.load %arg4[%c0_9, %c0_10] : memref<1x32xf32, #tpu.memory_space<vmem>>, vector<1x32xf32>
    %25 = vector.broadcast %24 : vector<1x32xf32> to vector<16x32xf32>
    %26 = arith.addf %23, %25 : vector<16x32xf32>
    %c0_11 = arith.constant 0 : index
    %c0_12 = arith.constant 0 : index
    %27 = vector.load %arg5[%c0_11, %c0_12] : memref<16x32xf32, #tpu.memory_space<vmem>>, vector<16x32xf32>
    tpu.vector_store %arg5[%c0_11, %c0_12], %26 {strides = array<i32>} : memref<16x32xf32, #tpu.memory_space<vmem>>, vector<16x32xf32>,
    return
  }
  func.func @transform_0(%arg0: i32) -> (i32, i32) {
    %c0_i32 = arith.constant 0 : i32
    %c0_i32_0 = arith.constant 0 : i32
    return %arg0, %c0_i32 : i32, i32
  }
  func.func @transform_1(%arg0: i32) -> (i32, i32) {
    %c0_i32 = arith.constant 0 : i32
    %c0_i32_0 = arith.constant 0 : i32
    return %arg0, %c0_i32 : i32, i32
  }
  func.func @transform_2(%arg0: i32) -> (i32, i32) {
    %c0_i32 = arith.constant 0 : i32
    %c0_i32_0 = arith.constant 0 : i32
    %c0_i32_1 = arith.constant 0 : i32
    return %c0_i32, %c0_i32_0 : i32, i32
  }
  func.func @transform_3(%arg0: i32) -> (i32, i32) {
    %c0_i32 = arith.constant 0 : i32
    %c0_i32_0 = arith.constant 0 : i32
    %c0_i32_1 = arith.constant 0 : i32
    return %c0_i32, %c0_i32_0 : i32, i32
  }
  func.func @transform_4(%arg0: i32) -> (i32, i32) {
    %c0_i32 = arith.constant 0 : i32
    %c0_i32_0 = arith.constant 0 : i32
    return %arg0, %c0_i32 : i32, i32
  }
}

module attributes {stable_mosaic.version = 11 : i64} {
  func.func @_self_attn_kernel(%arg0: i32, %arg1: memref<1x8x96xf32, #tpu.memory_space<vmem>>, %arg2: memref<1x8x32xf32, #tpu.memory_space<vmem>>) attributes {dimension_semantics = [#tpu.dimension_semantics<parallel>], iteration_bounds = array<i64: 2>, scalar_prefetch = 0 : i64, scratch_operands = 0 : i64, tpu.core_type = #tpu.core_type<tc>, window_params = [{transform_indices = @transform_0, window_bounds = array<i64: 1, 8, 96>}, {transform_indices = @transform_1, window_bounds = array<i64: 1, 8, 32>}]} {
    %c0 = arith.constant 0 : index
    %c0_0 = arith.constant 0 : index
    %c0_1 = arith.constant 0 : index
    %0 = vector.load %arg1[%c0, %c0_0, %c0_1] : memref<1x8x96xf32, #tpu.memory_space<vmem>>, vector<1x8x96xf32>
    %1 = vector.shape_cast %0 : vector<1x8x96xf32> to vector<8x96xf32>
    %2 = vector.extract_strided_slice %1 {offsets = [0, 0], sizes = [8, 32], strides = [1, 1]} : vector<8x96xf32> to vector<8x32xf32>
    %3 = vector.extract_strided_slice %1 {offsets = [0, 32], sizes = [8, 32], strides = [1, 1]} : vector<8x96xf32> to vector<8x32xf32>
    %4 = vector.extract_strided_slice %1 {offsets = [0, 64], sizes = [8, 32], strides = [1, 1]} : vector<8x96xf32> to vector<8x32xf32>
    %5 = vector.extract_strided_slice %2 {offsets = [0, 0], sizes = [8, 8], strides = [1, 1]} : vector<8x32xf32> to vector<8x8xf32>
    %6 = arith.truncf %5 : vector<8x8xf32> to vector<8x8xbf16>
    %7 = vector.extract_strided_slice %3 {offsets = [0, 0], sizes = [8, 8], strides = [1, 1]} : vector<8x32xf32> to vector<8x8xf32>
    %8 = arith.truncf %7 : vector<8x8xf32> to vector<8x8xbf16>
    %9 = vector.extract_strided_slice %4 {offsets = [0, 0], sizes = [8, 8], strides = [1, 1]} : vector<8x32xf32> to vector<8x8xf32>
    %10 = arith.truncf %9 : vector<8x8xf32> to vector<8x8xbf16>
    %11 = tpu.transpose %8, [1, 0] : vector<8x8xbf16> -> vector<8x8xbf16>
    %cst = arith.constant dense<0.000000e+00> : vector<8x8xf32>
    %12 = tpu.matmul %6, %11, %cst {dimension_numbers = #tpu.dot_dimension_numbers<[1], [0], [0], [1], [0, 0, 1, 1], [], []>} : vector<8x8xbf16>, vector<8x8xbf16>, vector<8x8xf32> -> vector<8x8xf32>
    %cst_2 = arith.constant 0.353553385 : f32
    %13 = vector.broadcast %cst_2 : f32 to vector<8x8xf32>
    %14 = arith.mulf %12, %13 : vector<8x8xf32>
    %cst_3 = arith.constant dense<0xFF800000> : vector<8xf32>
    %15 = vector.multi_reduction <maximumf>, %14, %cst_3 [1] : vector<8x8xf32> to vector<8xf32>
    %16 = vector.shape_cast %15 : vector<8xf32> to vector<8x1xf32>
    %17 = vector.broadcast %16 : vector<8x1xf32> to vector<8x8xf32>
    %18 = arith.subf %14, %17 : vector<8x8xf32>
    %19 = math.exp %18 : vector<8x8xf32>
    %cst_4 = arith.constant dense<0.000000e+00> : vector<8xf32>
    %20 = vector.multi_reduction <add>, %19, %cst_4 [1] : vector<8x8xf32> to vector<8xf32>
    %21 = vector.shape_cast %20 : vector<8xf32> to vector<8x1xf32>
    %22 = tpu.reciprocal %21 {approx = true} : vector<8x1xf32> -> vector<8x1xf32>
    %23 = vector.broadcast %22 : vector<8x1xf32> to vector<8x8xf32>
    %24 = arith.mulf %19, %23 : vector<8x8xf32>
    %25 = arith.truncf %24 : vector<8x8xf32> to vector<8x8xbf16>
    %cst_5 = arith.constant dense<0.000000e+00> : vector<8x8xf32>
    %26 = tpu.matmul %25, %10, %cst_5 {dimension_numbers = #tpu.dot_dimension_numbers<[1], [0], [0], [1], [0, 0, 1, 1], [], []>} : vector<8x8xbf16>, vector<8x8xbf16>, vector<8x8xf32> -> vector<8x8xf32>
    %27 = vector.extract_strided_slice %2 {offsets = [0, 8], sizes = [8, 8], strides = [1, 1]} : vector<8x32xf32> to vector<8x8xf32>
    %28 = arith.truncf %27 : vector<8x8xf32> to vector<8x8xbf16>
    %29 = vector.extract_strided_slice %3 {offsets = [0, 8], sizes = [8, 8], strides = [1, 1]} : vector<8x32xf32> to vector<8x8xf32>
    %30 = arith.truncf %29 : vector<8x8xf32> to vector<8x8xbf16>
    %31 = vector.extract_strided_slice %4 {offsets = [0, 8], sizes = [8, 8], strides = [1, 1]} : vector<8x32xf32> to vector<8x8xf32>
    %32 = arith.truncf %31 : vector<8x8xf32> to vector<8x8xbf16>
    %33 = tpu.transpose %30, [1, 0] : vector<8x8xbf16> -> vector<8x8xbf16>
    %cst_6 = arith.constant dense<0.000000e+00> : vector<8x8xf32>
    %34 = tpu.matmul %28, %33, %cst_6 {dimension_numbers = #tpu.dot_dimension_numbers<[1], [0], [0], [1], [0, 0, 1, 1], [], []>} : vector<8x8xbf16>, vector<8x8xbf16>, vector<8x8xf32> -> vector<8x8xf32>
    %cst_7 = arith.constant 0.353553385 : f32
    %35 = vector.broadcast %cst_7 : f32 to vector<8x8xf32>
    %36 = arith.mulf %34, %35 : vector<8x8xf32>
    %cst_8 = arith.constant dense<0xFF800000> : vector<8xf32>
    %37 = vector.multi_reduction <maximumf>, %36, %cst_8 [1] : vector<8x8xf32> to vector<8xf32>
    %38 = vector.shape_cast %37 : vector<8xf32> to vector<8x1xf32>
    %39 = vector.broadcast %38 : vector<8x1xf32> to vector<8x8xf32>
    %40 = arith.subf %36, %39 : vector<8x8xf32>
    %41 = math.exp %40 : vector<8x8xf32>
    %cst_9 = arith.constant dense<0.000000e+00> : vector<8xf32>
    %42 = vector.multi_reduction <add>, %41, %cst_9 [1] : vector<8x8xf32> to vector<8xf32>
    %43 = vector.shape_cast %42 : vector<8xf32> to vector<8x1xf32>
    %44 = tpu.reciprocal %43 {approx = true} : vector<8x1xf32> -> vector<8x1xf32>
    %45 = vector.broadcast %44 : vector<8x1xf32> to vector<8x8xf32>
    %46 = arith.mulf %41, %45 : vector<8x8xf32>
    %47 = arith.truncf %46 : vector<8x8xf32> to vector<8x8xbf16>
    %cst_10 = arith.constant dense<0.000000e+00> : vector<8x8xf32>
    %48 = tpu.matmul %47, %32, %cst_10 {dimension_numbers = #tpu.dot_dimension_numbers<[1], [0], [0], [1], [0, 0, 1, 1], [], []>} : vector<8x8xbf16>, vector<8x8xbf16>, vector<8x8xf32> -> vector<8x8xf32>
    %49 = vector.extract_strided_slice %2 {offsets = [0, 16], sizes = [8, 8], strides = [1, 1]} : vector<8x32xf32> to vector<8x8xf32>
    %50 = arith.truncf %49 : vector<8x8xf32> to vector<8x8xbf16>
    %51 = vector.extract_strided_slice %3 {offsets = [0, 16], sizes = [8, 8], strides = [1, 1]} : vector<8x32xf32> to vector<8x8xf32>
    %52 = arith.truncf %51 : vector<8x8xf32> to vector<8x8xbf16>
    %53 = vector.extract_strided_slice %4 {offsets = [0, 16], sizes = [8, 8], strides = [1, 1]} : vector<8x32xf32> to vector<8x8xf32>
    %54 = arith.truncf %53 : vector<8x8xf32> to vector<8x8xbf16>
    %55 = tpu.transpose %52, [1, 0] : vector<8x8xbf16> -> vector<8x8xbf16>
    %cst_11 = arith.constant dense<0.000000e+00> : vector<8x8xf32>
    %56 = tpu.matmul %50, %55, %cst_11 {dimension_numbers = #tpu.dot_dimension_numbers<[1], [0], [0], [1], [0, 0, 1, 1], [], []>} : vector<8x8xbf16>, vector<8x8xbf16>, vector<8x8xf32> -> vector<8x8xf32>
    %cst_12 = arith.constant 0.353553385 : f32
    %57 = vector.broadcast %cst_12 : f32 to vector<8x8xf32>
    %58 = arith.mulf %56, %57 : vector<8x8xf32>
    %cst_13 = arith.constant dense<0xFF800000> : vector<8xf32>
    %59 = vector.multi_reduction <maximumf>, %58, %cst_13 [1] : vector<8x8xf32> to vector<8xf32>
    %60 = vector.shape_cast %59 : vector<8xf32> to vector<8x1xf32>
    %61 = vector.broadcast %60 : vector<8x1xf32> to vector<8x8xf32>
    %62 = arith.subf %58, %61 : vector<8x8xf32>
    %63 = math.exp %62 : vector<8x8xf32>
    %cst_14 = arith.constant dense<0.000000e+00> : vector<8xf32>
    %64 = vector.multi_reduction <add>, %63, %cst_14 [1] : vector<8x8xf32> to vector<8xf32>
    %65 = vector.shape_cast %64 : vector<8xf32> to vector<8x1xf32>
    %66 = tpu.reciprocal %65 {approx = true} : vector<8x1xf32> -> vector<8x1xf32>
    %67 = vector.broadcast %66 : vector<8x1xf32> to vector<8x8xf32>
    %68 = arith.mulf %63, %67 : vector<8x8xf32>
    %69 = arith.truncf %68 : vector<8x8xf32> to vector<8x8xbf16>
    %cst_15 = arith.constant dense<0.000000e+00> : vector<8x8xf32>
    %70 = tpu.matmul %69, %54, %cst_15 {dimension_numbers = #tpu.dot_dimension_numbers<[1], [0], [0], [1], [0, 0, 1, 1], [], []>} : vector<8x8xbf16>, vector<8x8xbf16>, vector<8x8xf32> -> vector<8x8xf32>
    %71 = vector.extract_strided_slice %2 {offsets = [0, 24], sizes = [8, 8], strides = [1, 1]} : vector<8x32xf32> to vector<8x8xf32>
    %72 = arith.truncf %71 : vector<8x8xf32> to vector<8x8xbf16>
    %73 = vector.extract_strided_slice %3 {offsets = [0, 24], sizes = [8, 8], strides = [1, 1]} : vector<8x32xf32> to vector<8x8xf32>
    %74 = arith.truncf %73 : vector<8x8xf32> to vector<8x8xbf16>
    %75 = vector.extract_strided_slice %4 {offsets = [0, 24], sizes = [8, 8], strides = [1, 1]} : vector<8x32xf32> to vector<8x8xf32>
    %76 = arith.truncf %75 : vector<8x8xf32> to vector<8x8xbf16>
    %77 = tpu.transpose %74, [1, 0] : vector<8x8xbf16> -> vector<8x8xbf16>
    %cst_16 = arith.constant dense<0.000000e+00> : vector<8x8xf32>
    %78 = tpu.matmul %72, %77, %cst_16 {dimension_numbers = #tpu.dot_dimension_numbers<[1], [0], [0], [1], [0, 0, 1, 1], [], []>} : vector<8x8xbf16>, vector<8x8xbf16>, vector<8x8xf32> -> vector<8x8xf32>
    %cst_17 = arith.constant 0.353553385 : f32
    %79 = vector.broadcast %cst_17 : f32 to vector<8x8xf32>
    %80 = arith.mulf %78, %79 : vector<8x8xf32>
    %cst_18 = arith.constant dense<0xFF800000> : vector<8xf32>
    %81 = vector.multi_reduction <maximumf>, %80, %cst_18 [1] : vector<8x8xf32> to vector<8xf32>
    %82 = vector.shape_cast %81 : vector<8xf32> to vector<8x1xf32>
    %83 = vector.broadcast %82 : vector<8x1xf32> to vector<8x8xf32>
    %84 = arith.subf %80, %83 : vector<8x8xf32>
    %85 = math.exp %84 : vector<8x8xf32>
    %cst_19 = arith.constant dense<0.000000e+00> : vector<8xf32>
    %86 = vector.multi_reduction <add>, %85, %cst_19 [1] : vector<8x8xf32> to vector<8xf32>
    %87 = vector.shape_cast %86 : vector<8xf32> to vector<8x1xf32>
    %88 = tpu.reciprocal %87 {approx = true} : vector<8x1xf32> -> vector<8x1xf32>
    %89 = vector.broadcast %88 : vector<8x1xf32> to vector<8x8xf32>
    %90 = arith.mulf %85, %89 : vector<8x8xf32>
    %91 = arith.truncf %90 : vector<8x8xf32> to vector<8x8xbf16>
    %cst_20 = arith.constant dense<0.000000e+00> : vector<8x8xf32>
    %92 = tpu.matmul %91, %76, %cst_20 {dimension_numbers = #tpu.dot_dimension_numbers<[1], [0], [0], [1], [0, 0, 1, 1], [], []>} : vector<8x8xbf16>, vector<8x8xbf16>, vector<8x8xf32> -> vector<8x8xf32>
    %93 = tpu.concatenate %26, %48, %70, %92 in 1 : vector<8x8xf32>, vector<8x8xf32>, vector<8x8xf32>, vector<8x8xf32> -> vector<8x32xf32>
    %c0_21 = arith.constant 0 : index
    %c0_22 = arith.constant 0 : index
    %c0_23 = arith.constant 0 : index
    %94 = vector.load %arg2[%c0_21, %c0_22, %c0_23] : memref<1x8x32xf32, #tpu.memory_space<vmem>>, vector<1x8x32xf32>
    %95 = vector.shape_cast %94 : vector<1x8x32xf32> to vector<8x32xf32>
    %96 = vector.shape_cast %93 : vector<8x32xf32> to vector<1x8x32xf32>
    tpu.vector_store %arg2[%c0_21, %c0_22, %c0_23], %96 {strides = array<i32>} : memref<1x8x32xf32, #tpu.memory_space<vmem>>, vector<1x8x32xf32>,
    return
  }
  func.func @transform_0(%arg0: i32) -> (i32, i32, i32) {
    %c0_i32 = arith.constant 0 : i32
    %c0_i32_0 = arith.constant 0 : i32
    %c0_i32_1 = arith.constant 0 : i32
    return %arg0, %c0_i32, %c0_i32_0 : i32, i32, i32
  }
  func.func @transform_1(%arg0: i32) -> (i32, i32, i32) {
    %c0_i32 = arith.constant 0 : i32
    %c0_i32_0 = arith.constant 0 : i32
    %c0_i32_1 = arith.constant 0 : i32
    return %arg0, %c0_i32, %c0_i32_0 : i32, i32, i32
  }
}

module attributes {stable_mosaic.version = 11 : i64} {
  func.func @_linear_kernel(%arg0: i32, %arg1: i32, %arg2: i32, %arg3: memref<16x128xf32, #tpu.memory_space<vmem>>, %arg4: memref<128x128xf32, #tpu.memory_space<vmem>>, %arg5: memref<1x128xf32, #tpu.memory_space<vmem>>, %arg6: memref<16x128xf32, #tpu.memory_space<vmem>>, %arg7: memref<16x128xf32, #tpu.memory_space<vmem>>) attributes {dimension_semantics = [#tpu.dimension_semantics<parallel>, #tpu.dimension_semantics<parallel>, #tpu.dimension_semantics<arbitrary>], iteration_bounds = array<i64: 1, 1, 1>, scalar_prefetch = 0 : i64, scratch_operands = 1 : i64, tpu.core_type = #tpu.core_type<tc>, window_params = [{transform_indices = @transform_0, window_bounds = array<i64: 16, 128>}, {transform_indices = @transform_1, window_bounds = array<i64: 128, 128>}, {transform_indices = @transform_2, window_bounds = array<i64: 1, 128>}, {transform_indices = @transform_3, window_bounds = array<i64: 16, 128>}]} {
    %c0_i32 = arith.constant 0 : i32
    %0 = arith.cmpi eq, %arg2, %c0_i32 : i32
    %1 = arith.extui %0 : i1 to i32
    %c0_i32_0 = arith.constant 0 : i32
    %2 = arith.cmpi ne, %1, %c0_i32_0 : i32
    scf.if %2 {
      %cst_10 = arith.constant 0.000000e+00 : f32
      %14 = vector.broadcast %cst_10 : f32 to vector<16x128xf32>
      %c0_11 = arith.constant 0 : index
      %c0_12 = arith.constant 0 : index
      %15 = vector.load %arg7[%c0_11, %c0_12] : memref<16x128xf32, #tpu.memory_space<vmem>>, vector<16x128xf32>
      tpu.vector_store %arg7[%c0_11, %c0_12], %14 {strides = array<i32>} : memref<16x128xf32, #tpu.memory_space<vmem>>, vector<16x128xf32>,
    } else {
    }
    %c0 = arith.constant 0 : index
    %c0_1 = arith.constant 0 : index
    %3 = vector.load %arg7[%c0, %c0_1] : memref<16x128xf32, #tpu.memory_space<vmem>>, vector<16x128xf32>
    %c0_2 = arith.constant 0 : index
    %c0_3 = arith.constant 0 : index
    %4 = vector.load %arg3[%c0_2, %c0_3] : memref<16x128xf32, #tpu.memory_space<vmem>>, vector<16x128xf32>
    %5 = arith.truncf %4 : vector<16x128xf32> to vector<16x128xbf16>
    %c0_4 = arith.constant 0 : index
    %c0_5 = arith.constant 0 : index
    %6 = vector.load %arg4[%c0_4, %c0_5] : memref<128x128xf32, #tpu.memory_space<vmem>>, vector<128x128xf32>
    %7 = arith.truncf %6 : vector<128x128xf32> to vector<128x128xbf16>
    %cst = arith.constant dense<0.000000e+00> : vector<16x128xf32>
    %8 = tpu.matmul %5, %7, %cst {dimension_numbers = #tpu.dot_dimension_numbers<[1], [0], [0], [1], [0, 0, 1, 1], [], []>} : vector<16x128xbf16>, vector<128x128xbf16>, vector<16x128xf32> -> vector<16x128xf32>
    %9 = arith.addf %3, %8 : vector<16x128xf32>
    %c0_6 = arith.constant 0 : index
    %c0_7 = arith.constant 0 : index
    %10 = vector.load %arg7[%c0_6, %c0_7] : memref<16x128xf32, #tpu.memory_space<vmem>>, vector<16x128xf32>
    tpu.vector_store %arg7[%c0_6, %c0_7], %9 {strides = array<i32>} : memref<16x128xf32, #tpu.memory_space<vmem>>, vector<16x128xf32>,
    %c0_i32_8 = arith.constant 0 : i32
    %11 = arith.cmpi eq, %arg2, %c0_i32_8 : i32
    %12 = arith.extui %11 : i1 to i32
    %c0_i32_9 = arith.constant 0 : i32
    %13 = arith.cmpi ne, %12, %c0_i32_9 : i32
    scf.if %13 {
      %c0_10 = arith.constant 0 : index
      %c0_11 = arith.constant 0 : index
      %14 = vector.load %arg7[%c0_10, %c0_11] : memref<16x128xf32, #tpu.memory_space<vmem>>, vector<16x128xf32>
      %c0_12 = arith.constant 0 : index
      %c0_13 = arith.constant 0 : index
      %15 = vector.load %arg5[%c0_12, %c0_13] : memref<1x128xf32, #tpu.memory_space<vmem>>, vector<1x128xf32>
      %16 = vector.broadcast %15 : vector<1x128xf32> to vector<16x128xf32>
      %17 = arith.addf %14, %16 : vector<16x128xf32>
      %cst_14 = arith.constant 0.000000e+00 : f32
      %18 = vector.broadcast %cst_14 : f32 to vector<16x128xf32>
      %19 = arith.maximumf %17, %18 : vector<16x128xf32>
      %c0_15 = arith.constant 0 : index
      %c0_16 = arith.constant 0 : index
      %20 = vector.load %arg6[%c0_15, %c0_16] : memref<16x128xf32, #tpu.memory_space<vmem>>, vector<16x128xf32>
      tpu.vector_store %arg6[%c0_15, %c0_16], %19 {strides = array<i32>} : memref<16x128xf32, #tpu.memory_space<vmem>>, vector<16x128xf32>,
    } else {
    }
    return
  }
  func.func @transform_0(%arg0: i32, %arg1: i32, %arg2: i32) -> (i32, i32) {
    %c0_i32 = arith.constant 0 : i32
    return %arg0, %arg2 : i32, i32
  }
  func.func @transform_1(%arg0: i32, %arg1: i32, %arg2: i32) -> (i32, i32) {
    %c0_i32 = arith.constant 0 : i32
    return %arg2, %arg1 : i32, i32
  }
  func.func @transform_2(%arg0: i32, %arg1: i32, %arg2: i32) -> (i32, i32) {
    %c0_i32 = arith.constant 0 : i32
    %c0_i32_0 = arith.constant 0 : i32
    return %c0_i32, %arg1 : i32, i32
  }
  func.func @transform_3(%arg0: i32, %arg1: i32, %arg2: i32) -> (i32, i32) {
    %c0_i32 = arith.constant 0 : i32
    return %arg0, %arg1 : i32, i32
  }
}

module attributes {stable_mosaic.version = 11 : i64} {
  func.func @_self_attn_kernel(%arg0: i32, %arg1: memref<1x8x96xf32, #tpu.memory_space<vmem>>, %arg2: memref<8x8xf32, #tpu.memory_space<vmem>>, %arg3: memref<1x8x32xf32, #tpu.memory_space<vmem>>) attributes {dimension_semantics = [#tpu.dimension_semantics<parallel>], iteration_bounds = array<i64: 2>, scalar_prefetch = 0 : i64, scratch_operands = 0 : i64, tpu.core_type = #tpu.core_type<tc>, window_params = [{transform_indices = @transform_0, window_bounds = array<i64: 1, 8, 96>}, {pipeline_mode = #tpu.pipeline_mode<synchronous>, transform_indices = @transform_1, window_bounds = array<i64: 8, 8>}, {transform_indices = @transform_2, window_bounds = array<i64: 1, 8, 32>}]} {
    %c0 = arith.constant 0 : index
    %c0_0 = arith.constant 0 : index
    %0 = vector.load %arg2[%c0, %c0_0] : memref<8x8xf32, #tpu.memory_space<vmem>>, vector<8x8xf32>
    %c0_1 = arith.constant 0 : index
    %c0_2 = arith.constant 0 : index
    %c0_3 = arith.constant 0 : index
    %1 = vector.load %arg1[%c0_1, %c0_2, %c0_3] : memref<1x8x96xf32, #tpu.memory_space<vmem>>, vector<1x8x96xf32>
    %2 = vector.shape_cast %1 : vector<1x8x96xf32> to vector<8x96xf32>
    %3 = vector.extract_strided_slice %2 {offsets = [0, 0], sizes = [8, 32], strides = [1, 1]} : vector<8x96xf32> to vector<8x32xf32>
    %4 = vector.extract_strided_slice %2 {offsets = [0, 32], sizes = [8, 32], strides = [1, 1]} : vector<8x96xf32> to vector<8x32xf32>
    %5 = vector.extract_strided_slice %2 {offsets = [0, 64], sizes = [8, 32], strides = [1, 1]} : vector<8x96xf32> to vector<8x32xf32>
    %6 = vector.extract_strided_slice %3 {offsets = [0, 0], sizes = [8, 8], strides = [1, 1]} : vector<8x32xf32> to vector<8x8xf32>
    %7 = arith.truncf %6 : vector<8x8xf32> to vector<8x8xbf16>
    %8 = vector.extract_strided_slice %4 {offsets = [0, 0], sizes = [8, 8], strides = [1, 1]} : vector<8x32xf32> to vector<8x8xf32>
    %9 = arith.truncf %8 : vector<8x8xf32> to vector<8x8xbf16>
    %10 = vector.extract_strided_slice %5 {offsets = [0, 0], sizes = [8, 8], strides = [1, 1]} : vector<8x32xf32> to vector<8x8xf32>
    %11 = arith.truncf %10 : vector<8x8xf32> to vector<8x8xbf16>
    %12 = tpu.transpose %9, [1, 0] : vector<8x8xbf16> -> vector<8x8xbf16>
    %cst = arith.constant dense<0.000000e+00> : vector<8x8xf32>
    %13 = tpu.matmul %7, %12, %cst {dimension_numbers = #tpu.dot_dimension_numbers<[1], [0], [0], [1], [0, 0, 1, 1], [], []>} : vector<8x8xbf16>, vector<8x8xbf16>, vector<8x8xf32> -> vector<8x8xf32>
    %cst_4 = arith.constant 0.353553385 : f32
    %14 = vector.broadcast %cst_4 : f32 to vector<8x8xf32>
    %15 = arith.mulf %13, %14 : vector<8x8xf32>
    %16 = arith.addf %15, %0 : vector<8x8xf32>
    %cst_5 = arith.constant dense<0xFF800000> : vector<8xf32>
    %17 = vector.multi_reduction <maximumf>, %16, %cst_5 [1] : vector<8x8xf32> to vector<8xf32>
    %18 = vector.shape_cast %17 : vector<8xf32> to vector<8x1xf32>
    %19 = vector.broadcast %18 : vector<8x1xf32> to vector<8x8xf32>
    %20 = arith.subf %16, %19 : vector<8x8xf32>
    %21 = math.exp %20 : vector<8x8xf32>
    %cst_6 = arith.constant dense<0.000000e+00> : vector<8xf32>
    %22 = vector.multi_reduction <add>, %21, %cst_6 [1] : vector<8x8xf32> to vector<8xf32>
    %23 = vector.shape_cast %22 : vector<8xf32> to vector<8x1xf32>
    %24 = tpu.reciprocal %23 {approx = true} : vector<8x1xf32> -> vector<8x1xf32>
    %25 = vector.broadcast %24 : vector<8x1xf32> to vector<8x8xf32>
    %26 = arith.mulf %21, %25 : vector<8x8xf32>
    %27 = arith.truncf %26 : vector<8x8xf32> to vector<8x8xbf16>
    %cst_7 = arith.constant dense<0.000000e+00> : vector<8x8xf32>
    %28 = tpu.matmul %27, %11, %cst_7 {dimension_numbers = #tpu.dot_dimension_numbers<[1], [0], [0], [1], [0, 0, 1, 1], [], []>} : vector<8x8xbf16>, vector<8x8xbf16>, vector<8x8xf32> -> vector<8x8xf32>
    %29 = vector.extract_strided_slice %3 {offsets = [0, 8], sizes = [8, 8], strides = [1, 1]} : vector<8x32xf32> to vector<8x8xf32>
    %30 = arith.truncf %29 : vector<8x8xf32> to vector<8x8xbf16>
    %31 = vector.extract_strided_slice %4 {offsets = [0, 8], sizes = [8, 8], strides = [1, 1]} : vector<8x32xf32> to vector<8x8xf32>
    %32 = arith.truncf %31 : vector<8x8xf32> to vector<8x8xbf16>
    %33 = vector.extract_strided_slice %5 {offsets = [0, 8], sizes = [8, 8], strides = [1, 1]} : vector<8x32xf32> to vector<8x8xf32>
    %34 = arith.truncf %33 : vector<8x8xf32> to vector<8x8xbf16>
    %35 = tpu.transpose %32, [1, 0] : vector<8x8xbf16> -> vector<8x8xbf16>
    %cst_8 = arith.constant dense<0.000000e+00> : vector<8x8xf32>
    %36 = tpu.matmul %30, %35, %cst_8 {dimension_numbers = #tpu.dot_dimension_numbers<[1], [0], [0], [1], [0, 0, 1, 1], [], []>} : vector<8x8xbf16>, vector<8x8xbf16>, vector<8x8xf32> -> vector<8x8xf32>
    %cst_9 = arith.constant 0.353553385 : f32
    %37 = vector.broadcast %cst_9 : f32 to vector<8x8xf32>
    %38 = arith.mulf %36, %37 : vector<8x8xf32>
    %39 = arith.addf %38, %0 : vector<8x8xf32>
    %cst_10 = arith.constant dense<0xFF800000> : vector<8xf32>
    %40 = vector.multi_reduction <maximumf>, %39, %cst_10 [1] : vector<8x8xf32> to vector<8xf32>
    %41 = vector.shape_cast %40 : vector<8xf32> to vector<8x1xf32>
    %42 = vector.broadcast %41 : vector<8x1xf32> to vector<8x8xf32>
    %43 = arith.subf %39, %42 : vector<8x8xf32>
    %44 = math.exp %43 : vector<8x8xf32>
    %cst_11 = arith.constant dense<0.000000e+00> : vector<8xf32>
    %45 = vector.multi_reduction <add>, %44, %cst_11 [1] : vector<8x8xf32> to vector<8xf32>
    %46 = vector.shape_cast %45 : vector<8xf32> to vector<8x1xf32>
    %47 = tpu.reciprocal %46 {approx = true} : vector<8x1xf32> -> vector<8x1xf32>
    %48 = vector.broadcast %47 : vector<8x1xf32> to vector<8x8xf32>
    %49 = arith.mulf %44, %48 : vector<8x8xf32>
    %50 = arith.truncf %49 : vector<8x8xf32> to vector<8x8xbf16>
    %cst_12 = arith.constant dense<0.000000e+00> : vector<8x8xf32>
    %51 = tpu.matmul %50, %34, %cst_12 {dimension_numbers = #tpu.dot_dimension_numbers<[1], [0], [0], [1], [0, 0, 1, 1], [], []>} : vector<8x8xbf16>, vector<8x8xbf16>, vector<8x8xf32> -> vector<8x8xf32>
    %52 = vector.extract_strided_slice %3 {offsets = [0, 16], sizes = [8, 8], strides = [1, 1]} : vector<8x32xf32> to vector<8x8xf32>
    %53 = arith.truncf %52 : vector<8x8xf32> to vector<8x8xbf16>
    %54 = vector.extract_strided_slice %4 {offsets = [0, 16], sizes = [8, 8], strides = [1, 1]} : vector<8x32xf32> to vector<8x8xf32>
    %55 = arith.truncf %54 : vector<8x8xf32> to vector<8x8xbf16>
    %56 = vector.extract_strided_slice %5 {offsets = [0, 16], sizes = [8, 8], strides = [1, 1]} : vector<8x32xf32> to vector<8x8xf32>
    %57 = arith.truncf %56 : vector<8x8xf32> to vector<8x8xbf16>
    %58 = tpu.transpose %55, [1, 0] : vector<8x8xbf16> -> vector<8x8xbf16>
    %cst_13 = arith.constant dense<0.000000e+00> : vector<8x8xf32>
    %59 = tpu.matmul %53, %58, %cst_13 {dimension_numbers = #tpu.dot_dimension_numbers<[1], [0], [0], [1], [0, 0, 1, 1], [], []>} : vector<8x8xbf16>, vector<8x8xbf16>, vector<8x8xf32> -> vector<8x8xf32>
    %cst_14 = arith.constant 0.353553385 : f32
    %60 = vector.broadcast %cst_14 : f32 to vector<8x8xf32>
    %61 = arith.mulf %59, %60 : vector<8x8xf32>
    %62 = arith.addf %61, %0 : vector<8x8xf32>
    %cst_15 = arith.constant dense<0xFF800000> : vector<8xf32>
    %63 = vector.multi_reduction <maximumf>, %62, %cst_15 [1] : vector<8x8xf32> to vector<8xf32>
    %64 = vector.shape_cast %63 : vector<8xf32> to vector<8x1xf32>
    %65 = vector.broadcast %64 : vector<8x1xf32> to vector<8x8xf32>
    %66 = arith.subf %62, %65 : vector<8x8xf32>
    %67 = math.exp %66 : vector<8x8xf32>
    %cst_16 = arith.constant dense<0.000000e+00> : vector<8xf32>
    %68 = vector.multi_reduction <add>, %67, %cst_16 [1] : vector<8x8xf32> to vector<8xf32>
    %69 = vector.shape_cast %68 : vector<8xf32> to vector<8x1xf32>
    %70 = tpu.reciprocal %69 {approx = true} : vector<8x1xf32> -> vector<8x1xf32>
    %71 = vector.broadcast %70 : vector<8x1xf32> to vector<8x8xf32>
    %72 = arith.mulf %67, %71 : vector<8x8xf32>
    %73 = arith.truncf %72 : vector<8x8xf32> to vector<8x8xbf16>
    %cst_17 = arith.constant dense<0.000000e+00> : vector<8x8xf32>
    %74 = tpu.matmul %73, %57, %cst_17 {dimension_numbers = #tpu.dot_dimension_numbers<[1], [0], [0], [1], [0, 0, 1, 1], [], []>} : vector<8x8xbf16>, vector<8x8xbf16>, vector<8x8xf32> -> vector<8x8xf32>
    %75 = vector.extract_strided_slice %3 {offsets = [0, 24], sizes = [8, 8], strides = [1, 1]} : vector<8x32xf32> to vector<8x8xf32>
    %76 = arith.truncf %75 : vector<8x8xf32> to vector<8x8xbf16>
    %77 = vector.extract_strided_slice %4 {offsets = [0, 24], sizes = [8, 8], strides = [1, 1]} : vector<8x32xf32> to vector<8x8xf32>
    %78 = arith.truncf %77 : vector<8x8xf32> to vector<8x8xbf16>
    %79 = vector.extract_strided_slice %5 {offsets = [0, 24], sizes = [8, 8], strides = [1, 1]} : vector<8x32xf32> to vector<8x8xf32>
    %80 = arith.truncf %79 : vector<8x8xf32> to vector<8x8xbf16>
    %81 = tpu.transpose %78, [1, 0] : vector<8x8xbf16> -> vector<8x8xbf16>
    %cst_18 = arith.constant dense<0.000000e+00> : vector<8x8xf32>
    %82 = tpu.matmul %76, %81, %cst_18 {dimension_numbers = #tpu.dot_dimension_numbers<[1], [0], [0], [1], [0, 0, 1, 1], [], []>} : vector<8x8xbf16>, vector<8x8xbf16>, vector<8x8xf32> -> vector<8x8xf32>
    %cst_19 = arith.constant 0.353553385 : f32
    %83 = vector.broadcast %cst_19 : f32 to vector<8x8xf32>
    %84 = arith.mulf %82, %83 : vector<8x8xf32>
    %85 = arith.addf %84, %0 : vector<8x8xf32>
    %cst_20 = arith.constant dense<0xFF800000> : vector<8xf32>
    %86 = vector.multi_reduction <maximumf>, %85, %cst_20 [1] : vector<8x8xf32> to vector<8xf32>
    %87 = vector.shape_cast %86 : vector<8xf32> to vector<8x1xf32>
    %88 = vector.broadcast %87 : vector<8x1xf32> to vector<8x8xf32>
    %89 = arith.subf %85, %88 : vector<8x8xf32>
    %90 = math.exp %89 : vector<8x8xf32>
    %cst_21 = arith.constant dense<0.000000e+00> : vector<8xf32>
    %91 = vector.multi_reduction <add>, %90, %cst_21 [1] : vector<8x8xf32> to vector<8xf32>
    %92 = vector.shape_cast %91 : vector<8xf32> to vector<8x1xf32>
    %93 = tpu.reciprocal %92 {approx = true} : vector<8x1xf32> -> vector<8x1xf32>
    %94 = vector.broadcast %93 : vector<8x1xf32> to vector<8x8xf32>
    %95 = arith.mulf %90, %94 : vector<8x8xf32>
    %96 = arith.truncf %95 : vector<8x8xf32> to vector<8x8xbf16>
    %cst_22 = arith.constant dense<0.000000e+00> : vector<8x8xf32>
    %97 = tpu.matmul %96, %80, %cst_22 {dimension_numbers = #tpu.dot_dimension_numbers<[1], [0], [0], [1], [0, 0, 1, 1], [], []>} : vector<8x8xbf16>, vector<8x8xbf16>, vector<8x8xf32> -> vector<8x8xf32>
    %98 = tpu.concatenate %28, %51, %74, %97 in 1 : vector<8x8xf32>, vector<8x8xf32>, vector<8x8xf32>, vector<8x8xf32> -> vector<8x32xf32>
    %c0_23 = arith.constant 0 : index
    %c0_24 = arith.constant 0 : index
    %c0_25 = arith.constant 0 : index
    %99 = vector.load %arg3[%c0_23, %c0_24, %c0_25] : memref<1x8x32xf32, #tpu.memory_space<vmem>>, vector<1x8x32xf32>
    %100 = vector.shape_cast %99 : vector<1x8x32xf32> to vector<8x32xf32>
    %101 = vector.shape_cast %98 : vector<8x32xf32> to vector<1x8x32xf32>
    tpu.vector_store %arg3[%c0_23, %c0_24, %c0_25], %101 {strides = array<i32>} : memref<1x8x32xf32, #tpu.memory_space<vmem>>, vector<1x8x32xf32>,
    return
  }
  func.func @transform_0(%arg0: i32) -> (i32, i32, i32) {
    %c0_i32 = arith.constant 0 : i32
    %c0_i32_0 = arith.constant 0 : i32
    %c0_i32_1 = arith.constant 0 : i32
    return %arg0, %c0_i32, %c0_i32_0 : i32, i32, i32
  }
  func.func @transform_1(%arg0: i32) -> (i32, i32) {
    %c0_i32 = arith.constant 0 : i32
    %c0_i32_0 = arith.constant 0 : i32
    %c0_i32_1 = arith.constant 0 : i32
    return %c0_i32, %c0_i32_0 : i32, i32
  }
  func.func @transform_2(%arg0: i32) -> (i32, i32, i32) {
    %c0_i32 = arith.constant 0 : i32
    %c0_i32_0 = arith.constant 0 : i32
    %c0_i32_1 = arith.constant 0 : i32
    return %arg0, %c0_i32, %c0_i32_0 : i32, i32, i32
  }
}

module attributes {stable_mosaic.version = 11 : i64} {
  func.func @_cross_attn_kernel(%arg0: i32, %arg1: memref<1x8x32xf32, #tpu.memory_space<vmem>>, %arg2: memref<1x8x64xf32, #tpu.memory_space<vmem>>, %arg3: memref<1x8x32xf32, #tpu.memory_space<vmem>>) attributes {dimension_semantics = [#tpu.dimension_semantics<parallel>], iteration_bounds = array<i64: 2>, scalar_prefetch = 0 : i64, scratch_operands = 0 : i64, tpu.core_type = #tpu.core_type<tc>, window_params = [{transform_indices = @transform_0, window_bounds = array<i64: 1, 8, 32>}, {transform_indices = @transform_1, window_bounds = array<i64: 1, 8, 64>}, {transform_indices = @transform_2, window_bounds = array<i64: 1, 8, 32>}]} {
    %c0 = arith.constant 0 : index
    %c0_0 = arith.constant 0 : index
    %c0_1 = arith.constant 0 : index
    %0 = vector.load %arg1[%c0, %c0_0, %c0_1] : memref<1x8x32xf32, #tpu.memory_space<vmem>>, vector<1x8x32xf32>
    %1 = vector.shape_cast %0 : vector<1x8x32xf32> to vector<8x32xf32>
    %c0_2 = arith.constant 0 : index
    %c0_3 = arith.constant 0 : index
    %c0_4 = arith.constant 0 : index
    %2 = vector.load %arg2[%c0_2, %c0_3, %c0_4] : memref<1x8x64xf32, #tpu.memory_space<vmem>>, vector<1x8x64xf32>
    %3 = vector.shape_cast %2 : vector<1x8x64xf32> to vector<8x64xf32>
    %4 = vector.extract_strided_slice %3 {offsets = [0, 0], sizes = [8, 32], strides = [1, 1]} : vector<8x64xf32> to vector<8x32xf32>
    %5 = vector.extract_strided_slice %3 {offsets = [0, 32], sizes = [8, 32], strides = [1, 1]} : vector<8x64xf32> to vector<8x32xf32>
    %6 = vector.extract_strided_slice %1 {offsets = [0, 0], sizes = [8, 8], strides = [1, 1]} : vector<8x32xf32> to vector<8x8xf32>
    %7 = arith.truncf %6 : vector<8x8xf32> to vector<8x8xbf16>
    %8 = vector.extract_strided_slice %4 {offsets = [0, 0], sizes = [8, 8], strides = [1, 1]} : vector<8x32xf32> to vector<8x8xf32>
    %9 = arith.truncf %8 : vector<8x8xf32> to vector<8x8xbf16>
    %10 = vector.extract_strided_slice %5 {offsets = [0, 0], sizes = [8, 8], strides = [1, 1]} : vector<8x32xf32> to vector<8x8xf32>
    %11 = arith.truncf %10 : vector<8x8xf32> to vector<8x8xbf16>
    %12 = tpu.transpose %9, [1, 0] : vector<8x8xbf16> -> vector<8x8xbf16>
    %cst = arith.constant dense<0.000000e+00> : vector<8x8xf32>
    %13 = tpu.matmul %7, %12, %cst {dimension_numbers = #tpu.dot_dimension_numbers<[1], [0], [0], [1], [0, 0, 1, 1], [], []>} : vector<8x8xbf16>, vector<8x8xbf16>, vector<8x8xf32> -> vector<8x8xf32>
    %cst_5 = arith.constant 0.353553385 : f32
    %14 = vector.broadcast %cst_5 : f32 to vector<8x8xf32>
    %15 = arith.mulf %13, %14 : vector<8x8xf32>
    %cst_6 = arith.constant dense<0xFF800000> : vector<8xf32>
    %16 = vector.multi_reduction <maximumf>, %15, %cst_6 [1] : vector<8x8xf32> to vector<8xf32>
    %17 = vector.shape_cast %16 : vector<8xf32> to vector<8x1xf32>
    %18 = vector.broadcast %17 : vector<8x1xf32> to vector<8x8xf32>
    %19 = arith.subf %15, %18 : vector<8x8xf32>
    %20 = math.exp %19 : vector<8x8xf32>
    %cst_7 = arith.constant dense<0.000000e+00> : vector<8xf32>
    %21 = vector.multi_reduction <add>, %20, %cst_7 [1] : vector<8x8xf32> to vector<8xf32>
    %22 = vector.shape_cast %21 : vector<8xf32> to vector<8x1xf32>
    %23 = tpu.reciprocal %22 {approx = true} : vector<8x1xf32> -> vector<8x1xf32>
    %24 = vector.broadcast %23 : vector<8x1xf32> to vector<8x8xf32>
    %25 = arith.mulf %20, %24 : vector<8x8xf32>
    %26 = arith.truncf %25 : vector<8x8xf32> to vector<8x8xbf16>
    %cst_8 = arith.constant dense<0.000000e+00> : vector<8x8xf32>
    %27 = tpu.matmul %26, %11, %cst_8 {dimension_numbers = #tpu.dot_dimension_numbers<[1], [0], [0], [1], [0, 0, 1, 1], [], []>} : vector<8x8xbf16>, vector<8x8xbf16>, vector<8x8xf32> -> vector<8x8xf32>
    %28 = vector.extract_strided_slice %1 {offsets = [0, 8], sizes = [8, 8], strides = [1, 1]} : vector<8x32xf32> to vector<8x8xf32>
    %29 = arith.truncf %28 : vector<8x8xf32> to vector<8x8xbf16>
    %30 = vector.extract_strided_slice %4 {offsets = [0, 8], sizes = [8, 8], strides = [1, 1]} : vector<8x32xf32> to vector<8x8xf32>
    %31 = arith.truncf %30 : vector<8x8xf32> to vector<8x8xbf16>
    %32 = vector.extract_strided_slice %5 {offsets = [0, 8], sizes = [8, 8], strides = [1, 1]} : vector<8x32xf32> to vector<8x8xf32>
    %33 = arith.truncf %32 : vector<8x8xf32> to vector<8x8xbf16>
    %34 = tpu.transpose %31, [1, 0] : vector<8x8xbf16> -> vector<8x8xbf16>
    %cst_9 = arith.constant dense<0.000000e+00> : vector<8x8xf32>
    %35 = tpu.matmul %29, %34, %cst_9 {dimension_numbers = #tpu.dot_dimension_numbers<[1], [0], [0], [1], [0, 0, 1, 1], [], []>} : vector<8x8xbf16>, vector<8x8xbf16>, vector<8x8xf32> -> vector<8x8xf32>
    %cst_10 = arith.constant 0.353553385 : f32
    %36 = vector.broadcast %cst_10 : f32 to vector<8x8xf32>
    %37 = arith.mulf %35, %36 : vector<8x8xf32>
    %cst_11 = arith.constant dense<0xFF800000> : vector<8xf32>
    %38 = vector.multi_reduction <maximumf>, %37, %cst_11 [1] : vector<8x8xf32> to vector<8xf32>
    %39 = vector.shape_cast %38 : vector<8xf32> to vector<8x1xf32>
    %40 = vector.broadcast %39 : vector<8x1xf32> to vector<8x8xf32>
    %41 = arith.subf %37, %40 : vector<8x8xf32>
    %42 = math.exp %41 : vector<8x8xf32>
    %cst_12 = arith.constant dense<0.000000e+00> : vector<8xf32>
    %43 = vector.multi_reduction <add>, %42, %cst_12 [1] : vector<8x8xf32> to vector<8xf32>
    %44 = vector.shape_cast %43 : vector<8xf32> to vector<8x1xf32>
    %45 = tpu.reciprocal %44 {approx = true} : vector<8x1xf32> -> vector<8x1xf32>
    %46 = vector.broadcast %45 : vector<8x1xf32> to vector<8x8xf32>
    %47 = arith.mulf %42, %46 : vector<8x8xf32>
    %48 = arith.truncf %47 : vector<8x8xf32> to vector<8x8xbf16>
    %cst_13 = arith.constant dense<0.000000e+00> : vector<8x8xf32>
    %49 = tpu.matmul %48, %33, %cst_13 {dimension_numbers = #tpu.dot_dimension_numbers<[1], [0], [0], [1], [0, 0, 1, 1], [], []>} : vector<8x8xbf16>, vector<8x8xbf16>, vector<8x8xf32> -> vector<8x8xf32>
    %50 = vector.extract_strided_slice %1 {offsets = [0, 16], sizes = [8, 8], strides = [1, 1]} : vector<8x32xf32> to vector<8x8xf32>
    %51 = arith.truncf %50 : vector<8x8xf32> to vector<8x8xbf16>
    %52 = vector.extract_strided_slice %4 {offsets = [0, 16], sizes = [8, 8], strides = [1, 1]} : vector<8x32xf32> to vector<8x8xf32>
    %53 = arith.truncf %52 : vector<8x8xf32> to vector<8x8xbf16>
    %54 = vector.extract_strided_slice %5 {offsets = [0, 16], sizes = [8, 8], strides = [1, 1]} : vector<8x32xf32> to vector<8x8xf32>
    %55 = arith.truncf %54 : vector<8x8xf32> to vector<8x8xbf16>
    %56 = tpu.transpose %53, [1, 0] : vector<8x8xbf16> -> vector<8x8xbf16>
    %cst_14 = arith.constant dense<0.000000e+00> : vector<8x8xf32>
    %57 = tpu.matmul %51, %56, %cst_14 {dimension_numbers = #tpu.dot_dimension_numbers<[1], [0], [0], [1], [0, 0, 1, 1], [], []>} : vector<8x8xbf16>, vector<8x8xbf16>, vector<8x8xf32> -> vector<8x8xf32>
    %cst_15 = arith.constant 0.353553385 : f32
    %58 = vector.broadcast %cst_15 : f32 to vector<8x8xf32>
    %59 = arith.mulf %57, %58 : vector<8x8xf32>
    %cst_16 = arith.constant dense<0xFF800000> : vector<8xf32>
    %60 = vector.multi_reduction <maximumf>, %59, %cst_16 [1] : vector<8x8xf32> to vector<8xf32>
    %61 = vector.shape_cast %60 : vector<8xf32> to vector<8x1xf32>
    %62 = vector.broadcast %61 : vector<8x1xf32> to vector<8x8xf32>
    %63 = arith.subf %59, %62 : vector<8x8xf32>
    %64 = math.exp %63 : vector<8x8xf32>
    %cst_17 = arith.constant dense<0.000000e+00> : vector<8xf32>
    %65 = vector.multi_reduction <add>, %64, %cst_17 [1] : vector<8x8xf32> to vector<8xf32>
    %66 = vector.shape_cast %65 : vector<8xf32> to vector<8x1xf32>
    %67 = tpu.reciprocal %66 {approx = true} : vector<8x1xf32> -> vector<8x1xf32>
    %68 = vector.broadcast %67 : vector<8x1xf32> to vector<8x8xf32>
    %69 = arith.mulf %64, %68 : vector<8x8xf32>
    %70 = arith.truncf %69 : vector<8x8xf32> to vector<8x8xbf16>
    %cst_18 = arith.constant dense<0.000000e+00> : vector<8x8xf32>
    %71 = tpu.matmul %70, %55, %cst_18 {dimension_numbers = #tpu.dot_dimension_numbers<[1], [0], [0], [1], [0, 0, 1, 1], [], []>} : vector<8x8xbf16>, vector<8x8xbf16>, vector<8x8xf32> -> vector<8x8xf32>
    %72 = vector.extract_strided_slice %1 {offsets = [0, 24], sizes = [8, 8], strides = [1, 1]} : vector<8x32xf32> to vector<8x8xf32>
    %73 = arith.truncf %72 : vector<8x8xf32> to vector<8x8xbf16>
    %74 = vector.extract_strided_slice %4 {offsets = [0, 24], sizes = [8, 8], strides = [1, 1]} : vector<8x32xf32> to vector<8x8xf32>
    %75 = arith.truncf %74 : vector<8x8xf32> to vector<8x8xbf16>
    %76 = vector.extract_strided_slice %5 {offsets = [0, 24], sizes = [8, 8], strides = [1, 1]} : vector<8x32xf32> to vector<8x8xf32>
    %77 = arith.truncf %76 : vector<8x8xf32> to vector<8x8xbf16>
    %78 = tpu.transpose %75, [1, 0] : vector<8x8xbf16> -> vector<8x8xbf16>
    %cst_19 = arith.constant dense<0.000000e+00> : vector<8x8xf32>
    %79 = tpu.matmul %73, %78, %cst_19 {dimension_numbers = #tpu.dot_dimension_numbers<[1], [0], [0], [1], [0, 0, 1, 1], [], []>} : vector<8x8xbf16>, vector<8x8xbf16>, vector<8x8xf32> -> vector<8x8xf32>
    %cst_20 = arith.constant 0.353553385 : f32
    %80 = vector.broadcast %cst_20 : f32 to vector<8x8xf32>
    %81 = arith.mulf %79, %80 : vector<8x8xf32>
    %cst_21 = arith.constant dense<0xFF800000> : vector<8xf32>
    %82 = vector.multi_reduction <maximumf>, %81, %cst_21 [1] : vector<8x8xf32> to vector<8xf32>
    %83 = vector.shape_cast %82 : vector<8xf32> to vector<8x1xf32>
    %84 = vector.broadcast %83 : vector<8x1xf32> to vector<8x8xf32>
    %85 = arith.subf %81, %84 : vector<8x8xf32>
    %86 = math.exp %85 : vector<8x8xf32>
    %cst_22 = arith.constant dense<0.000000e+00> : vector<8xf32>
    %87 = vector.multi_reduction <add>, %86, %cst_22 [1] : vector<8x8xf32> to vector<8xf32>
    %88 = vector.shape_cast %87 : vector<8xf32> to vector<8x1xf32>
    %89 = tpu.reciprocal %88 {approx = true} : vector<8x1xf32> -> vector<8x1xf32>
    %90 = vector.broadcast %89 : vector<8x1xf32> to vector<8x8xf32>
    %91 = arith.mulf %86, %90 : vector<8x8xf32>
    %92 = arith.truncf %91 : vector<8x8xf32> to vector<8x8xbf16>
    %cst_23 = arith.constant dense<0.000000e+00> : vector<8x8xf32>
    %93 = tpu.matmul %92, %77, %cst_23 {dimension_numbers = #tpu.dot_dimension_numbers<[1], [0], [0], [1], [0, 0, 1, 1], [], []>} : vector<8x8xbf16>, vector<8x8xbf16>, vector<8x8xf32> -> vector<8x8xf32>
    %94 = tpu.concatenate %27, %49, %71, %93 in 1 : vector<8x8xf32>, vector<8x8xf32>, vector<8x8xf32>, vector<8x8xf32> -> vector<8x32xf32>
    %c0_24 = arith.constant 0 : index
    %c0_25 = arith.constant 0 : index
    %c0_26 = arith.constant 0 : index
    %95 = vector.load %arg3[%c0_24, %c0_25, %c0_26] : memref<1x8x32xf32, #tpu.memory_space<vmem>>, vector<1x8x32xf32>
    %96 = vector.shape_cast %95 : vector<1x8x32xf32> to vector<8x32xf32>
    %97 = vector.shape_cast %94 : vector<8x32xf32> to vector<1x8x32xf32>
    tpu.vector_store %arg3[%c0_24, %c0_25, %c0_26], %97 {strides = array<i32>} : memref<1x8x32xf32, #tpu.memory_space<vmem>>, vector<1x8x32xf32>,
    return
  }
  func.func @transform_0(%arg0: i32) -> (i32, i32, i32) {
    %c0_i32 = arith.constant 0 : i32
    %c0_i32_0 = arith.constant 0 : i32
    %c0_i32_1 = arith.constant 0 : i32
    return %arg0, %c0_i32, %c0_i32_0 : i32, i32, i32
  }
  func.func @transform_1(%arg0: i32) -> (i32, i32, i32) {
    %c0_i32 = arith.constant 0 : i32
    %c0_i32_0 = arith.constant 0 : i32
    %c0_i32_1 = arith.constant 0 : i32
    return %arg0, %c0_i32, %c0_i32_0 : i32, i32, i32
  }
  func.func @transform_2(%arg0: i32) -> (i32, i32, i32) {
    %c0_i32 = arith.constant 0 : i32
    %c0_i32_0 = arith.constant 0 : i32
    %c0_i32_1 = arith.constant 0 : i32
    return %arg0, %c0_i32, %c0_i32_0 : i32, i32, i32
  }
}

</mosaic_0001>

<llo_original>
// kernel: mon_mothma_forward.43
$region0: #{mon_mothma_forward.43}
  #allocation0 [shape = 'u32[]', space=smem, size = 0x4, offset = 0x4, fixed_abs, tag = 'smem constant byte address 0x4 - core index']
  #allocation1 [shape = 'u32[144,128]{1,0:T(1,128)}', space=vmem, size = 0x12000, scoped, tag = 'internal scratch']
  #allocation2 [shape = 'f32[16,128]{1,0:T(8,128)}', space=vmem, size = 0x2000, scoped, tag = 'scratch operand']
  %s0 = inlined_call_operand.vmem [shape: f32[16,128], index: 0, kind: input, shape index: {}]
  %s1 = inlined_call_operand.vmem [shape: f32[128,128], index: 1, kind: input, shape index: {}]
  %s2 = inlined_call_operand.vmem [shape: f32[1,128], index: 2, kind: input, shape index: {}]
  %s3 = inlined_call_operand.vmem [shape: f32[16,128], index: 3, kind: output, shape index: {}]
  %s4 = sld [smem:[#allocation0]]
  $region30: #{mon_mothma_forward.43} parent=0
    _
  %s6 = ssub.s32 1, %s4
  %s7 = scalar_select 0, %s6, %s4
  // Predicated region
  $region2: #{mon_mothma_forward.43} parent=0 // pred_check
    _
  $region3: #{mon_mothma_forward.43} parent=0 // pred_check_branch
    %9 = sbr.rel (0) target = $region5
  $region4: #{mon_mothma_forward.43} parent=0 // pred_region
    _
  $region5: #{mon_mothma_forward.43} parent=0 // pred_fallthru
    _
  // Predicated region
  $region6: #{mon_mothma_forward.43} parent=0 // pred_check
    _
  $region7: #{mon_mothma_forward.43} parent=0 // pred_check_branch
    %11 = sbr.rel (0) target = $region9
  $region8: #{mon_mothma_forward.43} parent=0 // pred_region
    _
  $region9: #{mon_mothma_forward.43} parent=0 // pred_fallthru
    _
  // Predicated region
  $region10: #{mon_mothma_forward.43} parent=0 // pred_check
    _
  $region11: #{mon_mothma_forward.43} parent=0 // pred_check_branch
    %13 = sbr.rel (0) target = $region13
  $region12: #{mon_mothma_forward.43} parent=0 // pred_region
    _
  $region13: #{mon_mothma_forward.43} parent=0 // pred_fallthru
    _
  %p15 = scmp.eq.s32.totalorder 0, 0
  // Predicated region
  $region14: #{mon_mothma_forward.43} parent=0 // pred_check
    %p16 = pneg %p15
  $region15: #{mon_mothma_forward.43} parent=0 // pred_check_branch
    %18 = sbr.rel (%p16) target = $region17
  $region16: #{mon_mothma_forward.43} parent=0 // pred_region
    %19 = vst [vmem:[#allocation2] sm:$0xff] 0.0
    %20 = vst [vmem:[#allocation2 + $0x8] sm:$0xff] 0.0
  $region17: #{mon_mothma_forward.43} parent=0 // pred_fallthru
    _
  %v21 = vld [vmem:[#allocation2] sm:$0xff]
  %v22 = vld [vmem:[#allocation2 + $0x8] sm:$0xff]
  %v23 = vld [vmem:[%s0] sm:$0xff]
  %v24 = vld [vmem:[%s0 + $0x8] sm:$0xff]
  %v25 = vpack.c.bf16 %v24, %v23
  %v26 = vld [vmem:[%s1] sm:$0xff]
  %v27 = vld [vmem:[%s1 + $0x8] sm:$0xff]
  %v28 = vld [vmem:[%s1 + $0x10] sm:$0xff]
  %v29 = vld [vmem:[%s1 + $0x18] sm:$0xff]
  %v30 = vld [vmem:[%s1 + $0x20] sm:$0xff]
  %v31 = vld [vmem:[%s1 + $0x28] sm:$0xff]
  %v32 = vld [vmem:[%s1 + $0x30] sm:$0xff]
  %v33 = vld [vmem:[%s1 + $0x38] sm:$0xff]
  %v34 = vld [vmem:[%s1 + $0x40] sm:$0xff]
  %v35 = vld [vmem:[%s1 + $0x48] sm:$0xff]
  %v36 = vld [vmem:[%s1 + $0x50] sm:$0xff]
  %v37 = vld [vmem:[%s1 + $0x58] sm:$0xff]
  %v38 = vld [vmem:[%s1 + $0x60] sm:$0xff]
  %v39 = vld [vmem:[%s1 + $0x68] sm:$0xff]
  %v40 = vld [vmem:[%s1 + $0x70] sm:$0xff]
  %v41 = vld [vmem:[%s1 + $0x78] sm:$0xff]
  %v42 = vpack.c.bf16 %v27, %v26
  %v43 = vpack.c.bf16 %v29, %v28
  %v44 = vpack.c.bf16 %v31, %v30
  %v45 = vpack.c.bf16 %v33, %v32
  %v46 = vpack.c.bf16 %v35, %v34
  %v47 = vpack.c.bf16 %v37, %v36
  %v48 = vpack.c.bf16 %v39, %v38
  %v49 = vpack.c.bf16 %v41, %v40
  %50 = vmatprep.subr.bf16.mxu0 0
  %51 = vmatpush1.bf16.msra.mxu0 %v42
  %52 = vmatprep.subr.bf16.mxu0 0
  %53 = vmatpush1.bf16.msra.mxu0 %v43
  %54 = vmatprep.subr.bf16.mxu0 0
  %55 = vmatpush1.bf16.msra.mxu0 %v44
  %56 = vmatprep.subr.bf16.mxu0 0
  %57 = vmatpush1.bf16.msra.mxu0 %v45
  %58 = vmatprep.subr.bf16.mxu0 0
  %59 = vmatpush1.bf16.msra.mxu0 %v46
  %60 = vmatprep.subr.bf16.mxu0 0
  %61 = vmatpush1.bf16.msra.mxu0 %v47
  %62 = vmatprep.subr.bf16.mxu0 0
  %63 = vmatpush1.bf16.msra.mxu0 %v48
  %64 = vmatprep.subr.bf16.mxu0 0
  %65 = vmatpush1.bf16.msra.mxu0 %v49
  %66 = vmatprep.subr.bf16.mxu0 0
  %67 = vmatpush1.bf16.msra.mxu0 0
  %68 = vmatprep.subr.bf16.mxu0 0
  %69 = vmatpush1.bf16.msra.mxu0 0
  %70 = vmatprep.subr.bf16.mxu0 0
  %71 = vmatpush1.bf16.msra.mxu0 0
  %72 = vmatprep.subr.bf16.mxu0 0
  %73 = vmatpush1.bf16.msra.mxu0 0
  %74 = vmatprep.subr.bf16.mxu0 0
  %75 = vmatpush1.bf16.msra.mxu0 0
  %76 = vmatprep.subr.bf16.mxu0 0
  %77 = vmatpush1.bf16.msra.mxu0 0
  %78 = vmatprep.subr.bf16.mxu0 0
  %79 = vmatpush1.bf16.msra.mxu0 0
  %80 = vmatprep.subr.bf16.mxu0 0
  %81 = vmatpush1.bf16.msra.mxu0 0
  %82 = vmatprep.mubr.bf16.mxu0 0
  %83 = vmatmul.mubr.bf16.gmra.mrb[0].mxu0 %v25
  %v84 = vpop.f32.mrb[0].mxu0
  %v85 = vadd.f32 0.0, %v84
  %v86 = vpop.f32.mrb[0].mxu0
  %v87 = vpop.f32.mrb[0].mxu0
  %v88 = vadd.f32 0.0, %v87
  %v89 = vpop.f32.mrb[0].mxu0
  %90 = vdwg.mxu0
  %v91 = vadd.f32 %v21, %v85
  %v92 = vadd.f32 %v22, %v88
  %93 = vst [vmem:[#allocation2] sm:$0xff] %v91
  %94 = vst [vmem:[#allocation2 + $0x8] sm:$0xff] %v92
  // Predicated region
  $region18: #{mon_mothma_forward.43} parent=0 // pred_check
    %p95 = pneg %p15
  $region19: #{mon_mothma_forward.43} parent=0 // pred_check_branch
    %97 = sbr.rel (%p95) target = $region21
  $region20: #{mon_mothma_forward.43} parent=0 // pred_region
    %v98 = vld [vmem:[#allocation2] sm:$0xff]
    %v99 = vld [vmem:[#allocation2 + $0x8] sm:$0xff]
    %v100 = vld [vmem:[%s2] sm:$0x1]
    %v102 = vlaneseq
    %v103 = vshrl.u32 %v102, 7
    %v104 = vsub.s32 0, %v103
    %v105 = vrot.slane %v100, %v104
    %v107 = vadd.f32 %v98, %v105
    %v108 = vadd.f32 %v99, %v105
    %v109 = vmax.f32 %v107, 0.0
    %v110 = vmax.f32 %v108, 0.0
    %111 = vst [vmem:[%s3] sm:$0xff] %v109
    %112 = vst [vmem:[%s3 + $0x8] sm:$0xff] %v110
  $region21: #{mon_mothma_forward.43} parent=0 // pred_fallthru
    _
  // Predicated region
  $region22: #{mon_mothma_forward.43} parent=0 // pred_check
    _
  $region23: #{mon_mothma_forward.43} parent=0 // pred_check_branch
    %114 = sbr.rel (0) target = $region25
  $region24: #{mon_mothma_forward.43} parent=0 // pred_region
    _
  $region25: #{mon_mothma_forward.43} parent=0 // pred_fallthru
    _
  // Predicated region
  $region26: #{mon_mothma_forward.43} parent=0 // pred_check
    _
  $region27: #{mon_mothma_forward.43} parent=0 // pred_check_branch
    %116 = sbr.rel (0) target = $region29
  $region28: #{mon_mothma_forward.43} parent=0 // pred_region
    _
  $region29: #{mon_mothma_forward.43} parent=0 // pred_fallthru
    _

// kernel: mon_mothma_forward.39
$region0: #{mon_mothma_forward.39}
  #allocation0 [shape = 'u32[]', space=smem, size = 0x4, offset = 0x4, fixed_abs, tag = 'smem constant byte address 0x4 - core index']
  #allocation1 [shape = 'u32[144,128]{1,0:T(1,128)}', space=vmem, size = 0x12000, scoped, tag = 'internal scratch']
  #allocation2 [shape = 'f32[16,128]{1,0:T(8,128)}', space=vmem, size = 0x2000, scoped, tag = 'scratch operand']
  %s0 = inlined_call_operand.vmem [shape: f32[16,128], index: 0, kind: input, shape index: {}]
  %s1 = inlined_call_operand.vmem [shape: f32[128,128], index: 1, kind: input, shape index: {}]
  %s2 = inlined_call_operand.vmem [shape: f32[1,128], index: 2, kind: input, shape index: {}]
  %s3 = inlined_call_operand.vmem [shape: f32[16,128], index: 3, kind: output, shape index: {}]
  %s4 = sld [smem:[#allocation0]]
  $region30: #{mon_mothma_forward.39} parent=0
    _
  %s6 = ssub.s32 1, %s4
  %s7 = scalar_select 0, %s6, %s4
  // Predicated region
  $region2: #{mon_mothma_forward.39} parent=0 // pred_check
    _
  $region3: #{mon_mothma_forward.39} parent=0 // pred_check_branch
    %9 = sbr.rel (0) target = $region5
  $region4: #{mon_mothma_forward.39} parent=0 // pred_region
    _
  $region5: #{mon_mothma_forward.39} parent=0 // pred_fallthru
    _
  // Predicated region
  $region6: #{mon_mothma_forward.39} parent=0 // pred_check
    _
  $region7: #{mon_mothma_forward.39} parent=0 // pred_check_branch
    %11 = sbr.rel (0) target = $region9
  $region8: #{mon_mothma_forward.39} parent=0 // pred_region
    _
  $region9: #{mon_mothma_forward.39} parent=0 // pred_fallthru
    _
  // Predicated region
  $region10: #{mon_mothma_forward.39} parent=0 // pred_check
    _
  $region11: #{mon_mothma_forward.39} parent=0 // pred_check_branch
    %13 = sbr.rel (0) target = $region13
  $region12: #{mon_mothma_forward.39} parent=0 // pred_region
    _
  $region13: #{mon_mothma_forward.39} parent=0 // pred_fallthru
    _
  %p15 = scmp.eq.s32.totalorder 0, 0
  // Predicated region
  $region14: #{mon_mothma_forward.39} parent=0 // pred_check
    %p16 = pneg %p15
  $region15: #{mon_mothma_forward.39} parent=0 // pred_check_branch
    %18 = sbr.rel (%p16) target = $region17
  $region16: #{mon_mothma_forward.39} parent=0 // pred_region
    %19 = vst [vmem:[#allocation2] sm:$0xff] 0.0
    %20 = vst [vmem:[#allocation2 + $0x8] sm:$0xff] 0.0
  $region17: #{mon_mothma_forward.39} parent=0 // pred_fallthru
    _
  %v21 = vld [vmem:[#allocation2] sm:$0xff]
  %v22 = vld [vmem:[#allocation2 + $0x8] sm:$0xff]
  %v23 = vld [vmem:[%s0] sm:$0xff]
  %v24 = vld [vmem:[%s0 + $0x8] sm:$0xff]
  %v25 = vpack.c.bf16 %v24, %v23
  %v26 = vld [vmem:[%s1] sm:$0xff]
  %v27 = vld [vmem:[%s1 + $0x8] sm:$0xff]
  %v28 = vld [vmem:[%s1 + $0x10] sm:$0xff]
  %v29 = vld [vmem:[%s1 + $0x18] sm:$0xff]
  %v30 = vld [vmem:[%s1 + $0x20] sm:$0xff]
  %v31 = vld [vmem:[%s1 + $0x28] sm:$0xff]
  %v32 = vld [vmem:[%s1 + $0x30] sm:$0xff]
  %v33 = vld [vmem:[%s1 + $0x38] sm:$0xff]
  %v34 = vld [vmem:[%s1 + $0x40] sm:$0xff]
  %v35 = vld [vmem:[%s1 + $0x48] sm:$0xff]
  %v36 = vld [vmem:[%s1 + $0x50] sm:$0xff]
  %v37 = vld [vmem:[%s1 + $0x58] sm:$0xff]
  %v38 = vld [vmem:[%s1 + $0x60] sm:$0xff]
  %v39 = vld [vmem:[%s1 + $0x68] sm:$0xff]
  %v40 = vld [vmem:[%s1 + $0x70] sm:$0xff]
  %v41 = vld [vmem:[%s1 + $0x78] sm:$0xff]
  %v42 = vpack.c.bf16 %v27, %v26
  %v43 = vpack.c.bf16 %v29, %v28
  %v44 = vpack.c.bf16 %v31, %v30
  %v45 = vpack.c.bf16 %v33, %v32
  %v46 = vpack.c.bf16 %v35, %v34
  %v47 = vpack.c.bf16 %v37, %v36
  %v48 = vpack.c.bf16 %v39, %v38
  %v49 = vpack.c.bf16 %v41, %v40
  %50 = vmatprep.subr.bf16.mxu0 0
  %51 = vmatpush1.bf16.msra.mxu0 %v42
  %52 = vmatprep.subr.bf16.mxu0 0
  %53 = vmatpush1.bf16.msra.mxu0 %v43
  %54 = vmatprep.subr.bf16.mxu0 0
  %55 = vmatpush1.bf16.msra.mxu0 %v44
  %56 = vmatprep.subr.bf16.mxu0 0
  %57 = vmatpush1.bf16.msra.mxu0 %v45
  %58 = vmatprep.subr.bf16.mxu0 0
  %59 = vmatpush1.bf16.msra.mxu0 %v46
  %60 = vmatprep.subr.bf16.mxu0 0
  %61 = vmatpush1.bf16.msra.mxu0 %v47
  %62 = vmatprep.subr.bf16.mxu0 0
  %63 = vmatpush1.bf16.msra.mxu0 %v48
  %64 = vmatprep.subr.bf16.mxu0 0
  %65 = vmatpush1.bf16.msra.mxu0 %v49
  %66 = vmatprep.subr.bf16.mxu0 0
  %67 = vmatpush1.bf16.msra.mxu0 0
  %68 = vmatprep.subr.bf16.mxu0 0
  %69 = vmatpush1.bf16.msra.mxu0 0
  %70 = vmatprep.subr.bf16.mxu0 0
  %71 = vmatpush1.bf16.msra.mxu0 0
  %72 = vmatprep.subr.bf16.mxu0 0
  %73 = vmatpush1.bf16.msra.mxu0 0
  %74 = vmatprep.subr.bf16.mxu0 0
  %75 = vmatpush1.bf16.msra.mxu0 0
  %76 = vmatprep.subr.bf16.mxu0 0
  %77 = vmatpush1.bf16.msra.mxu0 0
  %78 = vmatprep.subr.bf16.mxu0 0
  %79 = vmatpush1.bf16.msra.mxu0 0
  %80 = vmatprep.subr.bf16.mxu0 0
  %81 = vmatpush1.bf16.msra.mxu0 0
  %82 = vmatprep.mubr.bf16.mxu0 0
  %83 = vmatmul.mubr.bf16.gmra.mrb[0].mxu0 %v25
  %v84 = vpop.f32.mrb[0].mxu0
  %v85 = vadd.f32 0.0, %v84
  %v86 = vpop.f32.mrb[0].mxu0
  %v87 = vpop.f32.mrb[0].mxu0
  %v88 = vadd.f32 0.0, %v87
  %v89 = vpop.f32.mrb[0].mxu0
  %90 = vdwg.mxu0
  %v91 = vadd.f32 %v21, %v85
  %v92 = vadd.f32 %v22, %v88
  %93 = vst [vmem:[#allocation2] sm:$0xff] %v91
  %94 = vst [vmem:[#allocation2 + $0x8] sm:$0xff] %v92
  // Predicated region
  $region18: #{mon_mothma_forward.39} parent=0 // pred_check
    %p95 = pneg %p15
  $region19: #{mon_mothma_forward.39} parent=0 // pred_check_branch
    %97 = sbr.rel (%p95) target = $region21
  $region20: #{mon_mothma_forward.39} parent=0 // pred_region
    %v98 = vld [vmem:[#allocation2] sm:$0xff]
    %v99 = vld [vmem:[#allocation2 + $0x8] sm:$0xff]
    %v100 = vld [vmem:[%s2] sm:$0x1]
    %v102 = vlaneseq
    %v103 = vshrl.u32 %v102, 7
    %v104 = vsub.s32 0, %v103
    %v105 = vrot.slane %v100, %v104
    %v107 = vadd.f32 %v98, %v105
    %v108 = vadd.f32 %v99, %v105
    %109 = vst [vmem:[%s3] sm:$0xff] %v107
    %110 = vst [vmem:[%s3 + $0x8] sm:$0xff] %v108
  $region21: #{mon_mothma_forward.39} parent=0 // pred_fallthru
    _
  // Predicated region
  $region22: #{mon_mothma_forward.39} parent=0 // pred_check
    _
  $region23: #{mon_mothma_forward.39} parent=0 // pred_check_branch
    %112 = sbr.rel (0) target = $region25
  $region24: #{mon_mothma_forward.39} parent=0 // pred_region
    _
  $region25: #{mon_mothma_forward.39} parent=0 // pred_fallthru
    _
  // Predicated region
  $region26: #{mon_mothma_forward.39} parent=0 // pred_check
    _
  $region27: #{mon_mothma_forward.39} parent=0 // pred_check_branch
    %114 = sbr.rel (0) target = $region29
  $region28: #{mon_mothma_forward.39} parent=0 // pred_region
    _
  $region29: #{mon_mothma_forward.39} parent=0 // pred_fallthru
    _

// kernel: mon_mothma_forward.42
$region0: #{mon_mothma_forward.42}
  #allocation0 [shape = 'u32[]', space=smem, size = 0x4, offset = 0x4, fixed_abs, tag = 'smem constant byte address 0x4 - core index']
  #allocation1 [shape = 'u32[144,128]{1,0:T(1,128)}', space=vmem, size = 0x12000, scoped, tag = 'internal scratch']
  %s0 = inlined_call_operand.vmem [shape: f32[16,32], index: 0, kind: input, shape index: {}]
  %s1 = inlined_call_operand.vmem [shape: f32[16,32], index: 1, kind: input, shape index: {}]
  %s2 = inlined_call_operand.vmem [shape: f32[1,32], index: 2, kind: input, shape index: {}]
  %s3 = inlined_call_operand.vmem [shape: f32[1,32], index: 3, kind: input, shape index: {}]
  %s4 = inlined_call_operand.vmem [shape: f32[16,32], index: 4, kind: output, shape index: {}]
  %s5 = sld [smem:[#allocation0]]
  $region26: #{mon_mothma_forward.42} parent=0
    _
  %s7 = ssub.s32 1, %s5
  %s8 = scalar_select 0, %s7, %s5
  // Predicated region
  $region2: #{mon_mothma_forward.42} parent=0 // pred_check
    _
  $region3: #{mon_mothma_forward.42} parent=0 // pred_check_branch
    %10 = sbr.rel (0) target = $region5
  $region4: #{mon_mothma_forward.42} parent=0 // pred_region
    _
  $region5: #{mon_mothma_forward.42} parent=0 // pred_fallthru
    _
  // Predicated region
  $region6: #{mon_mothma_forward.42} parent=0 // pred_check
    _
  $region7: #{mon_mothma_forward.42} parent=0 // pred_check_branch
    %12 = sbr.rel (0) target = $region9
  $region8: #{mon_mothma_forward.42} parent=0 // pred_region
    _
  $region9: #{mon_mothma_forward.42} parent=0 // pred_fallthru
    _
  // Predicated region
  $region10: #{mon_mothma_forward.42} parent=0 // pred_check
    _
  $region11: #{mon_mothma_forward.42} parent=0 // pred_check_branch
    %14 = sbr.rel (0) target = $region13
  $region12: #{mon_mothma_forward.42} parent=0 // pred_region
    _
  $region13: #{mon_mothma_forward.42} parent=0 // pred_fallthru
    _
  // Predicated region
  $region14: #{mon_mothma_forward.42} parent=0 // pred_check
    _
  $region15: #{mon_mothma_forward.42} parent=0 // pred_check_branch
    %16 = sbr.rel (0) target = $region17
  $region16: #{mon_mothma_forward.42} parent=0 // pred_region
    _
  $region17: #{mon_mothma_forward.42} parent=0 // pred_fallthru
    _
  %v17 = vld [vmem:[%s0] sm:$0xff]
  %v18 = vld [vmem:[%s0 + $0x8] sm:$0xff]
  %v19 = vld [vmem:[%s1] sm:$0xff]
  %v20 = vld [vmem:[%s1 + $0x8] sm:$0xff]
  %v21 = vadd.f32 %v17, %v19
  %v22 = vadd.f32 %v18, %v20
  %vm23 = vcmask 261120
  %v24 = vsel %vm23, %v21, 0.0
  %25 = vadd.xlane.f32.xlu0 %v24
  %v26 = vpop.xlane.xlu0 %25
  %v27 = vsel %vm23, %v22, 0.0
  %28 = vadd.xlane.f32.xlu0 %v27
  %v29 = vpop.xlane.xlu0 %28
  %v30 = vrcp.pop 32.0
  %v31 = vmul.f32 %v26, %v30
  %v32 = vmul.f32 %v29, %v30
  %v33 = vsub.f32 %v21, %v31
  %v34 = vsub.f32 %v22, %v32
  %v35 = vmul.f32 %v33, %v33
  %v36 = vmul.f32 %v34, %v34
  %v37 = vsel %vm23, %v35, 0.0
  %38 = vadd.xlane.f32.xlu0 %v37
  %v39 = vpop.xlane.xlu0 %38
  %v40 = vsel %vm23, %v36, 0.0
  %41 = vadd.xlane.f32.xlu0 %v40
  %v42 = vpop.xlane.xlu0 %41
  %v43 = vmul.f32 %v39, %v30
  %v44 = vmul.f32 %v42, %v30
  %v45 = vadd.f32 %v43, 1e-05
  %v46 = vadd.f32 %v44, 1e-05
  %v47 = vrsqrt.pop %v45
  %v48 = vrsqrt.pop %v46
  %v49 = vmul.f32 %v33, %v47
  %v50 = vmul.f32 %v34, %v48
  %v51 = vld [vmem:[%s2] sm:$0x1]
  %v53 = vlaneseq
  %v54 = vshrl.u32 %v53, 7
  %v55 = vsub.s32 0, %v54
  %v56 = vrot.slane %v51, %v55
  %v58 = vmul.f32 %v49, %v56
  %v59 = vmul.f32 %v50, %v56
  %v60 = vld [vmem:[%s3] sm:$0x1]
  %v62 = vlaneseq
  %v63 = vshrl.u32 %v62, 7
  %v64 = vsub.s32 0, %v63
  %v65 = vrot.slane %v60, %v64
  %v67 = vadd.f32 %v58, %v65
  %v68 = vadd.f32 %v59, %v65
  %69 = vst.msk [vmem:[%s4] sm:$0xff] %vm23, %v67
  %70 = vst.msk [vmem:[%s4 + $0x8] sm:$0xff] %vm23, %v68
  // Predicated region
  $region18: #{mon_mothma_forward.42} parent=0 // pred_check
    _
  $region19: #{mon_mothma_forward.42} parent=0 // pred_check_branch
    %72 = sbr.rel (0) target = $region21
  $region20: #{mon_mothma_forward.42} parent=0 // pred_region
    _
  $region21: #{mon_mothma_forward.42} parent=0 // pred_fallthru
    _
  // Predicated region
  $region22: #{mon_mothma_forward.42} parent=0 // pred_check
    _
  $region23: #{mon_mothma_forward.42} parent=0 // pred_check_branch
    %74 = sbr.rel (0) target = $region25
  $region24: #{mon_mothma_forward.42} parent=0 // pred_region
    _
  $region25: #{mon_mothma_forward.42} parent=0 // pred_fallthru
    _

// kernel: mon_mothma_forward.40
$region0: #{mon_mothma_forward.40}
  #allocation0 [shape = 'u32[]', space=smem, size = 0x4, offset = 0x4, fixed_abs, tag = 'smem constant byte address 0x4 - core index']
  #allocation1 [shape = 'u32[144,128]{1,0:T(1,128)}', space=vmem, size = 0x12000, scoped, tag = 'internal scratch']
  %s0 = inlined_call_operand.vmem [shape: f32[2,8,96], index: 0, kind: input, shape index: {}]
  %s1 = inlined_call_operand.vmem [shape: f32[2,8,32], index: 1, kind: output, shape index: {}]
  %s2 = sld [smem:[#allocation0]]
  $region37: #{mon_mothma_forward.40} parent=0
    _
  %s4 = ssub.s32 1, %s2
  %s5 = scalar_select 0, %s4, %s2
  loop: start=0, step=1, limit=4
  $region2: #{mon_mothma_forward.40} parent=0 // loop_pre_header
    _
  $region3: #{mon_mothma_forward.40} parent=0 // loop_header
    %s7 = sphi 0, %s11
    %p8 = scmp.ge.s32.totalorder %s7, 4
    %s17 = sphi 0, %s19
    %s20 = sphi 0, %s17
    %s21 = sphi 0, %s20
    %s37 = sphi 0, %s21
    %s43 = sphi 0, %s45
    %s46 = sphi 0, %s43
    %s47 = sphi 0, %s46
    %s63 = sphi 0, %s47
  $region4: #{mon_mothma_forward.40} parent=0 // loop_header_branch
    %10 = sbr.rel (%p8) target = $region8
  $region5: #{mon_mothma_forward.40} parent=0 // loop_body
    %s12 = ssub.s32 %s7, 1
    %s13 = ssub.s32 %s7, 2
    %s14 = sadd.s32 %s7, 1
    %s15 = ssub.s32 %s7, %s14
    %p16 = scmp.eq.s32.totalorder %s15, 0
    %s18 = sadd.s32 %s17, 1
    %s19 = scalar_select %p16, %s17, %s18
    %p22 = pneg %p16
    %p23 = scmp.eq.s32.totalorder %s7, 1
    %p24 = por %p22, %p23
    %p25 = scmp.ne.s32.totalorder %s17, %s20
    %p26 = scmp.eq.s32.totalorder %s7, 0
    %p27 = por %p25, %p26
    %p28 = scmp.ne.s32.totalorder %s17, %s20
    %p29 = scmp.eq.s32.totalorder %s12, 1
    %p30 = por %p28, %p29
    %p31 = scmp.ne.s32.totalorder %s20, %s21
    %p32 = scmp.eq.s32.totalorder %s12, 0
    %p33 = por %p31, %p32
    %p34 = scmp.ne.s32.totalorder %s20, %s21
    %p35 = scmp.eq.s32.totalorder %s13, 1
    %p36 = por %p34, %p35
    %p38 = scmp.ne.s32.totalorder %s21, %s37
    %p39 = scmp.eq.s32.totalorder %s13, 0
    %p40 = por %p38, %p39
    %s41 = ssub.s32 %s7, %s14
    %p42 = scmp.eq.s32.totalorder %s41, 0
    %s44 = sadd.s32 %s43, 1
    %s45 = scalar_select %p42, %s43, %s44
    %p48 = pneg %p42
    %p49 = scmp.eq.s32.totalorder %s7, 1
    %p50 = por %p48, %p49
    %p51 = scmp.ne.s32.totalorder %s43, %s46
    %p52 = scmp.eq.s32.totalorder %s7, 0
    %p53 = por %p51, %p52
    %p54 = scmp.ne.s32.totalorder %s43, %s46
    %p55 = scmp.eq.s32.totalorder %s12, 1
    %p56 = por %p54, %p55
    %p57 = scmp.ne.s32.totalorder %s46, %s47
    %p58 = scmp.eq.s32.totalorder %s12, 0
    %p59 = por %p57, %p58
    %p60 = scmp.ne.s32.totalorder %s46, %s47
    %p61 = scmp.eq.s32.totalorder %s13, 1
    %p62 = por %p60, %p61
    %p64 = scmp.ne.s32.totalorder %s47, %s63
    %p65 = scmp.eq.s32.totalorder %s13, 0
    %p66 = por %p64, %p65
    %p67 = scmp.le.s32.totalorder 1, %s7
    %p68 = scmp.lt.s32.totalorder %s7, 3
    %p69 = pnand %p67, %p68
    %p70 = pneg %p69
    // Predicated region
    $region9: #{mon_mothma_forward.40} parent=5 // pred_check
      _
    $region10: #{mon_mothma_forward.40} parent=5 // pred_check_branch
      %72 = sbr.rel (%p69) target = $region12
    $region11: #{mon_mothma_forward.40} parent=5 // pred_region
      %s73 = ssub.s32 %s7, 1
    $region12: #{mon_mothma_forward.40} parent=5 // pred_fallthru
      _
    %p74 = scmp.lt.s32.totalorder %s7, 2
    // Predicated region
    $region13: #{mon_mothma_forward.40} parent=5 // pred_check
      %p75 = pneg %p74
    $region14: #{mon_mothma_forward.40} parent=5 // pred_check_branch
      %77 = sbr.rel (%p75) target = $region16
    $region15: #{mon_mothma_forward.40} parent=5 // pred_region
      // Predicated region
      $region17: #{mon_mothma_forward.40} parent=15 // pred_check
        %p78 = pneg %p27
      $region18: #{mon_mothma_forward.40} parent=15 // pred_check_branch
        %80 = sbr.rel (%p78) target = $region20
      $region19: #{mon_mothma_forward.40} parent=15 // pred_region
        %p81 = scmp.lt.s32.totalorder %s7, 1
        %s82 = scalar_select %p81, %s7, 1
        %s83 = smul.addr %s82, 8
        %s84 = scalar_lea.vmem %s0, %s83
      $region20: #{mon_mothma_forward.40} parent=15 // pred_fallthru
        _
    $region16: #{mon_mothma_forward.40} parent=5 // pred_fallthru
      _
    %p85 = scmp.le.s32.totalorder 1, %s7
    %p86 = scmp.lt.s32.totalorder %s7, 3
    %p87 = pnand %p85, %p86
    %p88 = pneg %p87
    // Predicated region
    $region21: #{mon_mothma_forward.40} parent=5 // pred_check
      _
    $region22: #{mon_mothma_forward.40} parent=5 // pred_check_branch
      %90 = sbr.rel (%p87) target = $region24
    $region23: #{mon_mothma_forward.40} parent=5 // pred_region
      %s91 = ssub.s32 %s7, 1
      %p92 = scmp.lt.s32.totalorder %s12, 1
      %s93 = scalar_select %p92, %s12, 1
      %s94 = smul.addr %s93, 8
      %s95 = scalar_lea.vmem %s0, %s94
      %p96 = pneg %p33
      %p97 = pneg %p30
      %p98 = pneg %p59
      %p99 = pneg %p56
      %p100 = scmp.lt.s32.totalorder %s12, 1
      %s101 = scalar_select %p100, %s12, 1
      %s102 = smul.addr %s101, 8
      %s103 = scalar_lea.vmem %s1, %s102
      %p104 = scmp.lt.s32.totalorder %s12, 1
      %s105 = scalar_select %p104, %s12, 1
      %s106 = smul.addr %s105, 8
      %s107 = scalar_lea.vmem %s0, %s106
      %p108 = scmp.lt.s32.totalorder %s12, 1
      %s109 = scalar_select %p108, %s12, 1
      %s110 = smul.addr %s109, 8
      %s111 = scalar_lea.vmem %s1, %s110
      %v113 = vld [vmem:[%s107] sm:$0xff]
      %v114 = vpack.c.bf16 %v113, %v113
      %116 = vrot.lane.b32.xlu0 %v114, 96
      %v117 = vpop.permute.xlu0 %116
      %vm118 = vcmask 64512
      %v120 = vsel %vm118, %v114, 0
      %v123 = vsel %vm118, %v117, 0
      %125 = vmatprep.subr.bf16.mxu0 0
      %126 = vmatpush1.bf16.xpose.msra.mxu0 %v123
      %127 = vmatprep.subr.bf16.mxu0 0
      %128 = vmatpush1.bf16.xpose.msra.mxu0 0
      %129 = vmatprep.subr.bf16.mxu0 0
      %130 = vmatpush1.bf16.xpose.msra.mxu0 0
      %131 = vmatprep.subr.bf16.mxu0 0
      %132 = vmatpush1.bf16.xpose.msra.mxu0 0
      %133 = vmatprep.subr.bf16.mxu0 0
      %134 = vmatpush1.bf16.xpose.msra.mxu0 0
      %135 = vmatprep.subr.bf16.mxu0 0
      %136 = vmatpush1.bf16.xpose.msra.mxu0 0
      %137 = vmatprep.subr.bf16.mxu0 0
      %138 = vmatpush1.bf16.xpose.msra.mxu0 0
      %139 = vmatprep.subr.bf16.mxu0 0
      %140 = vmatpush1.bf16.xpose.msra.mxu0 0
      %141 = vmatprep.subr.bf16.mxu0 0
      %142 = vmatpush1.bf16.xpose.msra.mxu0 0
      %143 = vmatprep.subr.bf16.mxu0 0
      %144 = vmatpush1.bf16.xpose.msra.mxu0 0
      %145 = vmatprep.subr.bf16.mxu0 0
      %146 = vmatpush1.bf16.xpose.msra.mxu0 0
      %147 = vmatprep.subr.bf16.mxu0 0
      %148 = vmatpush1.bf16.xpose.msra.mxu0 0
      %149 = vmatprep.subr.bf16.mxu0 0
      %150 = vmatpush1.bf16.xpose.msra.mxu0 0
      %151 = vmatprep.subr.bf16.mxu0 0
      %152 = vmatpush1.bf16.xpose.msra.mxu0 0
      %153 = vmatprep.subr.bf16.mxu0 0
      %154 = vmatpush1.bf16.xpose.msra.mxu0 0
      %155 = vmatprep.subr.bf16.mxu0 0
      %156 = vmatpush1.bf16.xpose.msra.mxu0 0
      %157 = vmatprep.mubr.bf16.mxu0 0
      %158 = vmatmul.mubr.bf16.gmra.mrb[0].mxu0 %v120
      %v159 = vpop.f32.mrb[0].mxu0
      %v160 = vadd.f32 0.0, %v159
      %v161 = vpop.f32.mrb[0].mxu0
      %v162 = vpop.f32.mrb[0].mxu0
      %v163 = vpop.f32.mrb[0].mxu0
      %164 = vdwg.mxu0
      %v165 = vmul.f32 %v160, 0.35355338
      %v166 = vsel %vm118, %v165, -inf
      %167 = vmax.xlane.f32.xlu0 %v166
      %v168 = vpop.xlane.xlu0 %167
      %v169 = vsub.f32 %v165, %v168
      %v170 = vmul.f32 %v169, 1.442695
      %v171 = vpow.pop %v170
      %v172 = vsel %vm118, %v171, 0.0
      %173 = vadd.xlane.f32.xlu0 %v172
      %v174 = vpop.xlane.xlu0 %173
      %v175 = vrcp.pop %v174
      %v176 = vmul.f32 %v171, %v175
      %v177 = vpack.c.bf16 %v176, %v176
      %178 = vrot.lane.b32.xlu0 %v114, 64
      %v179 = vpop.permute.xlu0 %178
      %v181 = vsel %vm118, %v177, 0
      %vm183 = vcmask 1043456
      %v185 = vsel %vm183, %v179, 0
      %187 = vmatprep.subr.bf16.mxu0 0
      %188 = vmatpush1.bf16.msra.mxu0 %v185
      %189 = vmatprep.subr.bf16.mxu0 0
      %190 = vmatpush1.bf16.msra.mxu0 0
      %191 = vmatprep.subr.bf16.mxu0 0
      %192 = vmatpush1.bf16.msra.mxu0 0
      %193 = vmatprep.subr.bf16.mxu0 0
      %194 = vmatpush1.bf16.msra.mxu0 0
      %195 = vmatprep.subr.bf16.mxu0 0
      %196 = vmatpush1.bf16.msra.mxu0 0
      %197 = vmatprep.subr.bf16.mxu0 0
      %198 = vmatpush1.bf16.msra.mxu0 0
      %199 = vmatprep.subr.bf16.mxu0 0
      %200 = vmatpush1.bf16.msra.mxu0 0
      %201 = vmatprep.subr.bf16.mxu0 0
      %202 = vmatpush1.bf16.msra.mxu0 0
      %203 = vmatprep.subr.bf16.mxu0 0
      %204 = vmatpush1.bf16.msra.mxu0 0
      %205 = vmatprep.subr.bf16.mxu0 0
      %206 = vmatpush1.bf16.msra.mxu0 0
      %207 = vmatprep.subr.bf16.mxu0 0
      %208 = vmatpush1.bf16.msra.mxu0 0
      %209 = vmatprep.subr.bf16.mxu0 0
      %210 = vmatpush1.bf16.msra.mxu0 0
      %211 = vmatprep.subr.bf16.mxu0 0
      %212 = vmatpush1.bf16.msra.mxu0 0
      %213 = vmatprep.subr.bf16.mxu0 0
      %214 = vmatpush1.bf16.msra.mxu0 0
      %215 = vmatprep.subr.bf16.mxu0 0
      %216 = vmatpush1.bf16.msra.mxu0 0
      %217 = vmatprep.subr.bf16.mxu0 0
      %218 = vmatpush1.bf16.msra.mxu0 0
      %219 = vmatprep.mubr.bf16.mxu0 0
      %220 = vmatmul.mubr.bf16.gmra.mrb[0].mxu0 %v181
      %v221 = vpop.f32.mrb[0].mxu0
      %v222 = vadd.f32 0.0, %v221
      %v223 = vpop.f32.mrb[0].mxu0
      %v224 = vpop.f32.mrb[0].mxu0
      %v225 = vpop.f32.mrb[0].mxu0
      %226 = vdwg.mxu0
      %227 = vrot.lane.b32.xlu0 %v114, 120
      %v228 = vpop.permute.xlu0 %227
      %229 = vrot.lane.b32.xlu0 %v114, 88
      %v230 = vpop.permute.xlu0 %229
      %v232 = vsel %vm118, %v228, 0
      %v235 = vsel %vm118, %v230, 0
      %237 = vmatprep.subr.bf16.mxu0 0
      %238 = vmatpush1.bf16.xpose.msra.mxu0 %v235
      %239 = vmatprep.subr.bf16.mxu0 0
      %240 = vmatpush1.bf16.xpose.msra.mxu0 0
      %241 = vmatprep.subr.bf16.mxu0 0
      %242 = vmatpush1.bf16.xpose.msra.mxu0 0
      %243 = vmatprep.subr.bf16.mxu0 0
      %244 = vmatpush1.bf16.xpose.msra.mxu0 0
      %245 = vmatprep.subr.bf16.mxu0 0
      %246 = vmatpush1.bf16.xpose.msra.mxu0 0
      %247 = vmatprep.subr.bf16.mxu0 0
      %248 = vmatpush1.bf16.xpose.msra.mxu0 0
      %249 = vmatprep.subr.bf16.mxu0 0
      %250 = vmatpush1.bf16.xpose.msra.mxu0 0
      %251 = vmatprep.subr.bf16.mxu0 0
      %252 = vmatpush1.bf16.xpose.msra.mxu0 0
      %253 = vmatprep.subr.bf16.mxu0 0
      %254 = vmatpush1.bf16.xpose.msra.mxu0 0
      %255 = vmatprep.subr.bf16.mxu0 0
      %256 = vmatpush1.bf16.xpose.msra.mxu0 0
      %257 = vmatprep.subr.bf16.mxu0 0
      %258 = vmatpush1.bf16.xpose.msra.mxu0 0
      %259 = vmatprep.subr.bf16.mxu0 0
      %260 = vmatpush1.bf16.xpose.msra.mxu0 0
      %261 = vmatprep.subr.bf16.mxu0 0
      %262 = vmatpush1.bf16.xpose.msra.mxu0 0
      %263 = vmatprep.subr.bf16.mxu0 0
      %264 = vmatpush1.bf16.xpose.msra.mxu0 0
      %265 = vmatprep.subr.bf16.mxu0 0
      %266 = vmatpush1.bf16.xpose.msra.mxu0 0
      %267 = vmatprep.subr.bf16.mxu0 0
      %268 = vmatpush1.bf16.xpose.msra.mxu0 0
      %269 = vmatprep.mubr.bf16.mxu0 0
      %270 = vmatmul.mubr.bf16.gmra.mrb[0].mxu0 %v232
      %v271 = vpop.f32.mrb[0].mxu0
      %v272 = vadd.f32 0.0, %v271
      %v273 = vpop.f32.mrb[0].mxu0
      %v274 = vpop.f32.mrb[0].mxu0
      %v275 = vpop.f32.mrb[0].mxu0
      %276 = vdwg.mxu0
      %v277 = vmul.f32 %v272, 0.35355338
      %v278 = vsel %vm118, %v277, -inf
      %279 = vmax.xlane.f32.xlu0 %v278
      %v280 = vpop.xlane.xlu0 %279
      %v281 = vsub.f32 %v277, %v280
      %v282 = vmul.f32 %v281, 1.442695
      %v283 = vpow.pop %v282
      %v284 = vsel %vm118, %v283, 0.0
      %285 = vadd.xlane.f32.xlu0 %v284
      %v286 = vpop.xlane.xlu0 %285
      %v287 = vrcp.pop %v286
      %v288 = vmul.f32 %v283, %v287
      %v289 = vpack.c.bf16 %v288, %v288
      %290 = vrot.lane.b32.xlu0 %v114, 56
      %v291 = vpop.permute.xlu0 %290
      %v293 = vsel %vm118, %v289, 0
      %v296 = vsel %vm183, %v291, 0
      %298 = vmatprep.subr.bf16.mxu0 0
      %299 = vmatpush1.bf16.msra.mxu0 %v296
      %300 = vmatprep.subr.bf16.mxu0 0
      %301 = vmatpush1.bf16.msra.mxu0 0
      %302 = vmatprep.subr.bf16.mxu0 0
      %303 = vmatpush1.bf16.msra.mxu0 0
      %304 = vmatprep.subr.bf16.mxu0 0
      %305 = vmatpush1.bf16.msra.mxu0 0
      %306 = vmatprep.subr.bf16.mxu0 0
      %307 = vmatpush1.bf16.msra.mxu0 0
      %308 = vmatprep.subr.bf16.mxu0 0
      %309 = vmatpush1.bf16.msra.mxu0 0
      %310 = vmatprep.subr.bf16.mxu0 0
      %311 = vmatpush1.bf16.msra.mxu0 0
      %312 = vmatprep.subr.bf16.mxu0 0
      %313 = vmatpush1.bf16.msra.mxu0 0
      %314 = vmatprep.subr.bf16.mxu0 0
      %315 = vmatpush1.bf16.msra.mxu0 0
      %316 = vmatprep.subr.bf16.mxu0 0
      %317 = vmatpush1.bf16.msra.mxu0 0
      %318 = vmatprep.subr.bf16.mxu0 0
      %319 = vmatpush1.bf16.msra.mxu0 0
      %320 = vmatprep.subr.bf16.mxu0 0
      %321 = vmatpush1.bf16.msra.mxu0 0
      %322 = vmatprep.subr.bf16.mxu0 0
      %323 = vmatpush1.bf16.msra.mxu0 0
      %324 = vmatprep.subr.bf16.mxu0 0
      %325 = vmatpush1.bf16.msra.mxu0 0
      %326 = vmatprep.subr.bf16.mxu0 0
      %327 = vmatpush1.bf16.msra.mxu0 0
      %328 = vmatprep.subr.bf16.mxu0 0
      %329 = vmatpush1.bf16.msra.mxu0 0
      %330 = vmatprep.mubr.bf16.mxu0 0
      %331 = vmatmul.mubr.bf16.gmra.mrb[0].mxu0 %v293
      %v332 = vpop.f32.mrb[0].mxu0
      %v333 = vadd.f32 0.0, %v332
      %v334 = vpop.f32.mrb[0].mxu0
      %v335 = vpop.f32.mrb[0].mxu0
      %v336 = vpop.f32.mrb[0].mxu0
      %337 = vdwg.mxu0
      %338 = vrot.lane.b32.xlu0 %v114, 112
      %v339 = vpop.permute.xlu0 %338
      %340 = vrot.lane.b32.xlu0 %v114, 80
      %v341 = vpop.permute.xlu0 %340
      %v343 = vsel %vm118, %v339, 0
      %v346 = vsel %vm118, %v341, 0
      %348 = vmatprep.subr.bf16.mxu0 0
      %349 = vmatpush1.bf16.xpose.msra.mxu0 %v346
      %350 = vmatprep.subr.bf16.mxu0 0
      %351 = vmatpush1.bf16.xpose.msra.mxu0 0
      %352 = vmatprep.subr.bf16.mxu0 0
      %353 = vmatpush1.bf16.xpose.msra.mxu0 0
      %354 = vmatprep.subr.bf16.mxu0 0
      %355 = vmatpush1.bf16.xpose.msra.mxu0 0
      %356 = vmatprep.subr.bf16.mxu0 0
      %357 = vmatpush1.bf16.xpose.msra.mxu0 0
      %358 = vmatprep.subr.bf16.mxu0 0
      %359 = vmatpush1.bf16.xpose.msra.mxu0 0
      %360 = vmatprep.subr.bf16.mxu0 0
      %361 = vmatpush1.bf16.xpose.msra.mxu0 0
      %362 = vmatprep.subr.bf16.mxu0 0
      %363 = vmatpush1.bf16.xpose.msra.mxu0 0
      %364 = vmatprep.subr.bf16.mxu0 0
      %365 = vmatpush1.bf16.xpose.msra.mxu0 0
      %366 = vmatprep.subr.bf16.mxu0 0
      %367 = vmatpush1.bf16.xpose.msra.mxu0 0
      %368 = vmatprep.subr.bf16.mxu0 0
      %369 = vmatpush1.bf16.xpose.msra.mxu0 0
      %370 = vmatprep.subr.bf16.mxu0 0
      %371 = vmatpush1.bf16.xpose.msra.mxu0 0
      %372 = vmatprep.subr.bf16.mxu0 0
      %373 = vmatpush1.bf16.xpose.msra.mxu0 0
      %374 = vmatprep.subr.bf16.mxu0 0
      %375 = vmatpush1.bf16.xpose.msra.mxu0 0
      %376 = vmatprep.subr.bf16.mxu0 0
      %377 = vmatpush1.bf16.xpose.msra.mxu0 0
      %378 = vmatprep.subr.bf16.mxu0 0
      %379 = vmatpush1.bf16.xpose.msra.mxu0 0
      %380 = vmatprep.mubr.bf16.mxu0 0
      %381 = vmatmul.mubr.bf16.gmra.mrb[0].mxu0 %v343
      %v382 = vpop.f32.mrb[0].mxu0
      %v383 = vadd.f32 0.0, %v382
      %v384 = vpop.f32.mrb[0].mxu0
      %v385 = vpop.f32.mrb[0].mxu0
      %v386 = vpop.f32.mrb[0].mxu0
      %387 = vdwg.mxu0
      %v388 = vmul.f32 %v383, 0.35355338
      %v389 = vsel %vm118, %v388, -inf
      %390 = vmax.xlane.f32.xlu0 %v389
      %v391 = vpop.xlane.xlu0 %390
      %v392 = vsub.f32 %v388, %v391
      %v393 = vmul.f32 %v392, 1.442695
      %v394 = vpow.pop %v393
      %v395 = vsel %vm118, %v394, 0.0
      %396 = vadd.xlane.f32.xlu0 %v395
      %v397 = vpop.xlane.xlu0 %396
      %v398 = vrcp.pop %v397
      %v399 = vmul.f32 %v394, %v398
      %v400 = vpack.c.bf16 %v399, %v399
      %401 = vrot.lane.b32.xlu0 %v114, 48
      %v402 = vpop.permute.xlu0 %401
      %v404 = vsel %vm118, %v400, 0
      %v407 = vsel %vm183, %v402, 0
      %409 = vmatprep.subr.bf16.mxu0 0
      %410 = vmatpush1.bf16.msra.mxu0 %v407
      %411 = vmatprep.subr.bf16.mxu0 0
      %412 = vmatpush1.bf16.msra.mxu0 0
      %413 = vmatprep.subr.bf16.mxu0 0
      %414 = vmatpush1.bf16.msra.mxu0 0
      %415 = vmatprep.subr.bf16.mxu0 0
      %416 = vmatpush1.bf16.msra.mxu0 0
      %417 = vmatprep.subr.bf16.mxu0 0
      %418 = vmatpush1.bf16.msra.mxu0 0
      %419 = vmatprep.subr.bf16.mxu0 0
      %420 = vmatpush1.bf16.msra.mxu0 0
      %421 = vmatprep.subr.bf16.mxu0 0
      %422 = vmatpush1.bf16.msra.mxu0 0
      %423 = vmatprep.subr.bf16.mxu0 0
      %424 = vmatpush1.bf16.msra.mxu0 0
      %425 = vmatprep.subr.bf16.mxu0 0
      %426 = vmatpush1.bf16.msra.mxu0 0
      %427 = vmatprep.subr.bf16.mxu0 0
      %428 = vmatpush1.bf16.msra.mxu0 0
      %429 = vmatprep.subr.bf16.mxu0 0
      %430 = vmatpush1.bf16.msra.mxu0 0
      %431 = vmatprep.subr.bf16.mxu0 0
      %432 = vmatpush1.bf16.msra.mxu0 0
      %433 = vmatprep.subr.bf16.mxu0 0
      %434 = vmatpush1.bf16.msra.mxu0 0
      %435 = vmatprep.subr.bf16.mxu0 0
      %436 = vmatpush1.bf16.msra.mxu0 0
      %437 = vmatprep.subr.bf16.mxu0 0
      %438 = vmatpush1.bf16.msra.mxu0 0
      %439 = vmatprep.subr.bf16.mxu0 0
      %440 = vmatpush1.bf16.msra.mxu0 0
      %441 = vmatprep.mubr.bf16.mxu0 0
      %442 = vmatmul.mubr.bf16.gmra.mrb[0].mxu0 %v404
      %v443 = vpop.f32.mrb[0].mxu0
      %v444 = vadd.f32 0.0, %v443
      %v445 = vpop.f32.mrb[0].mxu0
      %v446 = vpop.f32.mrb[0].mxu0
      %v447 = vpop.f32.mrb[0].mxu0
      %448 = vdwg.mxu0
      %449 = vrot.lane.b32.xlu0 %v114, 104
      %v450 = vpop.permute.xlu0 %449
      %451 = vrot.lane.b32.xlu0 %v114, 72
      %v452 = vpop.permute.xlu0 %451
      %v454 = vsel %vm118, %v450, 0
      %v457 = vsel %vm118, %v452, 0
      %459 = vmatprep.subr.bf16.mxu0 0
      %460 = vmatpush1.bf16.xpose.msra.mxu0 %v457
      %461 = vmatprep.subr.bf16.mxu0 0
      %462 = vmatpush1.bf16.xpose.msra.mxu0 0
      %463 = vmatprep.subr.bf16.mxu0 0
      %464 = vmatpush1.bf16.xpose.msra.mxu0 0
      %465 = vmatprep.subr.bf16.mxu0 0
      %466 = vmatpush1.bf16.xpose.msra.mxu0 0
      %467 = vmatprep.subr.bf16.mxu0 0
      %468 = vmatpush1.bf16.xpose.msra.mxu0 0
      %469 = vmatprep.subr.bf16.mxu0 0
      %470 = vmatpush1.bf16.xpose.msra.mxu0 0
      %471 = vmatprep.subr.bf16.mxu0 0
      %472 = vmatpush1.bf16.xpose.msra.mxu0 0
      %473 = vmatprep.subr.bf16.mxu0 0
      %474 = vmatpush1.bf16.xpose.msra.mxu0 0
      %475 = vmatprep.subr.bf16.mxu0 0
      %476 = vmatpush1.bf16.xpose.msra.mxu0 0
      %477 = vmatprep.subr.bf16.mxu0 0
      %478 = vmatpush1.bf16.xpose.msra.mxu0 0
      %479 = vmatprep.subr.bf16.mxu0 0
      %480 = vmatpush1.bf16.xpose.msra.mxu0 0
      %481 = vmatprep.subr.bf16.mxu0 0
      %482 = vmatpush1.bf16.xpose.msra.mxu0 0
      %483 = vmatprep.subr.bf16.mxu0 0
      %484 = vmatpush1.bf16.xpose.msra.mxu0 0
      %485 = vmatprep.subr.bf16.mxu0 0
      %486 = vmatpush1.bf16.xpose.msra.mxu0 0
      %487 = vmatprep.subr.bf16.mxu0 0
      %488 = vmatpush1.bf16.xpose.msra.mxu0 0
      %489 = vmatprep.subr.bf16.mxu0 0
      %490 = vmatpush1.bf16.xpose.msra.mxu0 0
      %491 = vmatprep.mubr.bf16.mxu0 0
      %492 = vmatmul.mubr.bf16.gmra.mrb[0].mxu0 %v454
      %v493 = vpop.f32.mrb[0].mxu0
      %v494 = vadd.f32 0.0, %v493
      %v495 = vpop.f32.mrb[0].mxu0
      %v496 = vpop.f32.mrb[0].mxu0
      %v497 = vpop.f32.mrb[0].mxu0
      %498 = vdwg.mxu0
      %v499 = vmul.f32 %v494, 0.35355338
      %v500 = vsel %vm118, %v499, -inf
      %501 = vmax.xlane.f32.xlu0 %v500
      %v502 = vpop.xlane.xlu0 %501
      %v503 = vsub.f32 %v499, %v502
      %v504 = vmul.f32 %v503, 1.442695
      %v505 = vpow.pop %v504
      %v506 = vsel %vm118, %v505, 0.0
      %507 = vadd.xlane.f32.xlu0 %v506
      %v508 = vpop.xlane.xlu0 %507
      %v509 = vrcp.pop %v508
      %v510 = vmul.f32 %v505, %v509
      %v511 = vpack.c.bf16 %v510, %v510
      %512 = vrot.lane.b32.xlu0 %v114, 40
      %v513 = vpop.permute.xlu0 %512
      %v515 = vsel %vm118, %v511, 0
      %v518 = vsel %vm183, %v513, 0
      %520 = vmatprep.subr.bf16.mxu0 0
      %521 = vmatpush1.bf16.msra.mxu0 %v518
      %522 = vmatprep.subr.bf16.mxu0 0
      %523 = vmatpush1.bf16.msra.mxu0 0
      %524 = vmatprep.subr.bf16.mxu0 0
      %525 = vmatpush1.bf16.msra.mxu0 0
      %526 = vmatprep.subr.bf16.mxu0 0
      %527 = vmatpush1.bf16.msra.mxu0 0
      %528 = vmatprep.subr.bf16.mxu0 0
      %529 = vmatpush1.bf16.msra.mxu0 0
      %530 = vmatprep.subr.bf16.mxu0 0
      %531 = vmatpush1.bf16.msra.mxu0 0
      %532 = vmatprep.subr.bf16.mxu0 0
      %533 = vmatpush1.bf16.msra.mxu0 0
      %534 = vmatprep.subr.bf16.mxu0 0
      %535 = vmatpush1.bf16.msra.mxu0 0
      %536 = vmatprep.subr.bf16.mxu0 0
      %537 = vmatpush1.bf16.msra.mxu0 0
      %538 = vmatprep.subr.bf16.mxu0 0
      %539 = vmatpush1.bf16.msra.mxu0 0
      %540 = vmatprep.subr.bf16.mxu0 0
      %541 = vmatpush1.bf16.msra.mxu0 0
      %542 = vmatprep.subr.bf16.mxu0 0
      %543 = vmatpush1.bf16.msra.mxu0 0
      %544 = vmatprep.subr.bf16.mxu0 0
      %545 = vmatpush1.bf16.msra.mxu0 0
      %546 = vmatprep.subr.bf16.mxu0 0
      %547 = vmatpush1.bf16.msra.mxu0 0
      %548 = vmatprep.subr.bf16.mxu0 0
      %549 = vmatpush1.bf16.msra.mxu0 0
      %550 = vmatprep.subr.bf16.mxu0 0
      %551 = vmatpush1.bf16.msra.mxu0 0
      %552 = vmatprep.mubr.bf16.mxu0 0
      %553 = vmatmul.mubr.bf16.gmra.mrb[0].mxu0 %v515
      %v554 = vpop.f32.mrb[0].mxu0
      %v555 = vadd.f32 0.0, %v554
      %v556 = vpop.f32.mrb[0].mxu0
      %v557 = vpop.f32.mrb[0].mxu0
      %v558 = vpop.f32.mrb[0].mxu0
      %559 = vdwg.mxu0
      %561 = vrot.lane.b32.xlu0 %v333, 8
      %v562 = vpop.permute.xlu0 %561
      %565 = vrot.lane.b32.xlu0 %v444, 16
      %v566 = vpop.permute.xlu0 %565
      %569 = vrot.lane.b32.xlu0 %v555, 24
      %v570 = vpop.permute.xlu0 %569
      %v572 = vsel %vm118, %v222, %v562
      %vm573 = vcmask 130048
      %v574 = vsel %vm573, %v572, %v566
      %vm575 = vcmask 195584
      %v576 = vsel %vm575, %v574, %v570
      %vm577 = vcmask 261120
      %578 = vst.msk [vmem:[%s111] sm:$0xff] %vm577, %v576
      %p579 = scmp.lt.s32.totalorder %s12, 1
      %s580 = scalar_select %p579, %s12, 1
      %s581 = smul.addr %s580, 8
      %s582 = scalar_lea.vmem %s1, %s581
      // Predicated region
      $region25: #{mon_mothma_forward.40} parent=23 // pred_check
        %p583 = pneg %p56
      $region26: #{mon_mothma_forward.40} parent=23 // pred_check_branch
        %585 = sbr.rel (%p583) target = $region28
      $region27: #{mon_mothma_forward.40} parent=23 // pred_region
        _
      $region28: #{mon_mothma_forward.40} parent=23 // pred_fallthru
        _
    $region24: #{mon_mothma_forward.40} parent=5 // pred_fallthru
      _
    %p586 = scmp.le.s32.totalorder 2, %s7
    // Predicated region
    $region29: #{mon_mothma_forward.40} parent=5 // pred_check
      %p587 = pneg %p586
    $region30: #{mon_mothma_forward.40} parent=5 // pred_check_branch
      %589 = sbr.rel (%p587) target = $region32
    $region31: #{mon_mothma_forward.40} parent=5 // pred_region
      %s590 = ssub.s32 %s7, 2
      // Predicated region
      $region33: #{mon_mothma_forward.40} parent=31 // pred_check
        %p591 = pneg %p62
      $region34: #{mon_mothma_forward.40} parent=31 // pred_check_branch
        %593 = sbr.rel (%p591) target = $region36
      $region35: #{mon_mothma_forward.40} parent=31 // pred_region
        %p594 = scmp.lt.s32.totalorder %s13, 1
        %s595 = scalar_select %p594, %s13, 1
        %s596 = smul.addr %s595, 8
        %s597 = scalar_lea.vmem %s1, %s596
      $region36: #{mon_mothma_forward.40} parent=31 // pred_fallthru
        _
    $region32: #{mon_mothma_forward.40} parent=5 // pred_fallthru
      _
  $region6: #{mon_mothma_forward.40} parent=0 // loop_footer
    %s11 = sadd.s32 1, %s7
  $region7: #{mon_mothma_forward.40} parent=0 // loop_footer_branch
    %6 = sbr.rel target = $region3
  $region8: #{mon_mothma_forward.40} parent=0 // loop_exit
    _

// kernel: mon_mothma_forward.59
$region0: #{mon_mothma_forward.59}
  #allocation0 [shape = 'u32[]', space=smem, size = 0x4, offset = 0x4, fixed_abs, tag = 'smem constant byte address 0x4 - core index']
  #allocation1 [shape = 'u32[144,128]{1,0:T(1,128)}', space=vmem, size = 0x12000, scoped, tag = 'internal scratch']
  %s0 = inlined_call_operand.vmem [shape: f32[2,8,32], index: 0, kind: input, shape index: {}]
  %s1 = inlined_call_operand.vmem [shape: f32[2,8,64], index: 1, kind: input, shape index: {}]
  %s2 = inlined_call_operand.vmem [shape: f32[2,8,32], index: 2, kind: output, shape index: {}]
  %s3 = sld [smem:[#allocation0]]
  $region41: #{mon_mothma_forward.59} parent=0
    _
  %s5 = ssub.s32 1, %s3
  %s6 = scalar_select 0, %s5, %s3
  loop: start=0, step=1, limit=4
  $region2: #{mon_mothma_forward.59} parent=0 // loop_pre_header
    _
  $region3: #{mon_mothma_forward.59} parent=0 // loop_header
    %s8 = sphi 0, %s12
    %p9 = scmp.ge.s32.totalorder %s8, 4
    %s18 = sphi 0, %s20
    %s21 = sphi 0, %s18
    %s22 = sphi 0, %s21
    %s38 = sphi 0, %s22
    %s44 = sphi 0, %s46
    %s47 = sphi 0, %s44
    %s48 = sphi 0, %s47
    %s64 = sphi 0, %s48
    %s70 = sphi 0, %s72
    %s73 = sphi 0, %s70
    %s74 = sphi 0, %s73
    %s90 = sphi 0, %s74
  $region4: #{mon_mothma_forward.59} parent=0 // loop_header_branch
    %11 = sbr.rel (%p9) target = $region8
  $region5: #{mon_mothma_forward.59} parent=0 // loop_body
    %s13 = ssub.s32 %s8, 1
    %s14 = ssub.s32 %s8, 2
    %s15 = sadd.s32 %s8, 1
    %s16 = ssub.s32 %s8, %s15
    %p17 = scmp.eq.s32.totalorder %s16, 0
    %s19 = sadd.s32 %s18, 1
    %s20 = scalar_select %p17, %s18, %s19
    %p23 = pneg %p17
    %p24 = scmp.eq.s32.totalorder %s8, 1
    %p25 = por %p23, %p24
    %p26 = scmp.ne.s32.totalorder %s18, %s21
    %p27 = scmp.eq.s32.totalorder %s8, 0
    %p28 = por %p26, %p27
    %p29 = scmp.ne.s32.totalorder %s18, %s21
    %p30 = scmp.eq.s32.totalorder %s13, 1
    %p31 = por %p29, %p30
    %p32 = scmp.ne.s32.totalorder %s21, %s22
    %p33 = scmp.eq.s32.totalorder %s13, 0
    %p34 = por %p32, %p33
    %p35 = scmp.ne.s32.totalorder %s21, %s22
    %p36 = scmp.eq.s32.totalorder %s14, 1
    %p37 = por %p35, %p36
    %p39 = scmp.ne.s32.totalorder %s22, %s38
    %p40 = scmp.eq.s32.totalorder %s14, 0
    %p41 = por %p39, %p40
    %s42 = ssub.s32 %s8, %s15
    %p43 = scmp.eq.s32.totalorder %s42, 0
    %s45 = sadd.s32 %s44, 1
    %s46 = scalar_select %p43, %s44, %s45
    %p49 = pneg %p43
    %p50 = scmp.eq.s32.totalorder %s8, 1
    %p51 = por %p49, %p50
    %p52 = scmp.ne.s32.totalorder %s44, %s47
    %p53 = scmp.eq.s32.totalorder %s8, 0
    %p54 = por %p52, %p53
    %p55 = scmp.ne.s32.totalorder %s44, %s47
    %p56 = scmp.eq.s32.totalorder %s13, 1
    %p57 = por %p55, %p56
    %p58 = scmp.ne.s32.totalorder %s47, %s48
    %p59 = scmp.eq.s32.totalorder %s13, 0
    %p60 = por %p58, %p59
    %p61 = scmp.ne.s32.totalorder %s47, %s48
    %p62 = scmp.eq.s32.totalorder %s14, 1
    %p63 = por %p61, %p62
    %p65 = scmp.ne.s32.totalorder %s48, %s64
    %p66 = scmp.eq.s32.totalorder %s14, 0
    %p67 = por %p65, %p66
    %s68 = ssub.s32 %s8, %s15
    %p69 = scmp.eq.s32.totalorder %s68, 0
    %s71 = sadd.s32 %s70, 1
    %s72 = scalar_select %p69, %s70, %s71
    %p75 = pneg %p69
    %p76 = scmp.eq.s32.totalorder %s8, 1
    %p77 = por %p75, %p76
    %p78 = scmp.ne.s32.totalorder %s70, %s73
    %p79 = scmp.eq.s32.totalorder %s8, 0
    %p80 = por %p78, %p79
    %p81 = scmp.ne.s32.totalorder %s70, %s73
    %p82 = scmp.eq.s32.totalorder %s13, 1
    %p83 = por %p81, %p82
    %p84 = scmp.ne.s32.totalorder %s73, %s74
    %p85 = scmp.eq.s32.totalorder %s13, 0
    %p86 = por %p84, %p85
    %p87 = scmp.ne.s32.totalorder %s73, %s74
    %p88 = scmp.eq.s32.totalorder %s14, 1
    %p89 = por %p87, %p88
    %p91 = scmp.ne.s32.totalorder %s74, %s90
    %p92 = scmp.eq.s32.totalorder %s14, 0
    %p93 = por %p91, %p92
    %p94 = scmp.le.s32.totalorder 1, %s8
    %p95 = scmp.lt.s32.totalorder %s8, 3
    %p96 = pnand %p94, %p95
    %p97 = pneg %p96
    // Predicated region
    $region9: #{mon_mothma_forward.59} parent=5 // pred_check
      _
    $region10: #{mon_mothma_forward.59} parent=5 // pred_check_branch
      %99 = sbr.rel (%p96) target = $region12
    $region11: #{mon_mothma_forward.59} parent=5 // pred_region
      %s100 = ssub.s32 %s8, 1
    $region12: #{mon_mothma_forward.59} parent=5 // pred_fallthru
      _
    %p101 = scmp.lt.s32.totalorder %s8, 2
    // Predicated region
    $region13: #{mon_mothma_forward.59} parent=5 // pred_check
      %p102 = pneg %p101
    $region14: #{mon_mothma_forward.59} parent=5 // pred_check_branch
      %104 = sbr.rel (%p102) target = $region16
    $region15: #{mon_mothma_forward.59} parent=5 // pred_region
      // Predicated region
      $region17: #{mon_mothma_forward.59} parent=15 // pred_check
        %p105 = pneg %p28
      $region18: #{mon_mothma_forward.59} parent=15 // pred_check_branch
        %107 = sbr.rel (%p105) target = $region20
      $region19: #{mon_mothma_forward.59} parent=15 // pred_region
        %p108 = scmp.lt.s32.totalorder %s8, 1
        %s109 = scalar_select %p108, %s8, 1
        %s110 = smul.addr %s109, 8
        %s111 = scalar_lea.vmem %s0, %s110
      $region20: #{mon_mothma_forward.59} parent=15 // pred_fallthru
        _
      // Predicated region
      $region21: #{mon_mothma_forward.59} parent=15 // pred_check
        %p112 = pneg %p54
      $region22: #{mon_mothma_forward.59} parent=15 // pred_check_branch
        %114 = sbr.rel (%p112) target = $region24
      $region23: #{mon_mothma_forward.59} parent=15 // pred_region
        %p115 = scmp.lt.s32.totalorder %s8, 1
        %s116 = scalar_select %p115, %s8, 1
        %s117 = smul.addr %s116, 8
        %s118 = scalar_lea.vmem %s1, %s117
      $region24: #{mon_mothma_forward.59} parent=15 // pred_fallthru
        _
    $region16: #{mon_mothma_forward.59} parent=5 // pred_fallthru
      _
    %p119 = scmp.le.s32.totalorder 1, %s8
    %p120 = scmp.lt.s32.totalorder %s8, 3
    %p121 = pnand %p119, %p120
    %p122 = pneg %p121
    // Predicated region
    $region25: #{mon_mothma_forward.59} parent=5 // pred_check
      _
    $region26: #{mon_mothma_forward.59} parent=5 // pred_check_branch
      %124 = sbr.rel (%p121) target = $region28
    $region27: #{mon_mothma_forward.59} parent=5 // pred_region
      %s125 = ssub.s32 %s8, 1
      %p126 = scmp.lt.s32.totalorder %s13, 1
      %s127 = scalar_select %p126, %s13, 1
      %s128 = smul.addr %s127, 8
      %s129 = scalar_lea.vmem %s0, %s128
      %p130 = pneg %p34
      %p131 = pneg %p31
      %p132 = scmp.lt.s32.totalorder %s13, 1
      %s133 = scalar_select %p132, %s13, 1
      %s134 = smul.addr %s133, 8
      %s135 = scalar_lea.vmem %s1, %s134
      %p136 = pneg %p60
      %p137 = pneg %p57
      %p138 = pneg %p86
      %p139 = pneg %p83
      %p140 = scmp.lt.s32.totalorder %s13, 1
      %s141 = scalar_select %p140, %s13, 1
      %s142 = smul.addr %s141, 8
      %s143 = scalar_lea.vmem %s2, %s142
      %p144 = scmp.lt.s32.totalorder %s13, 1
      %s145 = scalar_select %p144, %s13, 1
      %s146 = smul.addr %s145, 8
      %s147 = scalar_lea.vmem %s0, %s146
      %p148 = scmp.lt.s32.totalorder %s13, 1
      %s149 = scalar_select %p148, %s13, 1
      %s150 = smul.addr %s149, 8
      %s151 = scalar_lea.vmem %s1, %s150
      %p152 = scmp.lt.s32.totalorder %s13, 1
      %s153 = scalar_select %p152, %s13, 1
      %s154 = smul.addr %s153, 8
      %s155 = scalar_lea.vmem %s2, %s154
      %v157 = vld [vmem:[%s147] sm:$0xff]
      %v158 = vld [vmem:[%s151] sm:$0xff]
      %v159 = vpack.c.bf16 %v157, %v157
      %v160 = vpack.c.bf16 %v158, %v158
      %vm161 = vcmask 64512
      %v163 = vsel %vm161, %v159, 0
      %v166 = vsel %vm161, %v160, 0
      %168 = vmatprep.subr.bf16.mxu0 0
      %169 = vmatpush1.bf16.xpose.msra.mxu0 %v166
      %170 = vmatprep.subr.bf16.mxu0 0
      %171 = vmatpush1.bf16.xpose.msra.mxu0 0
      %172 = vmatprep.subr.bf16.mxu0 0
      %173 = vmatpush1.bf16.xpose.msra.mxu0 0
      %174 = vmatprep.subr.bf16.mxu0 0
      %175 = vmatpush1.bf16.xpose.msra.mxu0 0
      %176 = vmatprep.subr.bf16.mxu0 0
      %177 = vmatpush1.bf16.xpose.msra.mxu0 0
      %178 = vmatprep.subr.bf16.mxu0 0
      %179 = vmatpush1.bf16.xpose.msra.mxu0 0
      %180 = vmatprep.subr.bf16.mxu0 0
      %181 = vmatpush1.bf16.xpose.msra.mxu0 0
      %182 = vmatprep.subr.bf16.mxu0 0
      %183 = vmatpush1.bf16.xpose.msra.mxu0 0
      %184 = vmatprep.subr.bf16.mxu0 0
      %185 = vmatpush1.bf16.xpose.msra.mxu0 0
      %186 = vmatprep.subr.bf16.mxu0 0
      %187 = vmatpush1.bf16.xpose.msra.mxu0 0
      %188 = vmatprep.subr.bf16.mxu0 0
      %189 = vmatpush1.bf16.xpose.msra.mxu0 0
      %190 = vmatprep.subr.bf16.mxu0 0
      %191 = vmatpush1.bf16.xpose.msra.mxu0 0
      %192 = vmatprep.subr.bf16.mxu0 0
      %193 = vmatpush1.bf16.xpose.msra.mxu0 0
      %194 = vmatprep.subr.bf16.mxu0 0
      %195 = vmatpush1.bf16.xpose.msra.mxu0 0
      %196 = vmatprep.subr.bf16.mxu0 0
      %197 = vmatpush1.bf16.xpose.msra.mxu0 0
      %198 = vmatprep.subr.bf16.mxu0 0
      %199 = vmatpush1.bf16.xpose.msra.mxu0 0
      %200 = vmatprep.mubr.bf16.mxu0 0
      %201 = vmatmul.mubr.bf16.gmra.mrb[0].mxu0 %v163
      %v202 = vpop.f32.mrb[0].mxu0
      %v203 = vadd.f32 0.0, %v202
      %v204 = vpop.f32.mrb[0].mxu0
      %v205 = vpop.f32.mrb[0].mxu0
      %v206 = vpop.f32.mrb[0].mxu0
      %207 = vdwg.mxu0
      %v208 = vmul.f32 %v203, 0.35355338
      %v209 = vsel %vm161, %v208, -inf
      %210 = vmax.xlane.f32.xlu0 %v209
      %v211 = vpop.xlane.xlu0 %210
      %v212 = vsub.f32 %v208, %v211
      %v213 = vmul.f32 %v212, 1.442695
      %v214 = vpow.pop %v213
      %v215 = vsel %vm161, %v214, 0.0
      %216 = vadd.xlane.f32.xlu0 %v215
      %v217 = vpop.xlane.xlu0 %216
      %v218 = vrcp.pop %v217
      %v219 = vmul.f32 %v214, %v218
      %v220 = vpack.c.bf16 %v219, %v219
      %222 = vrot.lane.b32.xlu0 %v160, 96
      %v223 = vpop.permute.xlu0 %222
      %v225 = vsel %vm161, %v220, 0
      %vm227 = vcmask 1043456
      %v229 = vsel %vm227, %v223, 0
      %231 = vmatprep.subr.bf16.mxu0 0
      %232 = vmatpush1.bf16.msra.mxu0 %v229
      %233 = vmatprep.subr.bf16.mxu0 0
      %234 = vmatpush1.bf16.msra.mxu0 0
      %235 = vmatprep.subr.bf16.mxu0 0
      %236 = vmatpush1.bf16.msra.mxu0 0
      %237 = vmatprep.subr.bf16.mxu0 0
      %238 = vmatpush1.bf16.msra.mxu0 0
      %239 = vmatprep.subr.bf16.mxu0 0
      %240 = vmatpush1.bf16.msra.mxu0 0
      %241 = vmatprep.subr.bf16.mxu0 0
      %242 = vmatpush1.bf16.msra.mxu0 0
      %243 = vmatprep.subr.bf16.mxu0 0
      %244 = vmatpush1.bf16.msra.mxu0 0
      %245 = vmatprep.subr.bf16.mxu0 0
      %246 = vmatpush1.bf16.msra.mxu0 0
      %247 = vmatprep.subr.bf16.mxu0 0
      %248 = vmatpush1.bf16.msra.mxu0 0
      %249 = vmatprep.subr.bf16.mxu0 0
      %250 = vmatpush1.bf16.msra.mxu0 0
      %251 = vmatprep.subr.bf16.mxu0 0
      %252 = vmatpush1.bf16.msra.mxu0 0
      %253 = vmatprep.subr.bf16.mxu0 0
      %254 = vmatpush1.bf16.msra.mxu0 0
      %255 = vmatprep.subr.bf16.mxu0 0
      %256 = vmatpush1.bf16.msra.mxu0 0
      %257 = vmatprep.subr.bf16.mxu0 0
      %258 = vmatpush1.bf16.msra.mxu0 0
      %259 = vmatprep.subr.bf16.mxu0 0
      %260 = vmatpush1.bf16.msra.mxu0 0
      %261 = vmatprep.subr.bf16.mxu0 0
      %262 = vmatpush1.bf16.msra.mxu0 0
      %263 = vmatprep.mubr.bf16.mxu0 0
      %264 = vmatmul.mubr.bf16.gmra.mrb[0].mxu0 %v225
      %v265 = vpop.f32.mrb[0].mxu0
      %v266 = vadd.f32 0.0, %v265
      %v267 = vpop.f32.mrb[0].mxu0
      %v268 = vpop.f32.mrb[0].mxu0
      %v269 = vpop.f32.mrb[0].mxu0
      %270 = vdwg.mxu0
      %272 = vrot.lane.b32.xlu0 %v159, 120
      %v273 = vpop.permute.xlu0 %272
      %274 = vrot.lane.b32.xlu0 %v160, 120
      %v275 = vpop.permute.xlu0 %274
      %v277 = vsel %vm161, %v273, 0
      %v280 = vsel %vm161, %v275, 0
      %282 = vmatprep.subr.bf16.mxu0 0
      %283 = vmatpush1.bf16.xpose.msra.mxu0 %v280
      %284 = vmatprep.subr.bf16.mxu0 0
      %285 = vmatpush1.bf16.xpose.msra.mxu0 0
      %286 = vmatprep.subr.bf16.mxu0 0
      %287 = vmatpush1.bf16.xpose.msra.mxu0 0
      %288 = vmatprep.subr.bf16.mxu0 0
      %289 = vmatpush1.bf16.xpose.msra.mxu0 0
      %290 = vmatprep.subr.bf16.mxu0 0
      %291 = vmatpush1.bf16.xpose.msra.mxu0 0
      %292 = vmatprep.subr.bf16.mxu0 0
      %293 = vmatpush1.bf16.xpose.msra.mxu0 0
      %294 = vmatprep.subr.bf16.mxu0 0
      %295 = vmatpush1.bf16.xpose.msra.mxu0 0
      %296 = vmatprep.subr.bf16.mxu0 0
      %297 = vmatpush1.bf16.xpose.msra.mxu0 0
      %298 = vmatprep.subr.bf16.mxu0 0
      %299 = vmatpush1.bf16.xpose.msra.mxu0 0
      %300 = vmatprep.subr.bf16.mxu0 0
      %301 = vmatpush1.bf16.xpose.msra.mxu0 0
      %302 = vmatprep.subr.bf16.mxu0 0
      %303 = vmatpush1.bf16.xpose.msra.mxu0 0
      %304 = vmatprep.subr.bf16.mxu0 0
      %305 = vmatpush1.bf16.xpose.msra.mxu0 0
      %306 = vmatprep.subr.bf16.mxu0 0
      %307 = vmatpush1.bf16.xpose.msra.mxu0 0
      %308 = vmatprep.subr.bf16.mxu0 0
      %309 = vmatpush1.bf16.xpose.msra.mxu0 0
      %310 = vmatprep.subr.bf16.mxu0 0
      %311 = vmatpush1.bf16.xpose.msra.mxu0 0
      %312 = vmatprep.subr.bf16.mxu0 0
      %313 = vmatpush1.bf16.xpose.msra.mxu0 0
      %314 = vmatprep.mubr.bf16.mxu0 0
      %315 = vmatmul.mubr.bf16.gmra.mrb[0].mxu0 %v277
      %v316 = vpop.f32.mrb[0].mxu0
      %v317 = vadd.f32 0.0, %v316
      %v318 = vpop.f32.mrb[0].mxu0
      %v319 = vpop.f32.mrb[0].mxu0
      %v320 = vpop.f32.mrb[0].mxu0
      %321 = vdwg.mxu0
      %v322 = vmul.f32 %v317, 0.35355338
      %v323 = vsel %vm161, %v322, -inf
      %324 = vmax.xlane.f32.xlu0 %v323
      %v325 = vpop.xlane.xlu0 %324
      %v326 = vsub.f32 %v322, %v325
      %v327 = vmul.f32 %v326, 1.442695
      %v328 = vpow.pop %v327
      %v329 = vsel %vm161, %v328, 0.0
      %330 = vadd.xlane.f32.xlu0 %v329
      %v331 = vpop.xlane.xlu0 %330
      %v332 = vrcp.pop %v331
      %v333 = vmul.f32 %v328, %v332
      %v334 = vpack.c.bf16 %v333, %v333
      %335 = vrot.lane.b32.xlu0 %v160, 88
      %v336 = vpop.permute.xlu0 %335
      %v338 = vsel %vm161, %v334, 0
      %v341 = vsel %vm227, %v336, 0
      %343 = vmatprep.subr.bf16.mxu0 0
      %344 = vmatpush1.bf16.msra.mxu0 %v341
      %345 = vmatprep.subr.bf16.mxu0 0
      %346 = vmatpush1.bf16.msra.mxu0 0
      %347 = vmatprep.subr.bf16.mxu0 0
      %348 = vmatpush1.bf16.msra.mxu0 0
      %349 = vmatprep.subr.bf16.mxu0 0
      %350 = vmatpush1.bf16.msra.mxu0 0
      %351 = vmatprep.subr.bf16.mxu0 0
      %352 = vmatpush1.bf16.msra.mxu0 0
      %353 = vmatprep.subr.bf16.mxu0 0
      %354 = vmatpush1.bf16.msra.mxu0 0
      %355 = vmatprep.subr.bf16.mxu0 0
      %356 = vmatpush1.bf16.msra.mxu0 0
      %357 = vmatprep.subr.bf16.mxu0 0
      %358 = vmatpush1.bf16.msra.mxu0 0
      %359 = vmatprep.subr.bf16.mxu0 0
      %360 = vmatpush1.bf16.msra.mxu0 0
      %361 = vmatprep.subr.bf16.mxu0 0
      %362 = vmatpush1.bf16.msra.mxu0 0
      %363 = vmatprep.subr.bf16.mxu0 0
      %364 = vmatpush1.bf16.msra.mxu0 0
      %365 = vmatprep.subr.bf16.mxu0 0
      %366 = vmatpush1.bf16.msra.mxu0 0
      %367 = vmatprep.subr.bf16.mxu0 0
      %368 = vmatpush1.bf16.msra.mxu0 0
      %369 = vmatprep.subr.bf16.mxu0 0
      %370 = vmatpush1.bf16.msra.mxu0 0
      %371 = vmatprep.subr.bf16.mxu0 0
      %372 = vmatpush1.bf16.msra.mxu0 0
      %373 = vmatprep.subr.bf16.mxu0 0
      %374 = vmatpush1.bf16.msra.mxu0 0
      %375 = vmatprep.mubr.bf16.mxu0 0
      %376 = vmatmul.mubr.bf16.gmra.mrb[0].mxu0 %v338
      %v377 = vpop.f32.mrb[0].mxu0
      %v378 = vadd.f32 0.0, %v377
      %v379 = vpop.f32.mrb[0].mxu0
      %v380 = vpop.f32.mrb[0].mxu0
      %v381 = vpop.f32.mrb[0].mxu0
      %382 = vdwg.mxu0
      %383 = vrot.lane.b32.xlu0 %v159, 112
      %v384 = vpop.permute.xlu0 %383
      %385 = vrot.lane.b32.xlu0 %v160, 112
      %v386 = vpop.permute.xlu0 %385
      %v388 = vsel %vm161, %v384, 0
      %v391 = vsel %vm161, %v386, 0
      %393 = vmatprep.subr.bf16.mxu0 0
      %394 = vmatpush1.bf16.xpose.msra.mxu0 %v391
      %395 = vmatprep.subr.bf16.mxu0 0
      %396 = vmatpush1.bf16.xpose.msra.mxu0 0
      %397 = vmatprep.subr.bf16.mxu0 0
      %398 = vmatpush1.bf16.xpose.msra.mxu0 0
      %399 = vmatprep.subr.bf16.mxu0 0
      %400 = vmatpush1.bf16.xpose.msra.mxu0 0
      %401 = vmatprep.subr.bf16.mxu0 0
      %402 = vmatpush1.bf16.xpose.msra.mxu0 0
      %403 = vmatprep.subr.bf16.mxu0 0
      %404 = vmatpush1.bf16.xpose.msra.mxu0 0
      %405 = vmatprep.subr.bf16.mxu0 0
      %406 = vmatpush1.bf16.xpose.msra.mxu0 0
      %407 = vmatprep.subr.bf16.mxu0 0
      %408 = vmatpush1.bf16.xpose.msra.mxu0 0
      %409 = vmatprep.subr.bf16.mxu0 0
      %410 = vmatpush1.bf16.xpose.msra.mxu0 0
      %411 = vmatprep.subr.bf16.mxu0 0
      %412 = vmatpush1.bf16.xpose.msra.mxu0 0
      %413 = vmatprep.subr.bf16.mxu0 0
      %414 = vmatpush1.bf16.xpose.msra.mxu0 0
      %415 = vmatprep.subr.bf16.mxu0 0
      %416 = vmatpush1.bf16.xpose.msra.mxu0 0
      %417 = vmatprep.subr.bf16.mxu0 0
      %418 = vmatpush1.bf16.xpose.msra.mxu0 0
      %419 = vmatprep.subr.bf16.mxu0 0
      %420 = vmatpush1.bf16.xpose.msra.mxu0 0
      %421 = vmatprep.subr.bf16.mxu0 0
      %422 = vmatpush1.bf16.xpose.msra.mxu0 0
      %423 = vmatprep.subr.bf16.mxu0 0
      %424 = vmatpush1.bf16.xpose.msra.mxu0 0
      %425 = vmatprep.mubr.bf16.mxu0 0
      %426 = vmatmul.mubr.bf16.gmra.mrb[0].mxu0 %v388
      %v427 = vpop.f32.mrb[0].mxu0
      %v428 = vadd.f32 0.0, %v427
      %v429 = vpop.f32.mrb[0].mxu0
      %v430 = vpop.f32.mrb[0].mxu0
      %v431 = vpop.f32.mrb[0].mxu0
      %432 = vdwg.mxu0
      %v433 = vmul.f32 %v428, 0.35355338
      %v434 = vsel %vm161, %v433, -inf
      %435 = vmax.xlane.f32.xlu0 %v434
      %v436 = vpop.xlane.xlu0 %435
      %v437 = vsub.f32 %v433, %v436
      %v438 = vmul.f32 %v437, 1.442695
      %v439 = vpow.pop %v438
      %v440 = vsel %vm161, %v439, 0.0
      %441 = vadd.xlane.f32.xlu0 %v440
      %v442 = vpop.xlane.xlu0 %441
      %v443 = vrcp.pop %v442
      %v444 = vmul.f32 %v439, %v443
      %v445 = vpack.c.bf16 %v444, %v444
      %446 = vrot.lane.b32.xlu0 %v160, 80
      %v447 = vpop.permute.xlu0 %446
      %v449 = vsel %vm161, %v445, 0
      %v452 = vsel %vm227, %v447, 0
      %454 = vmatprep.subr.bf16.mxu0 0
      %455 = vmatpush1.bf16.msra.mxu0 %v452
      %456 = vmatprep.subr.bf16.mxu0 0
      %457 = vmatpush1.bf16.msra.mxu0 0
      %458 = vmatprep.subr.bf16.mxu0 0
      %459 = vmatpush1.bf16.msra.mxu0 0
      %460 = vmatprep.subr.bf16.mxu0 0
      %461 = vmatpush1.bf16.msra.mxu0 0
      %462 = vmatprep.subr.bf16.mxu0 0
      %463 = vmatpush1.bf16.msra.mxu0 0
      %464 = vmatprep.subr.bf16.mxu0 0
      %465 = vmatpush1.bf16.msra.mxu0 0
      %466 = vmatprep.subr.bf16.mxu0 0
      %467 = vmatpush1.bf16.msra.mxu0 0
      %468 = vmatprep.subr.bf16.mxu0 0
      %469 = vmatpush1.bf16.msra.mxu0 0
      %470 = vmatprep.subr.bf16.mxu0 0
      %471 = vmatpush1.bf16.msra.mxu0 0
      %472 = vmatprep.subr.bf16.mxu0 0
      %473 = vmatpush1.bf16.msra.mxu0 0
      %474 = vmatprep.subr.bf16.mxu0 0
      %475 = vmatpush1.bf16.msra.mxu0 0
      %476 = vmatprep.subr.bf16.mxu0 0
      %477 = vmatpush1.bf16.msra.mxu0 0
      %478 = vmatprep.subr.bf16.mxu0 0
      %479 = vmatpush1.bf16.msra.mxu0 0
      %480 = vmatprep.subr.bf16.mxu0 0
      %481 = vmatpush1.bf16.msra.mxu0 0
      %482 = vmatprep.subr.bf16.mxu0 0
      %483 = vmatpush1.bf16.msra.mxu0 0
      %484 = vmatprep.subr.bf16.mxu0 0
      %485 = vmatpush1.bf16.msra.mxu0 0
      %486 = vmatprep.mubr.bf16.mxu0 0
      %487 = vmatmul.mubr.bf16.gmra.mrb[0].mxu0 %v449
      %v488 = vpop.f32.mrb[0].mxu0
      %v489 = vadd.f32 0.0, %v488
      %v490 = vpop.f32.mrb[0].mxu0
      %v491 = vpop.f32.mrb[0].mxu0
      %v492 = vpop.f32.mrb[0].mxu0
      %493 = vdwg.mxu0
      %494 = vrot.lane.b32.xlu0 %v159, 104
      %v495 = vpop.permute.xlu0 %494
      %496 = vrot.lane.b32.xlu0 %v160, 104
      %v497 = vpop.permute.xlu0 %496
      %v499 = vsel %vm161, %v495, 0
      %v502 = vsel %vm161, %v497, 0
      %504 = vmatprep.subr.bf16.mxu0 0
      %505 = vmatpush1.bf16.xpose.msra.mxu0 %v502
      %506 = vmatprep.subr.bf16.mxu0 0
      %507 = vmatpush1.bf16.xpose.msra.mxu0 0
      %508 = vmatprep.subr.bf16.mxu0 0
      %509 = vmatpush1.bf16.xpose.msra.mxu0 0
      %510 = vmatprep.subr.bf16.mxu0 0
      %511 = vmatpush1.bf16.xpose.msra.mxu0 0
      %512 = vmatprep.subr.bf16.mxu0 0
      %513 = vmatpush1.bf16.xpose.msra.mxu0 0
      %514 = vmatprep.subr.bf16.mxu0 0
      %515 = vmatpush1.bf16.xpose.msra.mxu0 0
      %516 = vmatprep.subr.bf16.mxu0 0
      %517 = vmatpush1.bf16.xpose.msra.mxu0 0
      %518 = vmatprep.subr.bf16.mxu0 0
      %519 = vmatpush1.bf16.xpose.msra.mxu0 0
      %520 = vmatprep.subr.bf16.mxu0 0
      %521 = vmatpush1.bf16.xpose.msra.mxu0 0
      %522 = vmatprep.subr.bf16.mxu0 0
      %523 = vmatpush1.bf16.xpose.msra.mxu0 0
      %524 = vmatprep.subr.bf16.mxu0 0
      %525 = vmatpush1.bf16.xpose.msra.mxu0 0
      %526 = vmatprep.subr.bf16.mxu0 0
      %527 = vmatpush1.bf16.xpose.msra.mxu0 0
      %528 = vmatprep.subr.bf16.mxu0 0
      %529 = vmatpush1.bf16.xpose.msra.mxu0 0
      %530 = vmatprep.subr.bf16.mxu0 0
      %531 = vmatpush1.bf16.xpose.msra.mxu0 0
      %532 = vmatprep.subr.bf16.mxu0 0
      %533 = vmatpush1.bf16.xpose.msra.mxu0 0
      %534 = vmatprep.subr.bf16.mxu0 0
      %535 = vmatpush1.bf16.xpose.msra.mxu0 0
      %536 = vmatprep.mubr.bf16.mxu0 0
      %537 = vmatmul.mubr.bf16.gmra.mrb[0].mxu0 %v499
      %v538 = vpop.f32.mrb[0].mxu0
      %v539 = vadd.f32 0.0, %v538
      %v540 = vpop.f32.mrb[0].mxu0
      %v541 = vpop.f32.mrb[0].mxu0
      %v542 = vpop.f32.mrb[0].mxu0
      %543 = vdwg.mxu0
      %v544 = vmul.f32 %v539, 0.35355338
      %v545 = vsel %vm161, %v544, -inf
      %546 = vmax.xlane.f32.xlu0 %v545
      %v547 = vpop.xlane.xlu0 %546
      %v548 = vsub.f32 %v544, %v547
      %v549 = vmul.f32 %v548, 1.442695
      %v550 = vpow.pop %v549
      %v551 = vsel %vm161, %v550, 0.0
      %552 = vadd.xlane.f32.xlu0 %v551
      %v553 = vpop.xlane.xlu0 %552
      %v554 = vrcp.pop %v553
      %v555 = vmul.f32 %v550, %v554
      %v556 = vpack.c.bf16 %v555, %v555
      %557 = vrot.lane.b32.xlu0 %v160, 72
      %v558 = vpop.permute.xlu0 %557
      %v560 = vsel %vm161, %v556, 0
      %v563 = vsel %vm227, %v558, 0
      %565 = vmatprep.subr.bf16.mxu0 0
      %566 = vmatpush1.bf16.msra.mxu0 %v563
      %567 = vmatprep.subr.bf16.mxu0 0
      %568 = vmatpush1.bf16.msra.mxu0 0
      %569 = vmatprep.subr.bf16.mxu0 0
      %570 = vmatpush1.bf16.msra.mxu0 0
      %571 = vmatprep.subr.bf16.mxu0 0
      %572 = vmatpush1.bf16.msra.mxu0 0
      %573 = vmatprep.subr.bf16.mxu0 0
      %574 = vmatpush1.bf16.msra.mxu0 0
      %575 = vmatprep.subr.bf16.mxu0 0
      %576 = vmatpush1.bf16.msra.mxu0 0
      %577 = vmatprep.subr.bf16.mxu0 0
      %578 = vmatpush1.bf16.msra.mxu0 0
      %579 = vmatprep.subr.bf16.mxu0 0
      %580 = vmatpush1.bf16.msra.mxu0 0
      %581 = vmatprep.subr.bf16.mxu0 0
      %582 = vmatpush1.bf16.msra.mxu0 0
      %583 = vmatprep.subr.bf16.mxu0 0
      %584 = vmatpush1.bf16.msra.mxu0 0
      %585 = vmatprep.subr.bf16.mxu0 0
      %586 = vmatpush1.bf16.msra.mxu0 0
      %587 = vmatprep.subr.bf16.mxu0 0
      %588 = vmatpush1.bf16.msra.mxu0 0
      %589 = vmatprep.subr.bf16.mxu0 0
      %590 = vmatpush1.bf16.msra.mxu0 0
      %591 = vmatprep.subr.bf16.mxu0 0
      %592 = vmatpush1.bf16.msra.mxu0 0
      %593 = vmatprep.subr.bf16.mxu0 0
      %594 = vmatpush1.bf16.msra.mxu0 0
      %595 = vmatprep.subr.bf16.mxu0 0
      %596 = vmatpush1.bf16.msra.mxu0 0
      %597 = vmatprep.mubr.bf16.mxu0 0
      %598 = vmatmul.mubr.bf16.gmra.mrb[0].mxu0 %v560
      %v599 = vpop.f32.mrb[0].mxu0
      %v600 = vadd.f32 0.0, %v599
      %v601 = vpop.f32.mrb[0].mxu0
      %v602 = vpop.f32.mrb[0].mxu0
      %v603 = vpop.f32.mrb[0].mxu0
      %604 = vdwg.mxu0
      %606 = vrot.lane.b32.xlu0 %v378, 8
      %v607 = vpop.permute.xlu0 %606
      %610 = vrot.lane.b32.xlu0 %v489, 16
      %v611 = vpop.permute.xlu0 %610
      %614 = vrot.lane.b32.xlu0 %v600, 24
      %v615 = vpop.permute.xlu0 %614
      %v617 = vsel %vm161, %v266, %v607
      %vm618 = vcmask 130048
      %v619 = vsel %vm618, %v617, %v611
      %vm620 = vcmask 195584
      %v621 = vsel %vm620, %v619, %v615
      %vm622 = vcmask 261120
      %623 = vst.msk [vmem:[%s155] sm:$0xff] %vm622, %v621
      %p624 = scmp.lt.s32.totalorder %s13, 1
      %s625 = scalar_select %p624, %s13, 1
      %s626 = smul.addr %s625, 8
      %s627 = scalar_lea.vmem %s2, %s626
      // Predicated region
      $region29: #{mon_mothma_forward.59} parent=27 // pred_check
        %p628 = pneg %p83
      $region30: #{mon_mothma_forward.59} parent=27 // pred_check_branch
        %630 = sbr.rel (%p628) target = $region32
      $region31: #{mon_mothma_forward.59} parent=27 // pred_region
        _
      $region32: #{mon_mothma_forward.59} parent=27 // pred_fallthru
        _
    $region28: #{mon_mothma_forward.59} parent=5 // pred_fallthru
      _
    %p631 = scmp.le.s32.totalorder 2, %s8
    // Predicated region
    $region33: #{mon_mothma_forward.59} parent=5 // pred_check
      %p632 = pneg %p631
    $region34: #{mon_mothma_forward.59} parent=5 // pred_check_branch
      %634 = sbr.rel (%p632) target = $region36
    $region35: #{mon_mothma_forward.59} parent=5 // pred_region
      %s635 = ssub.s32 %s8, 2
      // Predicated region
      $region37: #{mon_mothma_forward.59} parent=35 // pred_check
        %p636 = pneg %p89
      $region38: #{mon_mothma_forward.59} parent=35 // pred_check_branch
        %638 = sbr.rel (%p636) target = $region40
      $region39: #{mon_mothma_forward.59} parent=35 // pred_region
        %p639 = scmp.lt.s32.totalorder %s14, 1
        %s640 = scalar_select %p639, %s14, 1
        %s641 = smul.addr %s640, 8
        %s642 = scalar_lea.vmem %s2, %s641
      $region40: #{mon_mothma_forward.59} parent=35 // pred_fallthru
        _
    $region36: #{mon_mothma_forward.59} parent=5 // pred_fallthru
      _
  $region6: #{mon_mothma_forward.59} parent=0 // loop_footer
    %s12 = sadd.s32 1, %s8
  $region7: #{mon_mothma_forward.59} parent=0 // loop_footer_branch
    %7 = sbr.rel target = $region3
  $region8: #{mon_mothma_forward.59} parent=0 // loop_exit
    _

// kernel: mon_mothma_forward.54
$region0: #{mon_mothma_forward.54}
  #allocation0 [shape = 'u32[]', space=smem, size = 0x4, offset = 0x4, fixed_abs, tag = 'smem constant byte address 0x4 - core index']
  #allocation1 [shape = 'u32[144,128]{1,0:T(1,128)}', space=vmem, size = 0x12000, scoped, tag = 'internal scratch']
  %s0 = inlined_call_operand.vmem [shape: f32[2,8,96], index: 0, kind: input, shape index: {}]
  %s1 = inlined_call_operand.vmem [shape: f32[8,8], index: 1, kind: input, shape index: {}]
  %s2 = inlined_call_operand.vmem [shape: f32[2,8,32], index: 2, kind: output, shape index: {}]
  %s3 = sld [smem:[#allocation0]]
  $region41: #{mon_mothma_forward.54} parent=0
    _
  %s5 = ssub.s32 1, %s3
  %s6 = scalar_select 0, %s5, %s3
  loop: start=0, step=1, limit=4
  $region2: #{mon_mothma_forward.54} parent=0 // loop_pre_header
    _
  $region3: #{mon_mothma_forward.54} parent=0 // loop_header
    %s8 = sphi 0, %s12
    %p9 = scmp.ge.s32.totalorder %s8, 4
    %s18 = sphi 0, %s20
    %s21 = sphi 0, %s18
    %s22 = sphi 0, %s21
    %s38 = sphi 0, %s22
    %s42 = sphi 0, %s42
    %s44 = sphi 0, %s42
    %s45 = sphi 0, %s44
    %s59 = sphi 0, %s45
    %s65 = sphi 0, %s67
    %s68 = sphi 0, %s65
    %s69 = sphi 0, %s68
    %s85 = sphi 0, %s69
  $region4: #{mon_mothma_forward.54} parent=0 // loop_header_branch
    %11 = sbr.rel (%p9) target = $region8
  $region5: #{mon_mothma_forward.54} parent=0 // loop_body
    %s13 = ssub.s32 %s8, 1
    %s14 = ssub.s32 %s8, 2
    %s15 = sadd.s32 %s8, 1
    %s16 = ssub.s32 %s8, %s15
    %p17 = scmp.eq.s32.totalorder %s16, 0
    %s19 = sadd.s32 %s18, 1
    %s20 = scalar_select %p17, %s18, %s19
    %p23 = pneg %p17
    %p24 = scmp.eq.s32.totalorder %s8, 1
    %p25 = por %p23, %p24
    %p26 = scmp.ne.s32.totalorder %s18, %s21
    %p27 = scmp.eq.s32.totalorder %s8, 0
    %p28 = por %p26, %p27
    %p29 = scmp.ne.s32.totalorder %s18, %s21
    %p30 = scmp.eq.s32.totalorder %s13, 1
    %p31 = por %p29, %p30
    %p32 = scmp.ne.s32.totalorder %s21, %s22
    %p33 = scmp.eq.s32.totalorder %s13, 0
    %p34 = por %p32, %p33
    %p35 = scmp.ne.s32.totalorder %s21, %s22
    %p36 = scmp.eq.s32.totalorder %s14, 1
    %p37 = por %p35, %p36
    %p39 = scmp.ne.s32.totalorder %s22, %s38
    %p40 = scmp.eq.s32.totalorder %s14, 0
    %p41 = por %p39, %p40
    %s43 = sadd.s32 %s42, 1
    %p46 = scmp.eq.s32.totalorder %s8, 1
    %p47 = scmp.ne.s32.totalorder %s42, %s44
    %p48 = scmp.eq.s32.totalorder %s8, 0
    %p49 = por %p47, %p48
    %p50 = scmp.ne.s32.totalorder %s42, %s44
    %p51 = scmp.eq.s32.totalorder %s13, 1
    %p52 = por %p50, %p51
    %p53 = scmp.ne.s32.totalorder %s44, %s45
    %p54 = scmp.eq.s32.totalorder %s13, 0
    %p55 = por %p53, %p54
    %p56 = scmp.ne.s32.totalorder %s44, %s45
    %p57 = scmp.eq.s32.totalorder %s14, 1
    %p58 = por %p56, %p57
    %p60 = scmp.ne.s32.totalorder %s45, %s59
    %p61 = scmp.eq.s32.totalorder %s14, 0
    %p62 = por %p60, %p61
    %s63 = ssub.s32 %s8, %s15
    %p64 = scmp.eq.s32.totalorder %s63, 0
    %s66 = sadd.s32 %s65, 1
    %s67 = scalar_select %p64, %s65, %s66
    %p70 = pneg %p64
    %p71 = scmp.eq.s32.totalorder %s8, 1
    %p72 = por %p70, %p71
    %p73 = scmp.ne.s32.totalorder %s65, %s68
    %p74 = scmp.eq.s32.totalorder %s8, 0
    %p75 = por %p73, %p74
    %p76 = scmp.ne.s32.totalorder %s65, %s68
    %p77 = scmp.eq.s32.totalorder %s13, 1
    %p78 = por %p76, %p77
    %p79 = scmp.ne.s32.totalorder %s68, %s69
    %p80 = scmp.eq.s32.totalorder %s13, 0
    %p81 = por %p79, %p80
    %p82 = scmp.ne.s32.totalorder %s68, %s69
    %p83 = scmp.eq.s32.totalorder %s14, 1
    %p84 = por %p82, %p83
    %p86 = scmp.ne.s32.totalorder %s69, %s85
    %p87 = scmp.eq.s32.totalorder %s14, 0
    %p88 = por %p86, %p87
    %p89 = scmp.le.s32.totalorder 1, %s8
    %p90 = scmp.lt.s32.totalorder %s8, 3
    %p91 = pnand %p89, %p90
    %p92 = pneg %p91
    // Predicated region
    $region9: #{mon_mothma_forward.54} parent=5 // pred_check
      _
    $region10: #{mon_mothma_forward.54} parent=5 // pred_check_branch
      %94 = sbr.rel (%p91) target = $region12
    $region11: #{mon_mothma_forward.54} parent=5 // pred_region
      %s95 = ssub.s32 %s8, 1
      // Predicated region
      $region13: #{mon_mothma_forward.54} parent=11 // pred_check
        %p96 = pneg %p55
      $region14: #{mon_mothma_forward.54} parent=11 // pred_check_branch
        %98 = sbr.rel (%p96) target = $region16
      $region15: #{mon_mothma_forward.54} parent=11 // pred_region
        _
      $region16: #{mon_mothma_forward.54} parent=11 // pred_fallthru
        _
    $region12: #{mon_mothma_forward.54} parent=5 // pred_fallthru
      _
    %p99 = scmp.lt.s32.totalorder %s8, 2
    // Predicated region
    $region17: #{mon_mothma_forward.54} parent=5 // pred_check
      %p100 = pneg %p99
    $region18: #{mon_mothma_forward.54} parent=5 // pred_check_branch
      %102 = sbr.rel (%p100) target = $region20
    $region19: #{mon_mothma_forward.54} parent=5 // pred_region
      // Predicated region
      $region21: #{mon_mothma_forward.54} parent=19 // pred_check
        %p103 = pneg %p28
      $region22: #{mon_mothma_forward.54} parent=19 // pred_check_branch
        %105 = sbr.rel (%p103) target = $region24
      $region23: #{mon_mothma_forward.54} parent=19 // pred_region
        %p106 = scmp.lt.s32.totalorder %s8, 1
        %s107 = scalar_select %p106, %s8, 1
        %s108 = smul.addr %s107, 8
        %s109 = scalar_lea.vmem %s0, %s108
      $region24: #{mon_mothma_forward.54} parent=19 // pred_fallthru
        _
    $region20: #{mon_mothma_forward.54} parent=5 // pred_fallthru
      _
    %p110 = scmp.le.s32.totalorder 1, %s8
    %p111 = scmp.lt.s32.totalorder %s8, 3
    %p112 = pnand %p110, %p111
    %p113 = pneg %p112
    // Predicated region
    $region25: #{mon_mothma_forward.54} parent=5 // pred_check
      _
    $region26: #{mon_mothma_forward.54} parent=5 // pred_check_branch
      %115 = sbr.rel (%p112) target = $region28
    $region27: #{mon_mothma_forward.54} parent=5 // pred_region
      %s116 = ssub.s32 %s8, 1
      %p117 = scmp.lt.s32.totalorder %s13, 1
      %s118 = scalar_select %p117, %s13, 1
      %s119 = smul.addr %s118, 8
      %s120 = scalar_lea.vmem %s0, %s119
      %p121 = pneg %p34
      %p122 = pneg %p31
      %p123 = pneg %p55
      %p124 = pneg %p52
      %p125 = pneg %p81
      %p126 = pneg %p78
      %p127 = scmp.lt.s32.totalorder %s13, 1
      %s128 = scalar_select %p127, %s13, 1
      %s129 = smul.addr %s128, 8
      %s130 = scalar_lea.vmem %s2, %s129
      %p131 = scmp.lt.s32.totalorder %s13, 1
      %s132 = scalar_select %p131, %s13, 1
      %s133 = smul.addr %s132, 8
      %s134 = scalar_lea.vmem %s0, %s133
      %p135 = scmp.lt.s32.totalorder %s13, 1
      %s136 = scalar_select %p135, %s13, 1
      %s137 = smul.addr %s136, 8
      %s138 = scalar_lea.vmem %s2, %s137
      %v140 = vld [vmem:[%s1] sm:$0xff]
      %v141 = vld [vmem:[%s134] sm:$0xff]
      %v142 = vpack.c.bf16 %v141, %v141
      %144 = vrot.lane.b32.xlu0 %v142, 96
      %v145 = vpop.permute.xlu0 %144
      %vm146 = vcmask 64512
      %v148 = vsel %vm146, %v142, 0
      %v151 = vsel %vm146, %v145, 0
      %153 = vmatprep.subr.bf16.mxu0 0
      %154 = vmatpush1.bf16.xpose.msra.mxu0 %v151
      %155 = vmatprep.subr.bf16.mxu0 0
      %156 = vmatpush1.bf16.xpose.msra.mxu0 0
      %157 = vmatprep.subr.bf16.mxu0 0
      %158 = vmatpush1.bf16.xpose.msra.mxu0 0
      %159 = vmatprep.subr.bf16.mxu0 0
      %160 = vmatpush1.bf16.xpose.msra.mxu0 0
      %161 = vmatprep.subr.bf16.mxu0 0
      %162 = vmatpush1.bf16.xpose.msra.mxu0 0
      %163 = vmatprep.subr.bf16.mxu0 0
      %164 = vmatpush1.bf16.xpose.msra.mxu0 0
      %165 = vmatprep.subr.bf16.mxu0 0
      %166 = vmatpush1.bf16.xpose.msra.mxu0 0
      %167 = vmatprep.subr.bf16.mxu0 0
      %168 = vmatpush1.bf16.xpose.msra.mxu0 0
      %169 = vmatprep.subr.bf16.mxu0 0
      %170 = vmatpush1.bf16.xpose.msra.mxu0 0
      %171 = vmatprep.subr.bf16.mxu0 0
      %172 = vmatpush1.bf16.xpose.msra.mxu0 0
      %173 = vmatprep.subr.bf16.mxu0 0
      %174 = vmatpush1.bf16.xpose.msra.mxu0 0
      %175 = vmatprep.subr.bf16.mxu0 0
      %176 = vmatpush1.bf16.xpose.msra.mxu0 0
      %177 = vmatprep.subr.bf16.mxu0 0
      %178 = vmatpush1.bf16.xpose.msra.mxu0 0
      %179 = vmatprep.subr.bf16.mxu0 0
      %180 = vmatpush1.bf16.xpose.msra.mxu0 0
      %181 = vmatprep.subr.bf16.mxu0 0
      %182 = vmatpush1.bf16.xpose.msra.mxu0 0
      %183 = vmatprep.subr.bf16.mxu0 0
      %184 = vmatpush1.bf16.xpose.msra.mxu0 0
      %185 = vmatprep.mubr.bf16.mxu0 0
      %186 = vmatmul.mubr.bf16.gmra.mrb[0].mxu0 %v148
      %v187 = vpop.f32.mrb[0].mxu0
      %v188 = vadd.f32 0.0, %v187
      %v189 = vpop.f32.mrb[0].mxu0
      %v190 = vpop.f32.mrb[0].mxu0
      %v191 = vpop.f32.mrb[0].mxu0
      %192 = vdwg.mxu0
      %v193 = vmul.f32 %v188, 0.35355338
      %v194 = vadd.f32 %v193, %v140
      %v195 = vsel %vm146, %v194, -inf
      %196 = vmax.xlane.f32.xlu0 %v195
      %v197 = vpop.xlane.xlu0 %196
      %v198 = vsub.f32 %v194, %v197
      %v199 = vmul.f32 %v198, 1.442695
      %v200 = vpow.pop %v199
      %v201 = vsel %vm146, %v200, 0.0
      %202 = vadd.xlane.f32.xlu0 %v201
      %v203 = vpop.xlane.xlu0 %202
      %v204 = vrcp.pop %v203
      %v205 = vmul.f32 %v200, %v204
      %v206 = vpack.c.bf16 %v205, %v205
      %207 = vrot.lane.b32.xlu0 %v142, 64
      %v208 = vpop.permute.xlu0 %207
      %v210 = vsel %vm146, %v206, 0
      %vm212 = vcmask 1043456
      %v214 = vsel %vm212, %v208, 0
      %216 = vmatprep.subr.bf16.mxu0 0
      %217 = vmatpush1.bf16.msra.mxu0 %v214
      %218 = vmatprep.subr.bf16.mxu0 0
      %219 = vmatpush1.bf16.msra.mxu0 0
      %220 = vmatprep.subr.bf16.mxu0 0
      %221 = vmatpush1.bf16.msra.mxu0 0
      %222 = vmatprep.subr.bf16.mxu0 0
      %223 = vmatpush1.bf16.msra.mxu0 0
      %224 = vmatprep.subr.bf16.mxu0 0
      %225 = vmatpush1.bf16.msra.mxu0 0
      %226 = vmatprep.subr.bf16.mxu0 0
      %227 = vmatpush1.bf16.msra.mxu0 0
      %228 = vmatprep.subr.bf16.mxu0 0
      %229 = vmatpush1.bf16.msra.mxu0 0
      %230 = vmatprep.subr.bf16.mxu0 0
      %231 = vmatpush1.bf16.msra.mxu0 0
      %232 = vmatprep.subr.bf16.mxu0 0
      %233 = vmatpush1.bf16.msra.mxu0 0
      %234 = vmatprep.subr.bf16.mxu0 0
      %235 = vmatpush1.bf16.msra.mxu0 0
      %236 = vmatprep.subr.bf16.mxu0 0
      %237 = vmatpush1.bf16.msra.mxu0 0
      %238 = vmatprep.subr.bf16.mxu0 0
      %239 = vmatpush1.bf16.msra.mxu0 0
      %240 = vmatprep.subr.bf16.mxu0 0
      %241 = vmatpush1.bf16.msra.mxu0 0
      %242 = vmatprep.subr.bf16.mxu0 0
      %243 = vmatpush1.bf16.msra.mxu0 0
      %244 = vmatprep.subr.bf16.mxu0 0
      %245 = vmatpush1.bf16.msra.mxu0 0
      %246 = vmatprep.subr.bf16.mxu0 0
      %247 = vmatpush1.bf16.msra.mxu0 0
      %248 = vmatprep.mubr.bf16.mxu0 0
      %249 = vmatmul.mubr.bf16.gmra.mrb[0].mxu0 %v210
      %v250 = vpop.f32.mrb[0].mxu0
      %v251 = vadd.f32 0.0, %v250
      %v252 = vpop.f32.mrb[0].mxu0
      %v253 = vpop.f32.mrb[0].mxu0
      %v254 = vpop.f32.mrb[0].mxu0
      %255 = vdwg.mxu0
      %256 = vrot.lane.b32.xlu0 %v142, 120
      %v257 = vpop.permute.xlu0 %256
      %258 = vrot.lane.b32.xlu0 %v142, 88
      %v259 = vpop.permute.xlu0 %258
      %v261 = vsel %vm146, %v257, 0
      %v264 = vsel %vm146, %v259, 0
      %266 = vmatprep.subr.bf16.mxu0 0
      %267 = vmatpush1.bf16.xpose.msra.mxu0 %v264
      %268 = vmatprep.subr.bf16.mxu0 0
      %269 = vmatpush1.bf16.xpose.msra.mxu0 0
      %270 = vmatprep.subr.bf16.mxu0 0
      %271 = vmatpush1.bf16.xpose.msra.mxu0 0
      %272 = vmatprep.subr.bf16.mxu0 0
      %273 = vmatpush1.bf16.xpose.msra.mxu0 0
      %274 = vmatprep.subr.bf16.mxu0 0
      %275 = vmatpush1.bf16.xpose.msra.mxu0 0
      %276 = vmatprep.subr.bf16.mxu0 0
      %277 = vmatpush1.bf16.xpose.msra.mxu0 0
      %278 = vmatprep.subr.bf16.mxu0 0
      %279 = vmatpush1.bf16.xpose.msra.mxu0 0
      %280 = vmatprep.subr.bf16.mxu0 0
      %281 = vmatpush1.bf16.xpose.msra.mxu0 0
      %282 = vmatprep.subr.bf16.mxu0 0
      %283 = vmatpush1.bf16.xpose.msra.mxu0 0
      %284 = vmatprep.subr.bf16.mxu0 0
      %285 = vmatpush1.bf16.xpose.msra.mxu0 0
      %286 = vmatprep.subr.bf16.mxu0 0
      %287 = vmatpush1.bf16.xpose.msra.mxu0 0
      %288 = vmatprep.subr.bf16.mxu0 0
      %289 = vmatpush1.bf16.xpose.msra.mxu0 0
      %290 = vmatprep.subr.bf16.mxu0 0
      %291 = vmatpush1.bf16.xpose.msra.mxu0 0
      %292 = vmatprep.subr.bf16.mxu0 0
      %293 = vmatpush1.bf16.xpose.msra.mxu0 0
      %294 = vmatprep.subr.bf16.mxu0 0
      %295 = vmatpush1.bf16.xpose.msra.mxu0 0
      %296 = vmatprep.subr.bf16.mxu0 0
      %297 = vmatpush1.bf16.xpose.msra.mxu0 0
      %298 = vmatprep.mubr.bf16.mxu0 0
      %299 = vmatmul.mubr.bf16.gmra.mrb[0].mxu0 %v261
      %v300 = vpop.f32.mrb[0].mxu0
      %v301 = vadd.f32 0.0, %v300
      %v302 = vpop.f32.mrb[0].mxu0
      %v303 = vpop.f32.mrb[0].mxu0
      %v304 = vpop.f32.mrb[0].mxu0
      %305 = vdwg.mxu0
      %v306 = vmul.f32 %v301, 0.35355338
      %v307 = vadd.f32 %v306, %v140
      %v308 = vsel %vm146, %v307, -inf
      %309 = vmax.xlane.f32.xlu0 %v308
      %v310 = vpop.xlane.xlu0 %309
      %v311 = vsub.f32 %v307, %v310
      %v312 = vmul.f32 %v311, 1.442695
      %v313 = vpow.pop %v312
      %v314 = vsel %vm146, %v313, 0.0
      %315 = vadd.xlane.f32.xlu0 %v314
      %v316 = vpop.xlane.xlu0 %315
      %v317 = vrcp.pop %v316
      %v318 = vmul.f32 %v313, %v317
      %v319 = vpack.c.bf16 %v318, %v318
      %320 = vrot.lane.b32.xlu0 %v142, 56
      %v321 = vpop.permute.xlu0 %320
      %v323 = vsel %vm146, %v319, 0
      %v326 = vsel %vm212, %v321, 0
      %328 = vmatprep.subr.bf16.mxu0 0
      %329 = vmatpush1.bf16.msra.mxu0 %v326
      %330 = vmatprep.subr.bf16.mxu0 0
      %331 = vmatpush1.bf16.msra.mxu0 0
      %332 = vmatprep.subr.bf16.mxu0 0
      %333 = vmatpush1.bf16.msra.mxu0 0
      %334 = vmatprep.subr.bf16.mxu0 0
      %335 = vmatpush1.bf16.msra.mxu0 0
      %336 = vmatprep.subr.bf16.mxu0 0
      %337 = vmatpush1.bf16.msra.mxu0 0
      %338 = vmatprep.subr.bf16.mxu0 0
      %339 = vmatpush1.bf16.msra.mxu0 0
      %340 = vmatprep.subr.bf16.mxu0 0
      %341 = vmatpush1.bf16.msra.mxu0 0
      %342 = vmatprep.subr.bf16.mxu0 0
      %343 = vmatpush1.bf16.msra.mxu0 0
      %344 = vmatprep.subr.bf16.mxu0 0
      %345 = vmatpush1.bf16.msra.mxu0 0
      %346 = vmatprep.subr.bf16.mxu0 0
      %347 = vmatpush1.bf16.msra.mxu0 0
      %348 = vmatprep.subr.bf16.mxu0 0
      %349 = vmatpush1.bf16.msra.mxu0 0
      %350 = vmatprep.subr.bf16.mxu0 0
      %351 = vmatpush1.bf16.msra.mxu0 0
      %352 = vmatprep.subr.bf16.mxu0 0
      %353 = vmatpush1.bf16.msra.mxu0 0
      %354 = vmatprep.subr.bf16.mxu0 0
      %355 = vmatpush1.bf16.msra.mxu0 0
      %356 = vmatprep.subr.bf16.mxu0 0
      %357 = vmatpush1.bf16.msra.mxu0 0
      %358 = vmatprep.subr.bf16.mxu0 0
      %359 = vmatpush1.bf16.msra.mxu0 0
      %360 = vmatprep.mubr.bf16.mxu0 0
      %361 = vmatmul.mubr.bf16.gmra.mrb[0].mxu0 %v323
      %v362 = vpop.f32.mrb[0].mxu0
      %v363 = vadd.f32 0.0, %v362
      %v364 = vpop.f32.mrb[0].mxu0
      %v365 = vpop.f32.mrb[0].mxu0
      %v366 = vpop.f32.mrb[0].mxu0
      %367 = vdwg.mxu0
      %368 = vrot.lane.b32.xlu0 %v142, 112
      %v369 = vpop.permute.xlu0 %368
      %370 = vrot.lane.b32.xlu0 %v142, 80
      %v371 = vpop.permute.xlu0 %370
      %v373 = vsel %vm146, %v369, 0
      %v376 = vsel %vm146, %v371, 0
      %378 = vmatprep.subr.bf16.mxu0 0
      %379 = vmatpush1.bf16.xpose.msra.mxu0 %v376
      %380 = vmatprep.subr.bf16.mxu0 0
      %381 = vmatpush1.bf16.xpose.msra.mxu0 0
      %382 = vmatprep.subr.bf16.mxu0 0
      %383 = vmatpush1.bf16.xpose.msra.mxu0 0
      %384 = vmatprep.subr.bf16.mxu0 0
      %385 = vmatpush1.bf16.xpose.msra.mxu0 0
      %386 = vmatprep.subr.bf16.mxu0 0
      %387 = vmatpush1.bf16.xpose.msra.mxu0 0
      %388 = vmatprep.subr.bf16.mxu0 0
      %389 = vmatpush1.bf16.xpose.msra.mxu0 0
      %390 = vmatprep.subr.bf16.mxu0 0
      %391 = vmatpush1.bf16.xpose.msra.mxu0 0
      %392 = vmatprep.subr.bf16.mxu0 0
      %393 = vmatpush1.bf16.xpose.msra.mxu0 0
      %394 = vmatprep.subr.bf16.mxu0 0
      %395 = vmatpush1.bf16.xpose.msra.mxu0 0
      %396 = vmatprep.subr.bf16.mxu0 0
      %397 = vmatpush1.bf16.xpose.msra.mxu0 0
      %398 = vmatprep.subr.bf16.mxu0 0
      %399 = vmatpush1.bf16.xpose.msra.mxu0 0
      %400 = vmatprep.subr.bf16.mxu0 0
      %401 = vmatpush1.bf16.xpose.msra.mxu0 0
      %402 = vmatprep.subr.bf16.mxu0 0
      %403 = vmatpush1.bf16.xpose.msra.mxu0 0
      %404 = vmatprep.subr.bf16.mxu0 0
      %405 = vmatpush1.bf16.xpose.msra.mxu0 0
      %406 = vmatprep.subr.bf16.mxu0 0
      %407 = vmatpush1.bf16.xpose.msra.mxu0 0
      %408 = vmatprep.subr.bf16.mxu0 0
      %409 = vmatpush1.bf16.xpose.msra.mxu0 0
      %410 = vmatprep.mubr.bf16.mxu0 0
      %411 = vmatmul.mubr.bf16.gmra.mrb[0].mxu0 %v373
      %v412 = vpop.f32.mrb[0].mxu0
      %v413 = vadd.f32 0.0, %v412
      %v414 = vpop.f32.mrb[0].mxu0
      %v415 = vpop.f32.mrb[0].mxu0
      %v416 = vpop.f32.mrb[0].mxu0
      %417 = vdwg.mxu0
      %v418 = vmul.f32 %v413, 0.35355338
      %v419 = vadd.f32 %v418, %v140
      %v420 = vsel %vm146, %v419, -inf
      %421 = vmax.xlane.f32.xlu0 %v420
      %v422 = vpop.xlane.xlu0 %421
      %v423 = vsub.f32 %v419, %v422
      %v424 = vmul.f32 %v423, 1.442695
      %v425 = vpow.pop %v424
      %v426 = vsel %vm146, %v425, 0.0
      %427 = vadd.xlane.f32.xlu0 %v426
      %v428 = vpop.xlane.xlu0 %427
      %v429 = vrcp.pop %v428
      %v430 = vmul.f32 %v425, %v429
      %v431 = vpack.c.bf16 %v430, %v430
      %432 = vrot.lane.b32.xlu0 %v142, 48
      %v433 = vpop.permute.xlu0 %432
      %v435 = vsel %vm146, %v431, 0
      %v438 = vsel %vm212, %v433, 0
      %440 = vmatprep.subr.bf16.mxu0 0
      %441 = vmatpush1.bf16.msra.mxu0 %v438
      %442 = vmatprep.subr.bf16.mxu0 0
      %443 = vmatpush1.bf16.msra.mxu0 0
      %444 = vmatprep.subr.bf16.mxu0 0
      %445 = vmatpush1.bf16.msra.mxu0 0
      %446 = vmatprep.subr.bf16.mxu0 0
      %447 = vmatpush1.bf16.msra.mxu0 0
      %448 = vmatprep.subr.bf16.mxu0 0
      %449 = vmatpush1.bf16.msra.mxu0 0
      %450 = vmatprep.subr.bf16.mxu0 0
      %451 = vmatpush1.bf16.msra.mxu0 0
      %452 = vmatprep.subr.bf16.mxu0 0
      %453 = vmatpush1.bf16.msra.mxu0 0
      %454 = vmatprep.subr.bf16.mxu0 0
      %455 = vmatpush1.bf16.msra.mxu0 0
      %456 = vmatprep.subr.bf16.mxu0 0
      %457 = vmatpush1.bf16.msra.mxu0 0
      %458 = vmatprep.subr.bf16.mxu0 0
      %459 = vmatpush1.bf16.msra.mxu0 0
      %460 = vmatprep.subr.bf16.mxu0 0
      %461 = vmatpush1.bf16.msra.mxu0 0
      %462 = vmatprep.subr.bf16.mxu0 0
      %463 = vmatpush1.bf16.msra.mxu0 0
      %464 = vmatprep.subr.bf16.mxu0 0
      %465 = vmatpush1.bf16.msra.mxu0 0
      %466 = vmatprep.subr.bf16.mxu0 0
      %467 = vmatpush1.bf16.msra.mxu0 0
      %468 = vmatprep.subr.bf16.mxu0 0
      %469 = vmatpush1.bf16.msra.mxu0 0
      %470 = vmatprep.subr.bf16.mxu0 0
      %471 = vmatpush1.bf16.msra.mxu0 0
      %472 = vmatprep.mubr.bf16.mxu0 0
      %473 = vmatmul.mubr.bf16.gmra.mrb[0].mxu0 %v435
      %v474 = vpop.f32.mrb[0].mxu0
      %v475 = vadd.f32 0.0, %v474
      %v476 = vpop.f32.mrb[0].mxu0
      %v477 = vpop.f32.mrb[0].mxu0
      %v478 = vpop.f32.mrb[0].mxu0
      %479 = vdwg.mxu0
      %480 = vrot.lane.b32.xlu0 %v142, 104
      %v481 = vpop.permute.xlu0 %480
      %482 = vrot.lane.b32.xlu0 %v142, 72
      %v483 = vpop.permute.xlu0 %482
      %v485 = vsel %vm146, %v481, 0
      %v488 = vsel %vm146, %v483, 0
      %490 = vmatprep.subr.bf16.mxu0 0
      %491 = vmatpush1.bf16.xpose.msra.mxu0 %v488
      %492 = vmatprep.subr.bf16.mxu0 0
      %493 = vmatpush1.bf16.xpose.msra.mxu0 0
      %494 = vmatprep.subr.bf16.mxu0 0
      %495 = vmatpush1.bf16.xpose.msra.mxu0 0
      %496 = vmatprep.subr.bf16.mxu0 0
      %497 = vmatpush1.bf16.xpose.msra.mxu0 0
      %498 = vmatprep.subr.bf16.mxu0 0
      %499 = vmatpush1.bf16.xpose.msra.mxu0 0
      %500 = vmatprep.subr.bf16.mxu0 0
      %501 = vmatpush1.bf16.xpose.msra.mxu0 0
      %502 = vmatprep.subr.bf16.mxu0 0
      %503 = vmatpush1.bf16.xpose.msra.mxu0 0
      %504 = vmatprep.subr.bf16.mxu0 0
      %505 = vmatpush1.bf16.xpose.msra.mxu0 0
      %506 = vmatprep.subr.bf16.mxu0 0
      %507 = vmatpush1.bf16.xpose.msra.mxu0 0
      %508 = vmatprep.subr.bf16.mxu0 0
      %509 = vmatpush1.bf16.xpose.msra.mxu0 0
      %510 = vmatprep.subr.bf16.mxu0 0
      %511 = vmatpush1.bf16.xpose.msra.mxu0 0
      %512 = vmatprep.subr.bf16.mxu0 0
      %513 = vmatpush1.bf16.xpose.msra.mxu0 0
      %514 = vmatprep.subr.bf16.mxu0 0
      %515 = vmatpush1.bf16.xpose.msra.mxu0 0
      %516 = vmatprep.subr.bf16.mxu0 0
      %517 = vmatpush1.bf16.xpose.msra.mxu0 0
      %518 = vmatprep.subr.bf16.mxu0 0
      %519 = vmatpush1.bf16.xpose.msra.mxu0 0
      %520 = vmatprep.subr.bf16.mxu0 0
      %521 = vmatpush1.bf16.xpose.msra.mxu0 0
      %522 = vmatprep.mubr.bf16.mxu0 0
      %523 = vmatmul.mubr.bf16.gmra.mrb[0].mxu0 %v485
      %v524 = vpop.f32.mrb[0].mxu0
      %v525 = vadd.f32 0.0, %v524
      %v526 = vpop.f32.mrb[0].mxu0
      %v527 = vpop.f32.mrb[0].mxu0
      %v528 = vpop.f32.mrb[0].mxu0
      %529 = vdwg.mxu0
      %v530 = vmul.f32 %v525, 0.35355338
      %v531 = vadd.f32 %v530, %v140
      %v532 = vsel %vm146, %v531, -inf
      %533 = vmax.xlane.f32.xlu0 %v532
      %v534 = vpop.xlane.xlu0 %533
      %v535 = vsub.f32 %v531, %v534
      %v536 = vmul.f32 %v535, 1.442695
      %v537 = vpow.pop %v536
      %v538 = vsel %vm146, %v537, 0.0
      %539 = vadd.xlane.f32.xlu0 %v538
      %v540 = vpop.xlane.xlu0 %539
      %v541 = vrcp.pop %v540
      %v542 = vmul.f32 %v537, %v541
      %v543 = vpack.c.bf16 %v542, %v542
      %544 = vrot.lane.b32.xlu0 %v142, 40
      %v545 = vpop.permute.xlu0 %544
      %v547 = vsel %vm146, %v543, 0
      %v550 = vsel %vm212, %v545, 0
      %552 = vmatprep.subr.bf16.mxu0 0
      %553 = vmatpush1.bf16.msra.mxu0 %v550
      %554 = vmatprep.subr.bf16.mxu0 0
      %555 = vmatpush1.bf16.msra.mxu0 0
      %556 = vmatprep.subr.bf16.mxu0 0
      %557 = vmatpush1.bf16.msra.mxu0 0
      %558 = vmatprep.subr.bf16.mxu0 0
      %559 = vmatpush1.bf16.msra.mxu0 0
      %560 = vmatprep.subr.bf16.mxu0 0
      %561 = vmatpush1.bf16.msra.mxu0 0
      %562 = vmatprep.subr.bf16.mxu0 0
      %563 = vmatpush1.bf16.msra.mxu0 0
      %564 = vmatprep.subr.bf16.mxu0 0
      %565 = vmatpush1.bf16.msra.mxu0 0
      %566 = vmatprep.subr.bf16.mxu0 0
      %567 = vmatpush1.bf16.msra.mxu0 0
      %568 = vmatprep.subr.bf16.mxu0 0
      %569 = vmatpush1.bf16.msra.mxu0 0
      %570 = vmatprep.subr.bf16.mxu0 0
      %571 = vmatpush1.bf16.msra.mxu0 0
      %572 = vmatprep.subr.bf16.mxu0 0
      %573 = vmatpush1.bf16.msra.mxu0 0
      %574 = vmatprep.subr.bf16.mxu0 0
      %575 = vmatpush1.bf16.msra.mxu0 0
      %576 = vmatprep.subr.bf16.mxu0 0
      %577 = vmatpush1.bf16.msra.mxu0 0
      %578 = vmatprep.subr.bf16.mxu0 0
      %579 = vmatpush1.bf16.msra.mxu0 0
      %580 = vmatprep.subr.bf16.mxu0 0
      %581 = vmatpush1.bf16.msra.mxu0 0
      %582 = vmatprep.subr.bf16.mxu0 0
      %583 = vmatpush1.bf16.msra.mxu0 0
      %584 = vmatprep.mubr.bf16.mxu0 0
      %585 = vmatmul.mubr.bf16.gmra.mrb[0].mxu0 %v547
      %v586 = vpop.f32.mrb[0].mxu0
      %v587 = vadd.f32 0.0, %v586
      %v588 = vpop.f32.mrb[0].mxu0
      %v589 = vpop.f32.mrb[0].mxu0
      %v590 = vpop.f32.mrb[0].mxu0
      %591 = vdwg.mxu0
      %593 = vrot.lane.b32.xlu0 %v363, 8
      %v594 = vpop.permute.xlu0 %593
      %597 = vrot.lane.b32.xlu0 %v475, 16
      %v598 = vpop.permute.xlu0 %597
      %601 = vrot.lane.b32.xlu0 %v587, 24
      %v602 = vpop.permute.xlu0 %601
      %v604 = vsel %vm146, %v251, %v594
      %vm605 = vcmask 130048
      %v606 = vsel %vm605, %v604, %v598
      %vm607 = vcmask 195584
      %v608 = vsel %vm607, %v606, %v602
      %vm609 = vcmask 261120
      %610 = vst.msk [vmem:[%s138] sm:$0xff] %vm609, %v608
      %p611 = scmp.lt.s32.totalorder %s13, 1
      %s612 = scalar_select %p611, %s13, 1
      %s613 = smul.addr %s612, 8
      %s614 = scalar_lea.vmem %s2, %s613
      // Predicated region
      $region29: #{mon_mothma_forward.54} parent=27 // pred_check
        %p615 = pneg %p78
      $region30: #{mon_mothma_forward.54} parent=27 // pred_check_branch
        %617 = sbr.rel (%p615) target = $region32
      $region31: #{mon_mothma_forward.54} parent=27 // pred_region
        _
      $region32: #{mon_mothma_forward.54} parent=27 // pred_fallthru
        _
    $region28: #{mon_mothma_forward.54} parent=5 // pred_fallthru
      _
    %p618 = scmp.le.s32.totalorder 2, %s8
    // Predicated region
    $region33: #{mon_mothma_forward.54} parent=5 // pred_check
      %p619 = pneg %p618
    $region34: #{mon_mothma_forward.54} parent=5 // pred_check_branch
      %621 = sbr.rel (%p619) target = $region36
    $region35: #{mon_mothma_forward.54} parent=5 // pred_region
      %s622 = ssub.s32 %s8, 2
      // Predicated region
      $region37: #{mon_mothma_forward.54} parent=35 // pred_check
        %p623 = pneg %p84
      $region38: #{mon_mothma_forward.54} parent=35 // pred_check_branch
        %625 = sbr.rel (%p623) target = $region40
      $region39: #{mon_mothma_forward.54} parent=35 // pred_region
        %p626 = scmp.lt.s32.totalorder %s14, 1
        %s627 = scalar_select %p626, %s14, 1
        %s628 = smul.addr %s627, 8
        %s629 = scalar_lea.vmem %s2, %s628
      $region40: #{mon_mothma_forward.54} parent=35 // pred_fallthru
        _
    $region36: #{mon_mothma_forward.54} parent=5 // pred_fallthru
      _
  $region6: #{mon_mothma_forward.54} parent=0 // loop_footer
    %s12 = sadd.s32 1, %s8
  $region7: #{mon_mothma_forward.54} parent=0 // loop_footer_branch
    %7 = sbr.rel target = $region3
  $region8: #{mon_mothma_forward.54} parent=0 // loop_exit
    _

</llo_original>
